<compile_context>
chip_gen: v5e
topology: v5e:2x2
jax: 0.10.0
libtpu: 0.0.40
codegen_flags: <defaults>
</compile_context>

<pallas_src>
import jax
import jax.numpy as jnp
from jax.experimental import pallas as pl
from jax.experimental.pallas import tpu as pltpu


# --------------------------------------------------------------------------
# schedule generator (kept for parity with the PyTorch module; the kernel's
# in-kernel partition loop realizes the same dependency structure)
# --------------------------------------------------------------------------
def _clock_cycles(num_batches, num_partitions):
    total_cycles = num_batches + num_partitions - 1
    for clock in range(total_cycles):
        activities = []
        for partition_idx in range(num_partitions):
            microbatch_idx = clock - partition_idx
            if 0 <= microbatch_idx < num_batches:
                activities.append((microbatch_idx, partition_idx))
        yield activities


# --------------------------------------------------------------------------
# kernels
# --------------------------------------------------------------------------
def _make_resident_kernel(num_partitions):
    """Whole pipeline chain for one block of rows; weights VMEM-resident."""

    def kernel(x_ref, w_ref, b_ref, o_ref):
        # fp32 activation carry lives in vregs / compiler-managed VMEM (SSA),
        # no explicit scratch store+load per stage.
        act = x_ref[...].astype(jnp.float32)
        for j in range(num_partitions):  # P is static -> full unroll
            h = jnp.dot(
                act.astype(jnp.bfloat16),          # bf16 MXU operands
                w_ref[j],                          # (H, H) resident bf16
                preferred_element_type=jnp.float32,
            )
            act = jnp.maximum(h + b_ref[j : j + 1, :], 0.0)  # fp32 VPU epilogue
        o_ref[...] = act.astype(o_ref.dtype)

    return kernel


def _streamed_kernel(x_ref, w_ref, b_ref, o_ref, act_ref):
    """Fallback: weights streamed per partition (for sets that don't fit VMEM)."""
    j = pl.program_id(1)  # partition index, innermost "arbitrary" carry axis

    @pl.when(j == 0)
    def _():
        act_ref[...] = x_ref[...].astype(jnp.float32)

    h = jnp.dot(
        act_ref[...].astype(jnp.bfloat16),
        w_ref[0],
        preferred_element_type=jnp.float32,
    )
    act_ref[...] = jnp.maximum(h + b_ref[pl.ds(j, 1), :], 0.0)

    @pl.when(j == pl.num_programs(1) - 1)
    def _():
        o_ref[...] = act_ref[...].astype(o_ref.dtype)


# --------------------------------------------------------------------------
# sizing helpers
# --------------------------------------------------------------------------
def _vmem_budget_bytes():
    """~72% of the per-core physical VMEM (conservative default if unknown)."""
    phys = 64 * 1024 * 1024  # v7x per-core physical (the smallest target)
    try:
        info = pltpu.get_tpu_info()
        phys = int(getattr(info, "vmem_capacity_bytes", phys)) or phys
    except Exception:
        pass
    return int(0.72 * phys)


def _choose_rows_per_block(batch, split_size, hidden, io_budget_bytes,
                           target_rows=512):
    """Fuse whole micro-batches into one block, up to ~512 rows / VMEM budget."""
    num_micro = batch // split_size
    # x block (2 bufs) + out block (2 bufs) + fp32 working copy, per row
    per_row_bytes = 6 * hidden * 4
    best = split_size
    for k in range(1, num_micro + 1):
        if num_micro % k:
            continue
        rows = k * split_size
        if rows > max(target_rows, split_size):
            continue
        if rows * per_row_bytes > max(io_budget_bytes, split_size * per_row_bytes):
            continue
        best = max(best, rows)
    return best


def _clamp_vmem(needed_bytes, budget_bytes):
    limit = max(int(1.25 * needed_bytes), 4 * 1024 * 1024)
    limit = min(limit, max(budget_bytes, needed_bytes))
    return int(max(limit, needed_bytes))


# --------------------------------------------------------------------------
# pallas_call wrappers
# --------------------------------------------------------------------------
def _pipe_call_resident(x, weights, biases, rows, vmem_limit, cost,
                        single_buffer_weights):
    B, H = x.shape
    P = weights.shape[0]
    grid = (B // rows,)

    if single_buffer_weights:
        w_spec = pl.BlockSpec((P, H, H), lambda i: (0, 0, 0),
                              pipeline_mode=pl.Buffered(1))
        b_spec = pl.BlockSpec((P, H), lambda i: (0, 0),
                              pipeline_mode=pl.Buffered(1))
    else:
        w_spec = pl.BlockSpec((P, H, H), lambda i: (0, 0, 0))
        b_spec = pl.BlockSpec((P, H), lambda i: (0, 0))

    return pl.pallas_call(
        _make_resident_kernel(P),
        out_shape=jax.ShapeDtypeStruct((B, H), x.dtype),
        grid_spec=pltpu.PrefetchScalarGridSpec(
            num_scalar_prefetch=0,
            grid=grid,
            in_specs=[
                pl.BlockSpec((rows, H), lambda i: (i, 0)),  # fused micro-batches
                w_spec,                                     # resident weights
                b_spec,                                     # resident biases
            ],
            out_specs=pl.BlockSpec((rows, H), lambda i: (i, 0)),
        ),
        compiler_params=pltpu.CompilerParams(
            dimension_semantics=("parallel",),  # megacore-shardable on v7x
            vmem_limit_bytes=vmem_limit,
        ),
        cost_estimate=cost,
    )(x, weights, biases)


def _pipe_call_streamed(x, weights, biases, rows, vmem_limit, cost):
    B, H = x.shape
    P = weights.shape[0]
    grid = (B // rows, P)

    return pl.pallas_call(
        _streamed_kernel,
        out_shape=jax.ShapeDtypeStruct((B, H), x.dtype),
        grid_spec=pltpu.PrefetchScalarGridSpec(
            num_scalar_prefetch=0,
            grid=grid,
            in_specs=[
                pl.BlockSpec((rows, H), lambda i, j: (i, 0)),
                pl.BlockSpec((1, H, H), lambda i, j: (j, 0, 0)),  # stream W_j
                pl.BlockSpec((P, H), lambda i, j: (0, 0)),        # tiny, resident
            ],
            out_specs=pl.BlockSpec((rows, H), lambda i, j: (i, 0)),
            scratch_shapes=[pltpu.VMEM((rows, H), jnp.float32)],  # fp32 carry
        ),
        compiler_params=pltpu.CompilerParams(
            dimension_semantics=("parallel", "arbitrary"),
            vmem_limit_bytes=vmem_limit,
        ),
        cost_estimate=cost,
    )(x, weights, biases)


def pipe_forward(x, weights, biases, *, split_size):
    """Run the pipeline forward pass.

    x:       (B, H)      mini-batch (fp32)
    weights: (P, H, H)   one Linear weight per partition (bf16)
    biases:  (P, H)      one Linear bias per partition   (fp32)
    """
    B, H = x.shape
    P = weights.shape[0]
    assert B % split_size == 0, "batch must divide evenly into micro-batches"
    assert split_size % 8 == 0 and H % 128 == 0, "need sublane/lane-aligned tiles"

    budget = _vmem_budget_bytes()
    w_bytes = weights.size * weights.dtype.itemsize
    b_bytes = biases.size * biases.dtype.itemsize
    resident_bytes = w_bytes + b_bytes  # single-buffered residents

    cost = pl.CostEstimate(
        flops=2 * B * H * H * P,
        transcendentals=0,
        bytes_accessed=(
            x.size * x.dtype.itemsize
            + w_bytes
            + b_bytes
            + B * H * x.dtype.itemsize
        ),
    )

    if resident_bytes <= budget // 2:
        # Fast path: all weights VMEM-resident, partition loop in-kernel.
        rows = _choose_rows_per_block(B, split_size, H, budget - resident_bytes)
        needed = resident_bytes + rows * H * 4 * 6
        vmem_limit = _clamp_vmem(needed, budget)
        try:
            return jax.block_until_ready(
                _pipe_call_resident(x, weights, biases, rows, vmem_limit, cost,
                                    single_buffer_weights=True))
        except Exception:
            # Fall back to default (double-buffered) resident weight blocks.
            vmem_limit = _clamp_vmem(needed + resident_bytes, budget)
            return jax.block_until_ready(
                _pipe_call_resident(x, weights, biases, rows, vmem_limit, cost,
                                    single_buffer_weights=False))

    # Fallback (e.g. large P*H*H on v7x's 64 MiB VMEM): stream one weight
    # tile per partition, carry activations in a VMEM scratch.
    stream_bytes = 2 * H * H * weights.dtype.itemsize + b_bytes
    rows = _choose_rows_per_block(B, split_size, H, budget - stream_bytes)
    needed = stream_bytes + rows * H * 4 * 6 + rows * H * 4
    vmem_limit = _clamp_vmem(needed, budget)
    return jax.block_until_ready(
        _pipe_call_streamed(x, weights, biases, rows, vmem_limit, cost))


# --------------------------------------------------------------------------
# pure-JAX reference (identical math/precision: bf16 matmul operands, fp32
# accumulation and fp32 activation carry), walking the clock-cycle schedule
# exactly like Pipe.forward does
# --------------------------------------------------------------------------
def pipe_forward_ref(x, weights, biases, *, split_size):
    B = x.shape[0]
    P = weights.shape[0]
    micro_batches = [
        x[i : i + split_size].astype(jnp.float32) for i in range(0, B, split_size)
    ]
    for clock_activities in _clock_cycles(len(micro_batches), P):
        for mb_idx, part_idx in clock_activities:
            h = jnp.dot(
                micro_batches[mb_idx].astype(jnp.bfloat16),
                weights[part_idx],
                preferred_element_type=jnp.float32,
            )
            micro_batches[mb_idx] = jnp.maximum(h + biases[part_idx][None, :], 0.0)
    return jnp.concatenate(micro_batches, axis=0).astype(x.dtype)


if __name__ == "__main__":
    # TPU-friendly small shapes: batch=256, hidden=256 (multiple of 128),
    # 3 pipeline partitions, micro-batch size 128 (multiple of 8).
    B, H, P = 256, 256, 3
    SPLIT = 128

    key = jax.random.PRNGKey(0)
    kx, kw, kb = jax.random.split(key, 3)

    x = jax.random.normal(kx, (B, H), dtype=jnp.float32)
    weights = (jax.random.normal(kw, (P, H, H), dtype=jnp.float32) * 0.05).astype(
        jnp.bfloat16
    )
    biases = jax.random.normal(kb, (P, H), dtype=jnp.float32) * 0.1

    out = pipe_forward(x, weights, biases, split_size=SPLIT)
    out = jax.block_until_ready(out)

    ref = pipe_forward_ref(x, weights, biases, split_size=SPLIT)
    assert out.shape == (B, H)
    assert jnp.allclose(out, ref, atol=1e-2, rtol=1e-2), (
        float(jnp.max(jnp.abs(out - ref)))
    )

    # TODO(synk): the worker-thread / multi-device dispatch (Task, queues,
    # .to(device)) has no Pallas equivalent on a single TensorCore; the fused
    # in-kernel partition loop realizes the same dependency order instead.
    print("KERNEL_OK")
</pallas_src>

<mosaic_0001>
module attributes {stable_mosaic.version = 11 : i64} {
  func.func @kernel(%arg0: i32, %arg1: memref<256x256xf32, #tpu.memory_space<vmem>>, %arg2: memref<3x256x256xbf16, #tpu.memory_space<vmem>>, %arg3: memref<3x256xf32, #tpu.memory_space<vmem>>, %arg4: memref<256x256xf32, #tpu.memory_space<vmem>>) attributes {dimension_semantics = [#tpu.dimension_semantics<parallel>], iteration_bounds = array<i64: 1>, scalar_prefetch = 0 : i64, scratch_operands = 0 : i64, tpu.core_type = #tpu.core_type<tc>, window_params = [{transform_indices = @transform_0, window_bounds = array<i64: 256, 256>}, {pipeline_mode = #tpu.pipeline_mode<synchronous>, transform_indices = @transform_1, window_bounds = array<i64: 3, 256, 256>}, {pipeline_mode = #tpu.pipeline_mode<synchronous>, transform_indices = @transform_2, window_bounds = array<i64: 3, 256>}, {transform_indices = @transform_3, window_bounds = array<i64: 256, 256>}]} {
    %c0 = arith.constant 0 : index
    %c0_0 = arith.constant 0 : index
    %0 = vector.load %arg1[%c0, %c0_0] : memref<256x256xf32, #tpu.memory_space<vmem>>, vector<256x256xf32>
    %1 = arith.truncf %0 : vector<256x256xf32> to vector<256x256xbf16>
    %c0_1 = arith.constant 0 : index
    %c0_2 = arith.constant 0 : index
    %c0_3 = arith.constant 0 : index
    %2 = vector.load %arg2[%c0_1, %c0_2, %c0_3] : memref<3x256x256xbf16, #tpu.memory_space<vmem>>, vector<1x256x256xbf16>
    %3 = vector.shape_cast %2 : vector<1x256x256xbf16> to vector<256x256xbf16>
    %cst = arith.constant dense<0.000000e+00> : vector<256x256xf32>
    %4 = tpu.matmul %1, %3, %cst {dimension_numbers = #tpu.dot_dimension_numbers<[1], [0], [0], [1], [0, 0, 1, 1], [], []>} : vector<256x256xbf16>, vector<256x256xbf16>, vector<256x256xf32> -> vector<256x256xf32>
    %c0_4 = arith.constant 0 : index
    %c0_5 = arith.constant 0 : index
    %5 = vector.load %arg3[%c0_4, %c0_5] : memref<3x256xf32, #tpu.memory_space<vmem>>, vector<1x256xf32>
    %6 = vector.broadcast %5 : vector<1x256xf32> to vector<256x256xf32>
    %7 = arith.addf %4, %6 : vector<256x256xf32>
    %cst_6 = arith.constant 0.000000e+00 : f32
    %8 = vector.broadcast %cst_6 : f32 to vector<256x256xf32>
    %9 = arith.maximumf %7, %8 : vector<256x256xf32>
    %10 = arith.truncf %9 : vector<256x256xf32> to vector<256x256xbf16>
    %c1 = arith.constant 1 : index
    %c0_7 = arith.constant 0 : index
    %c0_8 = arith.constant 0 : index
    %11 = vector.load %arg2[%c1, %c0_7, %c0_8] : memref<3x256x256xbf16, #tpu.memory_space<vmem>>, vector<1x256x256xbf16>
    %12 = vector.shape_cast %11 : vector<1x256x256xbf16> to vector<256x256xbf16>
    %cst_9 = arith.constant dense<0.000000e+00> : vector<256x256xf32>
    %13 = tpu.matmul %10, %12, %cst_9 {dimension_numbers = #tpu.dot_dimension_numbers<[1], [0], [0], [1], [0, 0, 1, 1], [], []>} : vector<256x256xbf16>, vector<256x256xbf16>, vector<256x256xf32> -> vector<256x256xf32>
    %c1_10 = arith.constant 1 : index
    %c0_11 = arith.constant 0 : index
    %14 = vector.load %arg3[%c1_10, %c0_11] : memref<3x256xf32, #tpu.memory_space<vmem>>, vector<1x256xf32>
    %15 = vector.broadcast %14 : vector<1x256xf32> to vector<256x256xf32>
    %16 = arith.addf %13, %15 : vector<256x256xf32>
    %cst_12 = arith.constant 0.000000e+00 : f32
    %17 = vector.broadcast %cst_12 : f32 to vector<256x256xf32>
    %18 = arith.maximumf %16, %17 : vector<256x256xf32>
    %19 = arith.truncf %18 : vector<256x256xf32> to vector<256x256xbf16>
    %c2 = arith.constant 2 : index
    %c0_13 = arith.constant 0 : index
    %c0_14 = arith.constant 0 : index
    %20 = vector.load %arg2[%c2, %c0_13, %c0_14] : memref<3x256x256xbf16, #tpu.memory_space<vmem>>, vector<1x256x256xbf16>
    %21 = vector.shape_cast %20 : vector<1x256x256xbf16> to vector<256x256xbf16>
    %cst_15 = arith.constant dense<0.000000e+00> : vector<256x256xf32>
    %22 = tpu.matmul %19, %21, %cst_15 {dimension_numbers = #tpu.dot_dimension_numbers<[1], [0], [0], [1], [0, 0, 1, 1], [], []>} : vector<256x256xbf16>, vector<256x256xbf16>, vector<256x256xf32> -> vector<256x256xf32>
    %c2_16 = arith.constant 2 : index
    %c0_17 = arith.constant 0 : index
    %23 = vector.load %arg3[%c2_16, %c0_17] : memref<3x256xf32, #tpu.memory_space<vmem>>, vector<1x256xf32>
    %24 = vector.broadcast %23 : vector<1x256xf32> to vector<256x256xf32>
    %25 = arith.addf %22, %24 : vector<256x256xf32>
    %cst_18 = arith.constant 0.000000e+00 : f32
    %26 = vector.broadcast %cst_18 : f32 to vector<256x256xf32>
    %27 = arith.maximumf %25, %26 : vector<256x256xf32>
    %c0_19 = arith.constant 0 : index
    %c0_20 = arith.constant 0 : index
    %28 = vector.load %arg4[%c0_19, %c0_20] : memref<256x256xf32, #tpu.memory_space<vmem>>, vector<256x256xf32>
    tpu.vector_store %arg4[%c0_19, %c0_20], %27 {strides = array<i32>} : memref<256x256xf32, #tpu.memory_space<vmem>>, vector<256x256xf32>,
    return
  }
  func.func @transform_0(%arg0: i32) -> (i32, i32) {
    %c0_i32 = arith.constant 0 : i32
    %c0_i32_0 = arith.constant 0 : i32
    return %arg0, %c0_i32 : i32, i32
  }
  func.func @transform_1(%arg0: i32) -> (i32, i32, i32) {
    %c0_i32 = arith.constant 0 : i32
    %c0_i32_0 = arith.constant 0 : i32
    %c0_i32_1 = arith.constant 0 : i32
    %c0_i32_2 = arith.constant 0 : i32
    return %c0_i32, %c0_i32_0, %c0_i32_1 : i32, i32, i32
  }
  func.func @transform_2(%arg0: i32) -> (i32, i32) {
    %c0_i32 = arith.constant 0 : i32
    %c0_i32_0 = arith.constant 0 : i32
    %c0_i32_1 = arith.constant 0 : i32
    return %c0_i32, %c0_i32_0 : i32, i32
  }
  func.func @transform_3(%arg0: i32) -> (i32, i32) {
    %c0_i32 = arith.constant 0 : i32
    %c0_i32_0 = arith.constant 0 : i32
    return %arg0, %c0_i32 : i32, i32
  }
}

module attributes {stable_mosaic.version = 11 : i64} {
  func.func @kernel(%arg0: i32, %arg1: memref<256x256xf32, #tpu.memory_space<vmem>>, %arg2: memref<3x256x256xbf16, #tpu.memory_space<vmem>>, %arg3: memref<3x256xf32, #tpu.memory_space<vmem>>, %arg4: memref<256x256xf32, #tpu.memory_space<vmem>>) attributes {dimension_semantics = [#tpu.dimension_semantics<parallel>], iteration_bounds = array<i64: 1>, scalar_prefetch = 0 : i64, scratch_operands = 0 : i64, tpu.core_type = #tpu.core_type<tc>, window_params = [{transform_indices = @transform_0, window_bounds = array<i64: 256, 256>}, {pipeline_mode = #tpu.pipeline_mode<synchronous>, transform_indices = @transform_1, window_bounds = array<i64: 3, 256, 256>}, {pipeline_mode = #tpu.pipeline_mode<synchronous>, transform_indices = @transform_2, window_bounds = array<i64: 3, 256>}, {transform_indices = @transform_3, window_bounds = array<i64: 256, 256>}]} {
    %c0 = arith.constant 0 : index
    %c0_0 = arith.constant 0 : index
    %0 = vector.load %arg1[%c0, %c0_0] : memref<256x256xf32, #tpu.memory_space<vmem>>, vector<256x256xf32>
    %1 = arith.truncf %0 : vector<256x256xf32> to vector<256x256xbf16>
    %c0_1 = arith.constant 0 : index
    %c0_2 = arith.constant 0 : index
    %c0_3 = arith.constant 0 : index
    %2 = vector.load %arg2[%c0_1, %c0_2, %c0_3] : memref<3x256x256xbf16, #tpu.memory_space<vmem>>, vector<1x256x256xbf16>
    %3 = vector.shape_cast %2 : vector<1x256x256xbf16> to vector<256x256xbf16>
    %cst = arith.constant dense<0.000000e+00> : vector<256x256xf32>
    %4 = tpu.matmul %1, %3, %cst {dimension_numbers = #tpu.dot_dimension_numbers<[1], [0], [0], [1], [0, 0, 1, 1], [], []>} : vector<256x256xbf16>, vector<256x256xbf16>, vector<256x256xf32> -> vector<256x256xf32>
    %c0_4 = arith.constant 0 : index
    %c0_5 = arith.constant 0 : index
    %5 = vector.load %arg3[%c0_4, %c0_5] : memref<3x256xf32, #tpu.memory_space<vmem>>, vector<1x256xf32>
    %6 = vector.broadcast %5 : vector<1x256xf32> to vector<256x256xf32>
    %7 = arith.addf %4, %6 : vector<256x256xf32>
    %cst_6 = arith.constant 0.000000e+00 : f32
    %8 = vector.broadcast %cst_6 : f32 to vector<256x256xf32>
    %9 = arith.maximumf %7, %8 : vector<256x256xf32>
    %10 = arith.truncf %9 : vector<256x256xf32> to vector<256x256xbf16>
    %c1 = arith.constant 1 : index
    %c0_7 = arith.constant 0 : index
    %c0_8 = arith.constant 0 : index
    %11 = vector.load %arg2[%c1, %c0_7, %c0_8] : memref<3x256x256xbf16, #tpu.memory_space<vmem>>, vector<1x256x256xbf16>
    %12 = vector.shape_cast %11 : vector<1x256x256xbf16> to vector<256x256xbf16>
    %cst_9 = arith.constant dense<0.000000e+00> : vector<256x256xf32>
    %13 = tpu.matmul %10, %12, %cst_9 {dimension_numbers = #tpu.dot_dimension_numbers<[1], [0], [0], [1], [0, 0, 1, 1], [], []>} : vector<256x256xbf16>, vector<256x256xbf16>, vector<256x256xf32> -> vector<256x256xf32>
    %c1_10 = arith.constant 1 : index
    %c0_11 = arith.constant 0 : index
    %14 = vector.load %arg3[%c1_10, %c0_11] : memref<3x256xf32, #tpu.memory_space<vmem>>, vector<1x256xf32>
    %15 = vector.broadcast %14 : vector<1x256xf32> to vector<256x256xf32>
    %16 = arith.addf %13, %15 : vector<256x256xf32>
    %cst_12 = arith.constant 0.000000e+00 : f32
    %17 = vector.broadcast %cst_12 : f32 to vector<256x256xf32>
    %18 = arith.maximumf %16, %17 : vector<256x256xf32>
    %19 = arith.truncf %18 : vector<256x256xf32> to vector<256x256xbf16>
    %c2 = arith.constant 2 : index
    %c0_13 = arith.constant 0 : index
    %c0_14 = arith.constant 0 : index
    %20 = vector.load %arg2[%c2, %c0_13, %c0_14] : memref<3x256x256xbf16, #tpu.memory_space<vmem>>, vector<1x256x256xbf16>
    %21 = vector.shape_cast %20 : vector<1x256x256xbf16> to vector<256x256xbf16>
    %cst_15 = arith.constant dense<0.000000e+00> : vector<256x256xf32>
    %22 = tpu.matmul %19, %21, %cst_15 {dimension_numbers = #tpu.dot_dimension_numbers<[1], [0], [0], [1], [0, 0, 1, 1], [], []>} : vector<256x256xbf16>, vector<256x256xbf16>, vector<256x256xf32> -> vector<256x256xf32>
    %c2_16 = arith.constant 2 : index
    %c0_17 = arith.constant 0 : index
    %23 = vector.load %arg3[%c2_16, %c0_17] : memref<3x256xf32, #tpu.memory_space<vmem>>, vector<1x256xf32>
    %24 = vector.broadcast %23 : vector<1x256xf32> to vector<256x256xf32>
    %25 = arith.addf %22, %24 : vector<256x256xf32>
    %cst_18 = arith.constant 0.000000e+00 : f32
    %26 = vector.broadcast %cst_18 : f32 to vector<256x256xf32>
    %27 = arith.maximumf %25, %26 : vector<256x256xf32>
    %c0_19 = arith.constant 0 : index
    %c0_20 = arith.constant 0 : index
    %28 = vector.load %arg4[%c0_19, %c0_20] : memref<256x256xf32, #tpu.memory_space<vmem>>, vector<256x256xf32>
    tpu.vector_store %arg4[%c0_19, %c0_20], %27 {strides = array<i32>} : memref<256x256xf32, #tpu.memory_space<vmem>>, vector<256x256xf32>,
    return
  }
  func.func @transform_0(%arg0: i32) -> (i32, i32) {
    %c0_i32 = arith.constant 0 : i32
    %c0_i32_0 = arith.constant 0 : i32
    return %arg0, %c0_i32 : i32, i32
  }
  func.func @transform_1(%arg0: i32) -> (i32, i32, i32) {
    %c0_i32 = arith.constant 0 : i32
    %c0_i32_0 = arith.constant 0 : i32
    %c0_i32_1 = arith.constant 0 : i32
    %c0_i32_2 = arith.constant 0 : i32
    return %c0_i32, %c0_i32_0, %c0_i32_1 : i32, i32, i32
  }
  func.func @transform_2(%arg0: i32) -> (i32, i32) {
    %c0_i32 = arith.constant 0 : i32
    %c0_i32_0 = arith.constant 0 : i32
    %c0_i32_1 = arith.constant 0 : i32
    return %c0_i32, %c0_i32_0 : i32, i32
  }
  func.func @transform_3(%arg0: i32) -> (i32, i32) {
    %c0_i32 = arith.constant 0 : i32
    %c0_i32_0 = arith.constant 0 : i32
    return %arg0, %c0_i32 : i32, i32
  }
}

</mosaic_0001>

<llo_original>
// kernel: tpu_custom_call.1
$region0: #{tpu_custom_call.1}
  #allocation0 [shape = 'u32[]', space=smem, size = 0x4, offset = 0x4, fixed_abs, tag = 'smem constant byte address 0x4 - core index']
  #allocation1 [shape = 'u32[72,128]{1,0:T(1,128)}', space=vmem, size = 0x9000, scoped, tag = 'internal scratch']
  %s0 = inlined_call_operand.hbm [shape: f32[256,256], index: 0, kind: input, shape index: {}]
  %s1 = inlined_call_operand.hbm [shape: bf16[3,256,256], index: 1, kind: input, shape index: {}]
  %s2 = inlined_call_operand.hbm [shape: f32[3,256], index: 2, kind: input, shape index: {}]
  %s3 = inlined_call_operand.hbm [shape: f32[256,256], index: 3, kind: output, shape index: {}]
  %s4 = sld [smem:[#allocation0]]
  $region34: #{tpu_custom_call.1} parent=0
    _
  %s6 = ssub.s32 1, %s4
  %s7 = scalar_select 0, %s6, %s4
  $region1: #{tpu_custom_call.1} parent=0
    #allocation2 [shape = 'u8[262144]{0}', space=vmem, size = 0x40000, scoped, tag = 'input window, operand 0, single buffered']
    #allocation3 [shape = 's32[1]{0}', space=sflag, size = 0x4, scoped, tag = 'scoped memory for tpu_custom_call.1']
    #allocation4 [shape = 's32[1]{0}', space=sflag, size = 0x4, scoped, tag = 'scoped memory for tpu_custom_call.1']
    #allocation5 [shape = 'u8[393216]{0}', space=vmem, size = 0x60000, scoped, tag = 'input window, operand 1, single buffered']
    #allocation6 [shape = 's32[1]{0}', space=sflag, size = 0x4, scoped, tag = 'scoped memory for tpu_custom_call.1']
    #allocation7 [shape = 'u8[4096]{0}', space=vmem, size = 0x1000, scoped, tag = 'input window, operand 2, single buffered']
    #allocation8 [shape = 'u8[262144]{0}', space=vmem, size = 0x40000, scoped, tag = 'output window, operand 0, single buffered']
    %8 = vsyncpa [#allocation3], 0
    %9 = vsyncpa [#allocation6], 0
    %10 = vsyncpa [#allocation4], 0
    // Predicated region
    $region2: #{tpu_custom_call.1} parent=1 // pred_check
      _
    $region3: #{tpu_custom_call.1} parent=1 // pred_check_branch
      %12 = sbr.rel (0) target = $region5
    $region4: #{tpu_custom_call.1} parent=1 // pred_region
      %14 = vsyncadd [#allocation3], 0
      %s15 = sshll.u32 %s0, 4
      %s16 = int_to_ptr.hbm [resolvable:$true] %s15
      %s17 = sshll.u32 [#allocation2], 4
      %s18 = int_to_ptr.vmem [resolvable:$true] %s17
      %23 = dma.hbm_to_vmem [thread:$0]  %s16, 8192, %s18, [#allocation3], 256, 256, 16
    $region5: #{tpu_custom_call.1} parent=1 // pred_fallthru
      _
    // Predicated region
    $region6: #{tpu_custom_call.1} parent=1 // pred_check
      _
    $region7: #{tpu_custom_call.1} parent=1 // pred_check_branch
      %25 = sbr.rel (0) target = $region9
    $region8: #{tpu_custom_call.1} parent=1 // pred_region
      %27 = vsyncadd [#allocation6], 0
      %s28 = sshll.u32 %s1, 4
      %s29 = int_to_ptr.hbm [resolvable:$true] %s28
      %s30 = sshll.u32 [#allocation5], 4
      %s31 = int_to_ptr.vmem [resolvable:$true] %s30
      %36 = dma.hbm_to_vmem [thread:$0]  %s29, 12288, %s31, [#allocation6], 128, 128, 8
    $region9: #{tpu_custom_call.1} parent=1 // pred_fallthru
      _
    // Predicated region
    $region10: #{tpu_custom_call.1} parent=1 // pred_check
      _
    $region11: #{tpu_custom_call.1} parent=1 // pred_check_branch
      %38 = sbr.rel (0) target = $region13
    $region12: #{tpu_custom_call.1} parent=1 // pred_region
      %40 = vsyncadd [#allocation6], 0
      %s42 = sshll.u32 %s2, 4
      %s43 = int_to_ptr.hbm [resolvable:$true] %s42
      %s44 = sshll.u32 [#allocation7], 4
      %s45 = int_to_ptr.vmem [resolvable:$true] %s44
      %47 = dma.hbm_to_vmem [thread:$0]  %s43, 128, %s45, [#allocation6]
    $region13: #{tpu_custom_call.1} parent=1 // pred_fallthru
      _
    // Predicated region
    $region14: #{tpu_custom_call.1} parent=1 // pred_check
      _
    $region15: #{tpu_custom_call.1} parent=1 // pred_check_branch
      %49 = sbr.rel (0) target = $region17
    $region16: #{tpu_custom_call.1} parent=1 // pred_region
      %51 = dma.done [#allocation3], 8192
    $region17: #{tpu_custom_call.1} parent=1 // pred_fallthru
      _
    // Predicated region
    $region18: #{tpu_custom_call.1} parent=1 // pred_check
      _
    $region19: #{tpu_custom_call.1} parent=1 // pred_check_branch
      %53 = sbr.rel (0) target = $region21
    $region20: #{tpu_custom_call.1} parent=1 // pred_region
      %55 = dma.done [#allocation6], 12288
    $region21: #{tpu_custom_call.1} parent=1 // pred_fallthru
      _
    // Predicated region
    $region22: #{tpu_custom_call.1} parent=1 // pred_check
      _
    $region23: #{tpu_custom_call.1} parent=1 // pred_check_branch
      %57 = sbr.rel (0) target = $region25
    $region24: #{tpu_custom_call.1} parent=1 // pred_region
      %59 = dma.done [#allocation6], 128
    $region25: #{tpu_custom_call.1} parent=1 // pred_fallthru
      _
    %v60 = vld [vmem:[#allocation2] sm:$0xff]
    %v61 = vld [vmem:[#allocation2 + $0x8] sm:$0xff]
    %v62 = vld [vmem:[#allocation2 + $0x10] sm:$0xff]
    %v63 = vld [vmem:[#allocation2 + $0x18] sm:$0xff]
    %v64 = vld [vmem:[#allocation2 + $0x20] sm:$0xff]
    %v65 = vld [vmem:[#allocation2 + $0x28] sm:$0xff]
    %v66 = vld [vmem:[#allocation2 + $0x30] sm:$0xff]
    %v67 = vld [vmem:[#allocation2 + $0x38] sm:$0xff]
    %v68 = vld [vmem:[#allocation2 + $0x40] sm:$0xff]
    %v69 = vld [vmem:[#allocation2 + $0x48] sm:$0xff]
    %v70 = vld [vmem:[#allocation2 + $0x50] sm:$0xff]
    %v71 = vld [vmem:[#allocation2 + $0x58] sm:$0xff]
    %v72 = vld [vmem:[#allocation2 + $0x60] sm:$0xff]
    %v73 = vld [vmem:[#allocation2 + $0x68] sm:$0xff]
    %v74 = vld [vmem:[#allocation2 + $0x70] sm:$0xff]
    %v75 = vld [vmem:[#allocation2 + $0x78] sm:$0xff]
    %v76 = vld [vmem:[#allocation2 + $0x80] sm:$0xff]
    %v77 = vld [vmem:[#allocation2 + $0x88] sm:$0xff]
    %v78 = vld [vmem:[#allocation2 + $0x90] sm:$0xff]
    %v79 = vld [vmem:[#allocation2 + $0x98] sm:$0xff]
    %v80 = vld [vmem:[#allocation2 + $0xa0] sm:$0xff]
    %v81 = vld [vmem:[#allocation2 + $0xa8] sm:$0xff]
    %v82 = vld [vmem:[#allocation2 + $0xb0] sm:$0xff]
    %v83 = vld [vmem:[#allocation2 + $0xb8] sm:$0xff]
    %v84 = vld [vmem:[#allocation2 + $0xc0] sm:$0xff]
    %v85 = vld [vmem:[#allocation2 + $0xc8] sm:$0xff]
    %v86 = vld [vmem:[#allocation2 + $0xd0] sm:$0xff]
    %v87 = vld [vmem:[#allocation2 + $0xd8] sm:$0xff]
    %v88 = vld [vmem:[#allocation2 + $0xe0] sm:$0xff]
    %v89 = vld [vmem:[#allocation2 + $0xe8] sm:$0xff]
    %v90 = vld [vmem:[#allocation2 + $0xf0] sm:$0xff]
    %v91 = vld [vmem:[#allocation2 + $0xf8] sm:$0xff]
    %v92 = vld [vmem:[#allocation2 + $0x100] sm:$0xff]
    %v93 = vld [vmem:[#allocation2 + $0x108] sm:$0xff]
    %v94 = vld [vmem:[#allocation2 + $0x110] sm:$0xff]
    %v95 = vld [vmem:[#allocation2 + $0x118] sm:$0xff]
    %v96 = vld [vmem:[#allocation2 + $0x120] sm:$0xff]
    %v97 = vld [vmem:[#allocation2 + $0x128] sm:$0xff]
    %v98 = vld [vmem:[#allocation2 + $0x130] sm:$0xff]
    %v99 = vld [vmem:[#allocation2 + $0x138] sm:$0xff]
    %v100 = vld [vmem:[#allocation2 + $0x140] sm:$0xff]
    %v101 = vld [vmem:[#allocation2 + $0x148] sm:$0xff]
    %v102 = vld [vmem:[#allocation2 + $0x150] sm:$0xff]
    %v103 = vld [vmem:[#allocation2 + $0x158] sm:$0xff]
    %v104 = vld [vmem:[#allocation2 + $0x160] sm:$0xff]
    %v105 = vld [vmem:[#allocation2 + $0x168] sm:$0xff]
    %v106 = vld [vmem:[#allocation2 + $0x170] sm:$0xff]
    %v107 = vld [vmem:[#allocation2 + $0x178] sm:$0xff]
    %v108 = vld [vmem:[#allocation2 + $0x180] sm:$0xff]
    %v109 = vld [vmem:[#allocation2 + $0x188] sm:$0xff]
    %v110 = vld [vmem:[#allocation2 + $0x190] sm:$0xff]
    %v111 = vld [vmem:[#allocation2 + $0x198] sm:$0xff]
    %v112 = vld [vmem:[#allocation2 + $0x1a0] sm:$0xff]
    %v113 = vld [vmem:[#allocation2 + $0x1a8] sm:$0xff]
    %v114 = vld [vmem:[#allocation2 + $0x1b0] sm:$0xff]
    %v115 = vld [vmem:[#allocation2 + $0x1b8] sm:$0xff]
    %v116 = vld [vmem:[#allocation2 + $0x1c0] sm:$0xff]
    %v117 = vld [vmem:[#allocation2 + $0x1c8] sm:$0xff]
    %v118 = vld [vmem:[#allocation2 + $0x1d0] sm:$0xff]
    %v119 = vld [vmem:[#allocation2 + $0x1d8] sm:$0xff]
    %v120 = vld [vmem:[#allocation2 + $0x1e0] sm:$0xff]
    %v121 = vld [vmem:[#allocation2 + $0x1e8] sm:$0xff]
    %v122 = vld [vmem:[#allocation2 + $0x1f0] sm:$0xff]
    %v123 = vld [vmem:[#allocation2 + $0x1f8] sm:$0xff]
    %v124 = vpack.c.bf16 %v62, %v60
    %v125 = vpack.c.bf16 %v63, %v61
    %v126 = vpack.c.bf16 %v66, %v64
    %v127 = vpack.c.bf16 %v67, %v65
    %v128 = vpack.c.bf16 %v70, %v68
    %v129 = vpack.c.bf16 %v71, %v69
    %v130 = vpack.c.bf16 %v74, %v72
    %v131 = vpack.c.bf16 %v75, %v73
    %v132 = vpack.c.bf16 %v78, %v76
    %v133 = vpack.c.bf16 %v79, %v77
    %v134 = vpack.c.bf16 %v82, %v80
    %v135 = vpack.c.bf16 %v83, %v81
    %v136 = vpack.c.bf16 %v86, %v84
    %v137 = vpack.c.bf16 %v87, %v85
    %v138 = vpack.c.bf16 %v90, %v88
    %v139 = vpack.c.bf16 %v91, %v89
    %v140 = vpack.c.bf16 %v94, %v92
    %v141 = vpack.c.bf16 %v95, %v93
    %v142 = vpack.c.bf16 %v98, %v96
    %v143 = vpack.c.bf16 %v99, %v97
    %v144 = vpack.c.bf16 %v102, %v100
    %v145 = vpack.c.bf16 %v103, %v101
    %v146 = vpack.c.bf16 %v106, %v104
    %v147 = vpack.c.bf16 %v107, %v105
    %v148 = vpack.c.bf16 %v110, %v108
    %v149 = vpack.c.bf16 %v111, %v109
    %v150 = vpack.c.bf16 %v114, %v112
    %v151 = vpack.c.bf16 %v115, %v113
    %v152 = vpack.c.bf16 %v118, %v116
    %v153 = vpack.c.bf16 %v119, %v117
    %v154 = vpack.c.bf16 %v122, %v120
    %v155 = vpack.c.bf16 %v123, %v121
    %v156 = vld [vmem:[#allocation5] sm:$0xff]
    %v157 = vld [vmem:[#allocation5 + $0x8] sm:$0xff]
    %v158 = vld [vmem:[#allocation5 + $0x10] sm:$0xff]
    %v159 = vld [vmem:[#allocation5 + $0x18] sm:$0xff]
    %v160 = vld [vmem:[#allocation5 + $0x20] sm:$0xff]
    %v161 = vld [vmem:[#allocation5 + $0x28] sm:$0xff]
    %v162 = vld [vmem:[#allocation5 + $0x30] sm:$0xff]
    %v163 = vld [vmem:[#allocation5 + $0x38] sm:$0xff]
    %v164 = vld [vmem:[#allocation5 + $0x40] sm:$0xff]
    %v165 = vld [vmem:[#allocation5 + $0x48] sm:$0xff]
    %v166 = vld [vmem:[#allocation5 + $0x50] sm:$0xff]
    %v167 = vld [vmem:[#allocation5 + $0x58] sm:$0xff]
    %v168 = vld [vmem:[#allocation5 + $0x60] sm:$0xff]
    %v169 = vld [vmem:[#allocation5 + $0x68] sm:$0xff]
    %v170 = vld [vmem:[#allocation5 + $0x70] sm:$0xff]
    %v171 = vld [vmem:[#allocation5 + $0x78] sm:$0xff]
    %v172 = vld [vmem:[#allocation5 + $0x80] sm:$0xff]
    %v173 = vld [vmem:[#allocation5 + $0x88] sm:$0xff]
    %v174 = vld [vmem:[#allocation5 + $0x90] sm:$0xff]
    %v175 = vld [vmem:[#allocation5 + $0x98] sm:$0xff]
    %v176 = vld [vmem:[#allocation5 + $0xa0] sm:$0xff]
    %v177 = vld [vmem:[#allocation5 + $0xa8] sm:$0xff]
    %v178 = vld [vmem:[#allocation5 + $0xb0] sm:$0xff]
    %v179 = vld [vmem:[#allocation5 + $0xb8] sm:$0xff]
    %v180 = vld [vmem:[#allocation5 + $0xc0] sm:$0xff]
    %v181 = vld [vmem:[#allocation5 + $0xc8] sm:$0xff]
    %v182 = vld [vmem:[#allocation5 + $0xd0] sm:$0xff]
    %v183 = vld [vmem:[#allocation5 + $0xd8] sm:$0xff]
    %v184 = vld [vmem:[#allocation5 + $0xe0] sm:$0xff]
    %v185 = vld [vmem:[#allocation5 + $0xe8] sm:$0xff]
    %v186 = vld [vmem:[#allocation5 + $0xf0] sm:$0xff]
    %v187 = vld [vmem:[#allocation5 + $0xf8] sm:$0xff]
    %v188 = vld [vmem:[#allocation7] ss:$4 sm:$0x3]
    %v190 = vperm.slane %v188, 0
    %v191 = vperm.slane %v188, 1
    %v226 = vunpack.c.l.b16 %v156
    %v227 = vunpack.c.h.b16 %v156
    %v228 = vunpack.c.l.b16 %v157
    %v229 = vunpack.c.h.b16 %v157
    %v230 = vunpack.c.l.b16 %v158
    %v231 = vunpack.c.h.b16 %v158
    %v232 = vunpack.c.l.b16 %v159
    %v233 = vunpack.c.h.b16 %v159
    %v234 = vunpack.c.l.b16 %v160
    %v235 = vunpack.c.h.b16 %v160
    %v236 = vunpack.c.l.b16 %v161
    %v237 = vunpack.c.h.b16 %v161
    %v238 = vunpack.c.l.b16 %v162
    %v239 = vunpack.c.h.b16 %v162
    %v240 = vunpack.c.l.b16 %v163
    %v241 = vunpack.c.h.b16 %v163
    %v242 = vunpack.c.l.b16 %v164
    %v243 = vunpack.c.h.b16 %v164
    %v244 = vunpack.c.l.b16 %v165
    %v245 = vunpack.c.h.b16 %v165
    %v246 = vunpack.c.l.b16 %v166
    %v247 = vunpack.c.h.b16 %v166
    %v248 = vunpack.c.l.b16 %v167
    %v249 = vunpack.c.h.b16 %v167
    %v250 = vunpack.c.l.b16 %v168
    %v251 = vunpack.c.h.b16 %v168
    %v252 = vunpack.c.l.b16 %v169
    %v253 = vunpack.c.h.b16 %v169
    %v254 = vunpack.c.l.b16 %v170
    %v255 = vunpack.c.h.b16 %v170
    %v256 = vunpack.c.l.b16 %v171
    %v257 = vunpack.c.h.b16 %v171
    %v258 = vunpack.c.l.b16 %v172
    %v259 = vunpack.c.h.b16 %v172
    %v260 = vunpack.c.l.b16 %v173
    %v261 = vunpack.c.h.b16 %v173
    %v262 = vunpack.c.l.b16 %v174
    %v263 = vunpack.c.h.b16 %v174
    %v264 = vunpack.c.l.b16 %v175
    %v265 = vunpack.c.h.b16 %v175
    %v266 = vunpack.c.l.b16 %v176
    %v267 = vunpack.c.h.b16 %v176
    %v268 = vunpack.c.l.b16 %v177
    %v269 = vunpack.c.h.b16 %v177
    %v270 = vunpack.c.l.b16 %v178
    %v271 = vunpack.c.h.b16 %v178
    %v272 = vunpack.c.l.b16 %v179
    %v273 = vunpack.c.h.b16 %v179
    %v274 = vunpack.c.l.b16 %v180
    %v275 = vunpack.c.h.b16 %v180
    %v276 = vunpack.c.l.b16 %v181
    %v277 = vunpack.c.h.b16 %v181
    %v278 = vunpack.c.l.b16 %v182
    %v279 = vunpack.c.h.b16 %v182
    %v280 = vunpack.c.l.b16 %v183
    %v281 = vunpack.c.h.b16 %v183
    %v282 = vunpack.c.l.b16 %v184
    %v283 = vunpack.c.h.b16 %v184
    %v284 = vunpack.c.l.b16 %v185
    %v285 = vunpack.c.h.b16 %v185
    %v286 = vunpack.c.l.b16 %v186
    %v287 = vunpack.c.h.b16 %v186
    %v288 = vunpack.c.l.b16 %v187
    %v289 = vunpack.c.h.b16 %v187
    %v290 = vpack.c.b16 %v228, %v226
    %v291 = vpack.c.b16 %v229, %v227
    %v292 = vpack.c.b16 %v232, %v230
    %v293 = vpack.c.b16 %v233, %v231
    %v294 = vpack.c.b16 %v236, %v234
    %v295 = vpack.c.b16 %v237, %v235
    %v296 = vpack.c.b16 %v240, %v238
    %v297 = vpack.c.b16 %v241, %v239
    %v298 = vpack.c.b16 %v244, %v242
    %v299 = vpack.c.b16 %v245, %v243
    %v300 = vpack.c.b16 %v248, %v246
    %v301 = vpack.c.b16 %v249, %v247
    %v302 = vpack.c.b16 %v252, %v250
    %v303 = vpack.c.b16 %v253, %v251
    %v304 = vpack.c.b16 %v256, %v254
    %v305 = vpack.c.b16 %v257, %v255
    %v306 = vpack.c.b16 %v260, %v258
    %v307 = vpack.c.b16 %v261, %v259
    %v308 = vpack.c.b16 %v264, %v262
    %v309 = vpack.c.b16 %v265, %v263
    %v310 = vpack.c.b16 %v268, %v266
    %v311 = vpack.c.b16 %v269, %v267
    %v312 = vpack.c.b16 %v272, %v270
    %v313 = vpack.c.b16 %v273, %v271
    %v314 = vpack.c.b16 %v276, %v274
    %v315 = vpack.c.b16 %v277, %v275
    %v316 = vpack.c.b16 %v280, %v278
    %v317 = vpack.c.b16 %v281, %v279
    %v318 = vpack.c.b16 %v284, %v282
    %v319 = vpack.c.b16 %v285, %v283
    %v320 = vpack.c.b16 %v288, %v286
    %v321 = vpack.c.b16 %v289, %v287
    %354 = vmatpush.bf16.msra.mxu0 %v304
    %355 = vmatpush.bf16.msra.mxu0 %v302
    %356 = vmatpush.bf16.msra.mxu0 %v300
    %357 = vmatpush.bf16.msra.mxu0 %v298
    %358 = vmatpush.bf16.msra.mxu0 %v296
    %359 = vmatpush.bf16.msra.mxu0 %v294
    %360 = vmatpush.bf16.msra.mxu0 %v292
    %361 = vmatpush.bf16.msra.mxu0 %v290
    %362 = vmatmul.bf16.gmra.mxu0 %v124
    %v363 = vpop.f32.mrf.mxu0
    %v364 = vadd.f32 %v190, %v363
    %v365 = vpop.f32.mrf.mxu0
    %v366 = vadd.f32 %v190, %v365
    %367 = vmatmul.bf16.gmra.mxu0 %v126
    %v368 = vpop.f32.mrf.mxu0
    %v369 = vadd.f32 %v190, %v368
    %v370 = vpop.f32.mrf.mxu0
    %v371 = vadd.f32 %v190, %v370
    %372 = vmatmul.bf16.gmra.mxu0 %v128
    %v373 = vpop.f32.mrf.mxu0
    %v374 = vadd.f32 %v190, %v373
    %v375 = vpop.f32.mrf.mxu0
    %v376 = vadd.f32 %v190, %v375
    %377 = vmatmul.bf16.gmra.mxu0 %v130
    %v378 = vpop.f32.mrf.mxu0
    %v379 = vadd.f32 %v190, %v378
    %v380 = vpop.f32.mrf.mxu0
    %v381 = vadd.f32 %v190, %v380
    %382 = vmatmul.bf16.gmra.mxu0 %v132
    %v383 = vpop.f32.mrf.mxu0
    %v384 = vadd.f32 %v190, %v383
    %v385 = vpop.f32.mrf.mxu0
    %v386 = vadd.f32 %v190, %v385
    %387 = vmatmul.bf16.gmra.mxu0 %v134
    %v388 = vpop.f32.mrf.mxu0
    %v389 = vadd.f32 %v190, %v388
    %v390 = vpop.f32.mrf.mxu0
    %v391 = vadd.f32 %v190, %v390
    %392 = vmatmul.bf16.gmra.mxu0 %v136
    %v393 = vpop.f32.mrf.mxu0
    %v394 = vadd.f32 %v190, %v393
    %v395 = vpop.f32.mrf.mxu0
    %v396 = vadd.f32 %v190, %v395
    %397 = vmatmul.bf16.gmra.mxu0 %v138
    %v398 = vpop.f32.mrf.mxu0
    %v399 = vadd.f32 %v190, %v398
    %v400 = vpop.f32.mrf.mxu0
    %v401 = vadd.f32 %v190, %v400
    %402 = vmatmul.bf16.gmra.mxu0 %v140
    %v403 = vpop.f32.mrf.mxu0
    %v404 = vadd.f32 %v190, %v403
    %v405 = vpop.f32.mrf.mxu0
    %v406 = vadd.f32 %v190, %v405
    %407 = vmatmul.bf16.gmra.mxu0 %v142
    %v408 = vpop.f32.mrf.mxu0
    %v409 = vadd.f32 %v190, %v408
    %v410 = vpop.f32.mrf.mxu0
    %v411 = vadd.f32 %v190, %v410
    %412 = vmatmul.bf16.gmra.mxu0 %v144
    %v413 = vpop.f32.mrf.mxu0
    %v414 = vadd.f32 %v190, %v413
    %v415 = vpop.f32.mrf.mxu0
    %v416 = vadd.f32 %v190, %v415
    %417 = vmatmul.bf16.gmra.mxu0 %v146
    %v418 = vpop.f32.mrf.mxu0
    %v419 = vadd.f32 %v190, %v418
    %v420 = vpop.f32.mrf.mxu0
    %v421 = vadd.f32 %v190, %v420
    %422 = vmatmul.bf16.gmra.mxu0 %v148
    %v423 = vpop.f32.mrf.mxu0
    %v424 = vadd.f32 %v190, %v423
    %v425 = vpop.f32.mrf.mxu0
    %v426 = vadd.f32 %v190, %v425
    %427 = vmatmul.bf16.gmra.mxu0 %v150
    %v428 = vpop.f32.mrf.mxu0
    %v429 = vadd.f32 %v190, %v428
    %v430 = vpop.f32.mrf.mxu0
    %v431 = vadd.f32 %v190, %v430
    %432 = vmatmul.bf16.gmra.mxu0 %v152
    %v433 = vpop.f32.mrf.mxu0
    %v434 = vadd.f32 %v190, %v433
    %v435 = vpop.f32.mrf.mxu0
    %v436 = vadd.f32 %v190, %v435
    %437 = vmatmul.bf16.gmra.mxu0 %v154
    %v438 = vpop.f32.mrf.mxu0
    %v439 = vadd.f32 %v190, %v438
    %v440 = vpop.f32.mrf.mxu0
    %v441 = vadd.f32 %v190, %v440
    %442 = vdwg.mxu0
    %443 = vmatpush.bf16.msra.mxu0 %v320
    %444 = vmatpush.bf16.msra.mxu0 %v318
    %445 = vmatpush.bf16.msra.mxu0 %v316
    %446 = vmatpush.bf16.msra.mxu0 %v314
    %447 = vmatpush.bf16.msra.mxu0 %v312
    %448 = vmatpush.bf16.msra.mxu0 %v310
    %449 = vmatpush.bf16.msra.mxu0 %v308
    %450 = vmatpush.bf16.msra.mxu0 %v306
    %451 = vmatmul.bf16.gmra.mxu0 %v125
    %v452 = vpop.f32.mrf.mxu0
    %v453 = vadd.f32 %v364, %v452
    %v454 = vpop.f32.mrf.mxu0
    %v455 = vadd.f32 %v366, %v454
    %456 = vmatmul.bf16.gmra.mxu0 %v127
    %v457 = vpop.f32.mrf.mxu0
    %v458 = vadd.f32 %v369, %v457
    %v459 = vpop.f32.mrf.mxu0
    %v460 = vadd.f32 %v371, %v459
    %461 = vmatmul.bf16.gmra.mxu0 %v129
    %v462 = vpop.f32.mrf.mxu0
    %v463 = vadd.f32 %v374, %v462
    %v464 = vpop.f32.mrf.mxu0
    %v465 = vadd.f32 %v376, %v464
    %466 = vmatmul.bf16.gmra.mxu0 %v131
    %v467 = vpop.f32.mrf.mxu0
    %v468 = vadd.f32 %v379, %v467
    %v469 = vpop.f32.mrf.mxu0
    %v470 = vadd.f32 %v381, %v469
    %471 = vmatmul.bf16.gmra.mxu0 %v133
    %v472 = vpop.f32.mrf.mxu0
    %v473 = vadd.f32 %v384, %v472
    %v474 = vpop.f32.mrf.mxu0
    %v475 = vadd.f32 %v386, %v474
    %476 = vmatmul.bf16.gmra.mxu0 %v135
    %v477 = vpop.f32.mrf.mxu0
    %v478 = vadd.f32 %v389, %v477
    %v479 = vpop.f32.mrf.mxu0
    %v480 = vadd.f32 %v391, %v479
    %481 = vmatmul.bf16.gmra.mxu0 %v137
    %v482 = vpop.f32.mrf.mxu0
    %v483 = vadd.f32 %v394, %v482
    %v484 = vpop.f32.mrf.mxu0
    %v485 = vadd.f32 %v396, %v484
    %486 = vmatmul.bf16.gmra.mxu0 %v139
    %v487 = vpop.f32.mrf.mxu0
    %v488 = vadd.f32 %v399, %v487
    %v489 = vpop.f32.mrf.mxu0
    %v490 = vadd.f32 %v401, %v489
    %491 = vmatmul.bf16.gmra.mxu0 %v141
    %v492 = vpop.f32.mrf.mxu0
    %v493 = vadd.f32 %v404, %v492
    %v494 = vpop.f32.mrf.mxu0
    %v495 = vadd.f32 %v406, %v494
    %496 = vmatmul.bf16.gmra.mxu0 %v143
    %v497 = vpop.f32.mrf.mxu0
    %v498 = vadd.f32 %v409, %v497
    %v499 = vpop.f32.mrf.mxu0
    %v500 = vadd.f32 %v411, %v499
    %501 = vmatmul.bf16.gmra.mxu0 %v145
    %v502 = vpop.f32.mrf.mxu0
    %v503 = vadd.f32 %v414, %v502
    %v504 = vpop.f32.mrf.mxu0
    %v505 = vadd.f32 %v416, %v504
    %506 = vmatmul.bf16.gmra.mxu0 %v147
    %v507 = vpop.f32.mrf.mxu0
    %v508 = vadd.f32 %v419, %v507
    %v509 = vpop.f32.mrf.mxu0
    %v510 = vadd.f32 %v421, %v509
    %511 = vmatmul.bf16.gmra.mxu0 %v149
    %v512 = vpop.f32.mrf.mxu0
    %v513 = vadd.f32 %v424, %v512
    %v514 = vpop.f32.mrf.mxu0
    %v515 = vadd.f32 %v426, %v514
    %516 = vmatmul.bf16.gmra.mxu0 %v151
    %v517 = vpop.f32.mrf.mxu0
    %v518 = vadd.f32 %v429, %v517
    %v519 = vpop.f32.mrf.mxu0
    %v520 = vadd.f32 %v431, %v519
    %521 = vmatmul.bf16.gmra.mxu0 %v153
    %v522 = vpop.f32.mrf.mxu0
    %v523 = vadd.f32 %v434, %v522
    %v524 = vpop.f32.mrf.mxu0
    %v525 = vadd.f32 %v436, %v524
    %526 = vmatmul.bf16.gmra.mxu0 %v155
    %v527 = vpop.f32.mrf.mxu0
    %v528 = vadd.f32 %v439, %v527
    %v529 = vpop.f32.mrf.mxu0
    %v530 = vadd.f32 %v441, %v529
    %531 = vdwg.mxu0
    %532 = vmatpush.bf16.msra.mxu0 %v305
    %533 = vmatpush.bf16.msra.mxu0 %v303
    %534 = vmatpush.bf16.msra.mxu0 %v301
    %535 = vmatpush.bf16.msra.mxu0 %v299
    %536 = vmatpush.bf16.msra.mxu0 %v297
    %537 = vmatpush.bf16.msra.mxu0 %v295
    %538 = vmatpush.bf16.msra.mxu0 %v293
    %539 = vmatpush.bf16.msra.mxu0 %v291
    %540 = vmatmul.bf16.gmra.mxu0 %v124
    %v541 = vpop.f32.mrf.mxu0
    %v542 = vadd.f32 %v191, %v541
    %v543 = vpop.f32.mrf.mxu0
    %v544 = vadd.f32 %v191, %v543
    %545 = vmatmul.bf16.gmra.mxu0 %v126
    %v546 = vpop.f32.mrf.mxu0
    %v547 = vadd.f32 %v191, %v546
    %v548 = vpop.f32.mrf.mxu0
    %v549 = vadd.f32 %v191, %v548
    %550 = vmatmul.bf16.gmra.mxu0 %v128
    %v551 = vpop.f32.mrf.mxu0
    %v552 = vadd.f32 %v191, %v551
    %v553 = vpop.f32.mrf.mxu0
    %v554 = vadd.f32 %v191, %v553
    %555 = vmatmul.bf16.gmra.mxu0 %v130
    %v556 = vpop.f32.mrf.mxu0
    %v557 = vadd.f32 %v191, %v556
    %v558 = vpop.f32.mrf.mxu0
    %v559 = vadd.f32 %v191, %v558
    %560 = vmatmul.bf16.gmra.mxu0 %v132
    %v561 = vpop.f32.mrf.mxu0
    %v562 = vadd.f32 %v191, %v561
    %v563 = vpop.f32.mrf.mxu0
    %v564 = vadd.f32 %v191, %v563
    %565 = vmatmul.bf16.gmra.mxu0 %v134
    %v566 = vpop.f32.mrf.mxu0
    %v567 = vadd.f32 %v191, %v566
    %v568 = vpop.f32.mrf.mxu0
    %v569 = vadd.f32 %v191, %v568
    %570 = vmatmul.bf16.gmra.mxu0 %v136
    %v571 = vpop.f32.mrf.mxu0
    %v572 = vadd.f32 %v191, %v571
    %v573 = vpop.f32.mrf.mxu0
    %v574 = vadd.f32 %v191, %v573
    %575 = vmatmul.bf16.gmra.mxu0 %v138
    %v576 = vpop.f32.mrf.mxu0
    %v577 = vadd.f32 %v191, %v576
    %v578 = vpop.f32.mrf.mxu0
    %v579 = vadd.f32 %v191, %v578
    %580 = vmatmul.bf16.gmra.mxu0 %v140
    %v581 = vpop.f32.mrf.mxu0
    %v582 = vadd.f32 %v191, %v581
    %v583 = vpop.f32.mrf.mxu0
    %v584 = vadd.f32 %v191, %v583
    %585 = vmatmul.bf16.gmra.mxu0 %v142
    %v586 = vpop.f32.mrf.mxu0
    %v587 = vadd.f32 %v191, %v586
    %v588 = vpop.f32.mrf.mxu0
    %v589 = vadd.f32 %v191, %v588
    %590 = vmatmul.bf16.gmra.mxu0 %v144
    %v591 = vpop.f32.mrf.mxu0
    %v592 = vadd.f32 %v191, %v591
    %v593 = vpop.f32.mrf.mxu0
    %v594 = vadd.f32 %v191, %v593
    %595 = vmatmul.bf16.gmra.mxu0 %v146
    %v596 = vpop.f32.mrf.mxu0
    %v597 = vadd.f32 %v191, %v596
    %v598 = vpop.f32.mrf.mxu0
    %v599 = vadd.f32 %v191, %v598
    %600 = vmatmul.bf16.gmra.mxu0 %v148
    %v601 = vpop.f32.mrf.mxu0
    %v602 = vadd.f32 %v191, %v601
    %v603 = vpop.f32.mrf.mxu0
    %v604 = vadd.f32 %v191, %v603
    %605 = vmatmul.bf16.gmra.mxu0 %v150
    %v606 = vpop.f32.mrf.mxu0
    %v607 = vadd.f32 %v191, %v606
    %v608 = vpop.f32.mrf.mxu0
    %v609 = vadd.f32 %v191, %v608
    %610 = vmatmul.bf16.gmra.mxu0 %v152
    %v611 = vpop.f32.mrf.mxu0
    %v612 = vadd.f32 %v191, %v611
    %v613 = vpop.f32.mrf.mxu0
    %v614 = vadd.f32 %v191, %v613
    %615 = vmatmul.bf16.gmra.mxu0 %v154
    %v616 = vpop.f32.mrf.mxu0
    %v617 = vadd.f32 %v191, %v616
    %v618 = vpop.f32.mrf.mxu0
    %v619 = vadd.f32 %v191, %v618
    %620 = vdwg.mxu0
    %621 = vmatpush.bf16.msra.mxu0 %v321
    %622 = vmatpush.bf16.msra.mxu0 %v319
    %623 = vmatpush.bf16.msra.mxu0 %v317
    %624 = vmatpush.bf16.msra.mxu0 %v315
    %625 = vmatpush.bf16.msra.mxu0 %v313
    %626 = vmatpush.bf16.msra.mxu0 %v311
    %627 = vmatpush.bf16.msra.mxu0 %v309
    %628 = vmatpush.bf16.msra.mxu0 %v307
    %629 = vmatmul.bf16.gmra.mxu0 %v125
    %v630 = vpop.f32.mrf.mxu0
    %v631 = vadd.f32 %v542, %v630
    %v632 = vpop.f32.mrf.mxu0
    %v633 = vadd.f32 %v544, %v632
    %634 = vmatmul.bf16.gmra.mxu0 %v127
    %v635 = vpop.f32.mrf.mxu0
    %v636 = vadd.f32 %v547, %v635
    %v637 = vpop.f32.mrf.mxu0
    %v638 = vadd.f32 %v549, %v637
    %639 = vmatmul.bf16.gmra.mxu0 %v129
    %v640 = vpop.f32.mrf.mxu0
    %v641 = vadd.f32 %v552, %v640
    %v642 = vpop.f32.mrf.mxu0
    %v643 = vadd.f32 %v554, %v642
    %644 = vmatmul.bf16.gmra.mxu0 %v131
    %v645 = vpop.f32.mrf.mxu0
    %v646 = vadd.f32 %v557, %v645
    %v647 = vpop.f32.mrf.mxu0
    %v648 = vadd.f32 %v559, %v647
    %649 = vmatmul.bf16.gmra.mxu0 %v133
    %v650 = vpop.f32.mrf.mxu0
    %v651 = vadd.f32 %v562, %v650
    %v652 = vpop.f32.mrf.mxu0
    %v653 = vadd.f32 %v564, %v652
    %654 = vmatmul.bf16.gmra.mxu0 %v135
    %v655 = vpop.f32.mrf.mxu0
    %v656 = vadd.f32 %v567, %v655
    %v657 = vpop.f32.mrf.mxu0
    %v658 = vadd.f32 %v569, %v657
    %659 = vmatmul.bf16.gmra.mxu0 %v137
    %v660 = vpop.f32.mrf.mxu0
    %v661 = vadd.f32 %v572, %v660
    %v662 = vpop.f32.mrf.mxu0
    %v663 = vadd.f32 %v574, %v662
    %664 = vmatmul.bf16.gmra.mxu0 %v139
    %v665 = vpop.f32.mrf.mxu0
    %v666 = vadd.f32 %v577, %v665
    %v667 = vpop.f32.mrf.mxu0
    %v668 = vadd.f32 %v579, %v667
    %669 = vmatmul.bf16.gmra.mxu0 %v141
    %v670 = vpop.f32.mrf.mxu0
    %v671 = vadd.f32 %v582, %v670
    %v672 = vpop.f32.mrf.mxu0
    %v673 = vadd.f32 %v584, %v672
    %674 = vmatmul.bf16.gmra.mxu0 %v143
    %v675 = vpop.f32.mrf.mxu0
    %v676 = vadd.f32 %v587, %v675
    %v677 = vpop.f32.mrf.mxu0
    %v678 = vadd.f32 %v589, %v677
    %679 = vmatmul.bf16.gmra.mxu0 %v145
    %v680 = vpop.f32.mrf.mxu0
    %v681 = vadd.f32 %v592, %v680
    %v682 = vpop.f32.mrf.mxu0
    %v683 = vadd.f32 %v594, %v682
    %684 = vmatmul.bf16.gmra.mxu0 %v147
    %v685 = vpop.f32.mrf.mxu0
    %v686 = vadd.f32 %v597, %v685
    %v687 = vpop.f32.mrf.mxu0
    %v688 = vadd.f32 %v599, %v687
    %689 = vmatmul.bf16.gmra.mxu0 %v149
    %v690 = vpop.f32.mrf.mxu0
    %v691 = vadd.f32 %v602, %v690
    %v692 = vpop.f32.mrf.mxu0
    %v693 = vadd.f32 %v604, %v692
    %694 = vmatmul.bf16.gmra.mxu0 %v151
    %v695 = vpop.f32.mrf.mxu0
    %v696 = vadd.f32 %v607, %v695
    %v697 = vpop.f32.mrf.mxu0
    %v698 = vadd.f32 %v609, %v697
    %699 = vmatmul.bf16.gmra.mxu0 %v153
    %v700 = vpop.f32.mrf.mxu0
    %v701 = vadd.f32 %v612, %v700
    %v702 = vpop.f32.mrf.mxu0
    %v703 = vadd.f32 %v614, %v702
    %704 = vmatmul.bf16.gmra.mxu0 %v155
    %v705 = vpop.f32.mrf.mxu0
    %v706 = vadd.f32 %v617, %v705
    %v707 = vpop.f32.mrf.mxu0
    %v708 = vadd.f32 %v619, %v707
    %709 = vdwg.mxu0
    %v710 = vmax.f32 %v453, 0.0
    %v711 = vmax.f32 %v631, 0.0
    %v712 = vmax.f32 %v455, 0.0
    %v713 = vmax.f32 %v633, 0.0
    %v714 = vmax.f32 %v458, 0.0
    %v715 = vmax.f32 %v636, 0.0
    %v716 = vmax.f32 %v460, 0.0
    %v717 = vmax.f32 %v638, 0.0
    %v718 = vmax.f32 %v463, 0.0
    %v719 = vmax.f32 %v641, 0.0
    %v720 = vmax.f32 %v465, 0.0
    %v721 = vmax.f32 %v643, 0.0
    %v722 = vmax.f32 %v468, 0.0
    %v723 = vmax.f32 %v646, 0.0
    %v724 = vmax.f32 %v470, 0.0
    %v725 = vmax.f32 %v648, 0.0
    %v726 = vmax.f32 %v473, 0.0
    %v727 = vmax.f32 %v651, 0.0
    %v728 = vmax.f32 %v475, 0.0
    %v729 = vmax.f32 %v653, 0.0
    %v730 = vmax.f32 %v478, 0.0
    %v731 = vmax.f32 %v656, 0.0
    %v732 = vmax.f32 %v480, 0.0
    %v733 = vmax.f32 %v658, 0.0
    %v734 = vmax.f32 %v483, 0.0
    %v735 = vmax.f32 %v661, 0.0
    %v736 = vmax.f32 %v485, 0.0
    %v737 = vmax.f32 %v663, 0.0
    %v738 = vmax.f32 %v488, 0.0
    %v739 = vmax.f32 %v666, 0.0
    %v740 = vmax.f32 %v490, 0.0
    %v741 = vmax.f32 %v668, 0.0
    %v742 = vmax.f32 %v493, 0.0
    %v743 = vmax.f32 %v671, 0.0
    %v744 = vmax.f32 %v495, 0.0
    %v745 = vmax.f32 %v673, 0.0
    %v746 = vmax.f32 %v498, 0.0
    %v747 = vmax.f32 %v676, 0.0
    %v748 = vmax.f32 %v500, 0.0
    %v749 = vmax.f32 %v678, 0.0
    %v750 = vmax.f32 %v503, 0.0
    %v751 = vmax.f32 %v681, 0.0
    %v752 = vmax.f32 %v505, 0.0
    %v753 = vmax.f32 %v683, 0.0
    %v754 = vmax.f32 %v508, 0.0
    %v755 = vmax.f32 %v686, 0.0
    %v756 = vmax.f32 %v510, 0.0
    %v757 = vmax.f32 %v688, 0.0
    %v758 = vmax.f32 %v513, 0.0
    %v759 = vmax.f32 %v691, 0.0
    %v760 = vmax.f32 %v515, 0.0
    %v761 = vmax.f32 %v693, 0.0
    %v762 = vmax.f32 %v518, 0.0
    %v763 = vmax.f32 %v696, 0.0
    %v764 = vmax.f32 %v520, 0.0
    %v765 = vmax.f32 %v698, 0.0
    %v766 = vmax.f32 %v523, 0.0
    %v767 = vmax.f32 %v701, 0.0
    %v768 = vmax.f32 %v525, 0.0
    %v769 = vmax.f32 %v703, 0.0
    %v770 = vmax.f32 %v528, 0.0
    %v771 = vmax.f32 %v706, 0.0
    %v772 = vmax.f32 %v530, 0.0
    %v773 = vmax.f32 %v708, 0.0
    %v774 = vpack.c.bf16 %v712, %v710
    %v775 = vpack.c.bf16 %v713, %v711
    %v776 = vpack.c.bf16 %v716, %v714
    %v777 = vpack.c.bf16 %v717, %v715
    %v778 = vpack.c.bf16 %v720, %v718
    %v779 = vpack.c.bf16 %v721, %v719
    %v780 = vpack.c.bf16 %v724, %v722
    %v781 = vpack.c.bf16 %v725, %v723
    %v782 = vpack.c.bf16 %v728, %v726
    %v783 = vpack.c.bf16 %v729, %v727
    %v784 = vpack.c.bf16 %v732, %v730
    %v785 = vpack.c.bf16 %v733, %v731
    %v786 = vpack.c.bf16 %v736, %v734
    %v787 = vpack.c.bf16 %v737, %v735
    %v788 = vpack.c.bf16 %v740, %v738
    %v789 = vpack.c.bf16 %v741, %v739
    %v790 = vpack.c.bf16 %v744, %v742
    %v791 = vpack.c.bf16 %v745, %v743
    %v792 = vpack.c.bf16 %v748, %v746
    %v793 = vpack.c.bf16 %v749, %v747
    %v794 = vpack.c.bf16 %v752, %v750
    %v795 = vpack.c.bf16 %v753, %v751
    %v796 = vpack.c.bf16 %v756, %v754
    %v797 = vpack.c.bf16 %v757, %v755
    %v798 = vpack.c.bf16 %v760, %v758
    %v799 = vpack.c.bf16 %v761, %v759
    %v800 = vpack.c.bf16 %v764, %v762
    %v801 = vpack.c.bf16 %v765, %v763
    %v802 = vpack.c.bf16 %v768, %v766
    %v803 = vpack.c.bf16 %v769, %v767
    %v804 = vpack.c.bf16 %v772, %v770
    %v805 = vpack.c.bf16 %v773, %v771
    %s806 = scalar_lea.vmem [#allocation5], 256
    %v807 = vld [vmem:[%s806] sm:$0xff]
    %v808 = vld [vmem:[%s806 + $0x8] sm:$0xff]
    %v809 = vld [vmem:[%s806 + $0x10] sm:$0xff]
    %v810 = vld [vmem:[%s806 + $0x18] sm:$0xff]
    %v811 = vld [vmem:[%s806 + $0x20] sm:$0xff]
    %v812 = vld [vmem:[%s806 + $0x28] sm:$0xff]
    %v813 = vld [vmem:[%s806 + $0x30] sm:$0xff]
    %v814 = vld [vmem:[%s806 + $0x38] sm:$0xff]
    %v815 = vld [vmem:[%s806 + $0x40] sm:$0xff]
    %v816 = vld [vmem:[%s806 + $0x48] sm:$0xff]
    %v817 = vld [vmem:[%s806 + $0x50] sm:$0xff]
    %v818 = vld [vmem:[%s806 + $0x58] sm:$0xff]
    %v819 = vld [vmem:[%s806 + $0x60] sm:$0xff]
    %v820 = vld [vmem:[%s806 + $0x68] sm:$0xff]
    %v821 = vld [vmem:[%s806 + $0x70] sm:$0xff]
    %v822 = vld [vmem:[%s806 + $0x78] sm:$0xff]
    %v823 = vld [vmem:[%s806 + $0x80] sm:$0xff]
    %v824 = vld [vmem:[%s806 + $0x88] sm:$0xff]
    %v825 = vld [vmem:[%s806 + $0x90] sm:$0xff]
    %v826 = vld [vmem:[%s806 + $0x98] sm:$0xff]
    %v827 = vld [vmem:[%s806 + $0xa0] sm:$0xff]
    %v828 = vld [vmem:[%s806 + $0xa8] sm:$0xff]
    %v829 = vld [vmem:[%s806 + $0xb0] sm:$0xff]
    %v830 = vld [vmem:[%s806 + $0xb8] sm:$0xff]
    %v831 = vld [vmem:[%s806 + $0xc0] sm:$0xff]
    %v832 = vld [vmem:[%s806 + $0xc8] sm:$0xff]
    %v833 = vld [vmem:[%s806 + $0xd0] sm:$0xff]
    %v834 = vld [vmem:[%s806 + $0xd8] sm:$0xff]
    %v835 = vld [vmem:[%s806 + $0xe0] sm:$0xff]
    %v836 = vld [vmem:[%s806 + $0xe8] sm:$0xff]
    %v837 = vld [vmem:[%s806 + $0xf0] sm:$0xff]
    %v838 = vld [vmem:[%s806 + $0xf8] sm:$0xff]
    %s839 = scalar_lea.vmem [#allocation7], 1
    %v840 = vld [vmem:[%s839] ss:$4 sm:$0x3]
    %v842 = vperm.slane %v840, 0
    %v843 = vperm.slane %v840, 1
    %v878 = vunpack.c.l.b16 %v807
    %v879 = vunpack.c.h.b16 %v807
    %v880 = vunpack.c.l.b16 %v808
    %v881 = vunpack.c.h.b16 %v808
    %v882 = vunpack.c.l.b16 %v809
    %v883 = vunpack.c.h.b16 %v809
    %v884 = vunpack.c.l.b16 %v810
    %v885 = vunpack.c.h.b16 %v810
    %v886 = vunpack.c.l.b16 %v811
    %v887 = vunpack.c.h.b16 %v811
    %v888 = vunpack.c.l.b16 %v812
    %v889 = vunpack.c.h.b16 %v812
    %v890 = vunpack.c.l.b16 %v813
    %v891 = vunpack.c.h.b16 %v813
    %v892 = vunpack.c.l.b16 %v814
    %v893 = vunpack.c.h.b16 %v814
    %v894 = vunpack.c.l.b16 %v815
    %v895 = vunpack.c.h.b16 %v815
    %v896 = vunpack.c.l.b16 %v816
    %v897 = vunpack.c.h.b16 %v816
    %v898 = vunpack.c.l.b16 %v817
    %v899 = vunpack.c.h.b16 %v817
    %v900 = vunpack.c.l.b16 %v818
    %v901 = vunpack.c.h.b16 %v818
    %v902 = vunpack.c.l.b16 %v819
    %v903 = vunpack.c.h.b16 %v819
    %v904 = vunpack.c.l.b16 %v820
    %v905 = vunpack.c.h.b16 %v820
    %v906 = vunpack.c.l.b16 %v821
    %v907 = vunpack.c.h.b16 %v821
    %v908 = vunpack.c.l.b16 %v822
    %v909 = vunpack.c.h.b16 %v822
    %v910 = vunpack.c.l.b16 %v823
    %v911 = vunpack.c.h.b16 %v823
    %v912 = vunpack.c.l.b16 %v824
    %v913 = vunpack.c.h.b16 %v824
    %v914 = vunpack.c.l.b16 %v825
    %v915 = vunpack.c.h.b16 %v825
    %v916 = vunpack.c.l.b16 %v826
    %v917 = vunpack.c.h.b16 %v826
    %v918 = vunpack.c.l.b16 %v827
    %v919 = vunpack.c.h.b16 %v827
    %v920 = vunpack.c.l.b16 %v828
    %v921 = vunpack.c.h.b16 %v828
    %v922 = vunpack.c.l.b16 %v829
    %v923 = vunpack.c.h.b16 %v829
    %v924 = vunpack.c.l.b16 %v830
    %v925 = vunpack.c.h.b16 %v830
    %v926 = vunpack.c.l.b16 %v831
    %v927 = vunpack.c.h.b16 %v831
    %v928 = vunpack.c.l.b16 %v832
    %v929 = vunpack.c.h.b16 %v832
    %v930 = vunpack.c.l.b16 %v833
    %v931 = vunpack.c.h.b16 %v833
    %v932 = vunpack.c.l.b16 %v834
    %v933 = vunpack.c.h.b16 %v834
    %v934 = vunpack.c.l.b16 %v835
    %v935 = vunpack.c.h.b16 %v835
    %v936 = vunpack.c.l.b16 %v836
    %v937 = vunpack.c.h.b16 %v836
    %v938 = vunpack.c.l.b16 %v837
    %v939 = vunpack.c.h.b16 %v837
    %v940 = vunpack.c.l.b16 %v838
    %v941 = vunpack.c.h.b16 %v838
    %v942 = vpack.c.b16 %v880, %v878
    %v943 = vpack.c.b16 %v881, %v879
    %v944 = vpack.c.b16 %v884, %v882
    %v945 = vpack.c.b16 %v885, %v883
    %v946 = vpack.c.b16 %v888, %v886
    %v947 = vpack.c.b16 %v889, %v887
    %v948 = vpack.c.b16 %v892, %v890
    %v949 = vpack.c.b16 %v893, %v891
    %v950 = vpack.c.b16 %v896, %v894
    %v951 = vpack.c.b16 %v897, %v895
    %v952 = vpack.c.b16 %v900, %v898
    %v953 = vpack.c.b16 %v901, %v899
    %v954 = vpack.c.b16 %v904, %v902
    %v955 = vpack.c.b16 %v905, %v903
    %v956 = vpack.c.b16 %v908, %v906
    %v957 = vpack.c.b16 %v909, %v907
    %v958 = vpack.c.b16 %v912, %v910
    %v959 = vpack.c.b16 %v913, %v911
    %v960 = vpack.c.b16 %v916, %v914
    %v961 = vpack.c.b16 %v917, %v915
    %v962 = vpack.c.b16 %v920, %v918
    %v963 = vpack.c.b16 %v921, %v919
    %v964 = vpack.c.b16 %v924, %v922
    %v965 = vpack.c.b16 %v925, %v923
    %v966 = vpack.c.b16 %v928, %v926
    %v967 = vpack.c.b16 %v929, %v927
    %v968 = vpack.c.b16 %v932, %v930
    %v969 = vpack.c.b16 %v933, %v931
    %v970 = vpack.c.b16 %v936, %v934
    %v971 = vpack.c.b16 %v937, %v935
    %v972 = vpack.c.b16 %v940, %v938
    %v973 = vpack.c.b16 %v941, %v939
    %1006 = vmatpush.bf16.msra.mxu0 %v956
    %1007 = vmatpush.bf16.msra.mxu0 %v954
    %1008 = vmatpush.bf16.msra.mxu0 %v952
    %1009 = vmatpush.bf16.msra.mxu0 %v950
    %1010 = vmatpush.bf16.msra.mxu0 %v948
    %1011 = vmatpush.bf16.msra.mxu0 %v946
    %1012 = vmatpush.bf16.msra.mxu0 %v944
    %1013 = vmatpush.bf16.msra.mxu0 %v942
    %1014 = vmatmul.bf16.gmra.mxu0 %v774
    %v1015 = vpop.f32.mrf.mxu0
    %v1016 = vadd.f32 %v842, %v1015
    %v1017 = vpop.f32.mrf.mxu0
    %v1018 = vadd.f32 %v842, %v1017
    %1019 = vmatmul.bf16.gmra.mxu0 %v776
    %v1020 = vpop.f32.mrf.mxu0
    %v1021 = vadd.f32 %v842, %v1020
    %v1022 = vpop.f32.mrf.mxu0
    %v1023 = vadd.f32 %v842, %v1022
    %1024 = vmatmul.bf16.gmra.mxu0 %v778
    %v1025 = vpop.f32.mrf.mxu0
    %v1026 = vadd.f32 %v842, %v1025
    %v1027 = vpop.f32.mrf.mxu0
    %v1028 = vadd.f32 %v842, %v1027
    %1029 = vmatmul.bf16.gmra.mxu0 %v780
    %v1030 = vpop.f32.mrf.mxu0
    %v1031 = vadd.f32 %v842, %v1030
    %v1032 = vpop.f32.mrf.mxu0
    %v1033 = vadd.f32 %v842, %v1032
    %1034 = vmatmul.bf16.gmra.mxu0 %v782
    %v1035 = vpop.f32.mrf.mxu0
    %v1036 = vadd.f32 %v842, %v1035
    %v1037 = vpop.f32.mrf.mxu0
    %v1038 = vadd.f32 %v842, %v1037
    %1039 = vmatmul.bf16.gmra.mxu0 %v784
    %v1040 = vpop.f32.mrf.mxu0
    %v1041 = vadd.f32 %v842, %v1040
    %v1042 = vpop.f32.mrf.mxu0
    %v1043 = vadd.f32 %v842, %v1042
    %1044 = vmatmul.bf16.gmra.mxu0 %v786
    %v1045 = vpop.f32.mrf.mxu0
    %v1046 = vadd.f32 %v842, %v1045
    %v1047 = vpop.f32.mrf.mxu0
    %v1048 = vadd.f32 %v842, %v1047
    %1049 = vmatmul.bf16.gmra.mxu0 %v788
    %v1050 = vpop.f32.mrf.mxu0
    %v1051 = vadd.f32 %v842, %v1050
    %v1052 = vpop.f32.mrf.mxu0
    %v1053 = vadd.f32 %v842, %v1052
    %1054 = vmatmul.bf16.gmra.mxu0 %v790
    %v1055 = vpop.f32.mrf.mxu0
    %v1056 = vadd.f32 %v842, %v1055
    %v1057 = vpop.f32.mrf.mxu0
    %v1058 = vadd.f32 %v842, %v1057
    %1059 = vmatmul.bf16.gmra.mxu0 %v792
    %v1060 = vpop.f32.mrf.mxu0
    %v1061 = vadd.f32 %v842, %v1060
    %v1062 = vpop.f32.mrf.mxu0
    %v1063 = vadd.f32 %v842, %v1062
    %1064 = vmatmul.bf16.gmra.mxu0 %v794
    %v1065 = vpop.f32.mrf.mxu0
    %v1066 = vadd.f32 %v842, %v1065
    %v1067 = vpop.f32.mrf.mxu0
    %v1068 = vadd.f32 %v842, %v1067
    %1069 = vmatmul.bf16.gmra.mxu0 %v796
    %v1070 = vpop.f32.mrf.mxu0
    %v1071 = vadd.f32 %v842, %v1070
    %v1072 = vpop.f32.mrf.mxu0
    %v1073 = vadd.f32 %v842, %v1072
    %1074 = vmatmul.bf16.gmra.mxu0 %v798
    %v1075 = vpop.f32.mrf.mxu0
    %v1076 = vadd.f32 %v842, %v1075
    %v1077 = vpop.f32.mrf.mxu0
    %v1078 = vadd.f32 %v842, %v1077
    %1079 = vmatmul.bf16.gmra.mxu0 %v800
    %v1080 = vpop.f32.mrf.mxu0
    %v1081 = vadd.f32 %v842, %v1080
    %v1082 = vpop.f32.mrf.mxu0
    %v1083 = vadd.f32 %v842, %v1082
    %1084 = vmatmul.bf16.gmra.mxu0 %v802
    %v1085 = vpop.f32.mrf.mxu0
    %v1086 = vadd.f32 %v842, %v1085
    %v1087 = vpop.f32.mrf.mxu0
    %v1088 = vadd.f32 %v842, %v1087
    %1089 = vmatmul.bf16.gmra.mxu0 %v804
    %v1090 = vpop.f32.mrf.mxu0
    %v1091 = vadd.f32 %v842, %v1090
    %v1092 = vpop.f32.mrf.mxu0
    %v1093 = vadd.f32 %v842, %v1092
    %1094 = vdwg.mxu0
    %1095 = vmatpush.bf16.msra.mxu0 %v972
    %1096 = vmatpush.bf16.msra.mxu0 %v970
    %1097 = vmatpush.bf16.msra.mxu0 %v968
    %1098 = vmatpush.bf16.msra.mxu0 %v966
    %1099 = vmatpush.bf16.msra.mxu0 %v964
    %1100 = vmatpush.bf16.msra.mxu0 %v962
    %1101 = vmatpush.bf16.msra.mxu0 %v960
    %1102 = vmatpush.bf16.msra.mxu0 %v958
    %1103 = vmatmul.bf16.gmra.mxu0 %v775
    %v1104 = vpop.f32.mrf.mxu0
    %v1105 = vadd.f32 %v1016, %v1104
    %v1106 = vpop.f32.mrf.mxu0
    %v1107 = vadd.f32 %v1018, %v1106
    %1108 = vmatmul.bf16.gmra.mxu0 %v777
    %v1109 = vpop.f32.mrf.mxu0
    %v1110 = vadd.f32 %v1021, %v1109
    %v1111 = vpop.f32.mrf.mxu0
    %v1112 = vadd.f32 %v1023, %v1111
    %1113 = vmatmul.bf16.gmra.mxu0 %v779
    %v1114 = vpop.f32.mrf.mxu0
    %v1115 = vadd.f32 %v1026, %v1114
    %v1116 = vpop.f32.mrf.mxu0
    %v1117 = vadd.f32 %v1028, %v1116
    %1118 = vmatmul.bf16.gmra.mxu0 %v781
    %v1119 = vpop.f32.mrf.mxu0
    %v1120 = vadd.f32 %v1031, %v1119
    %v1121 = vpop.f32.mrf.mxu0
    %v1122 = vadd.f32 %v1033, %v1121
    %1123 = vmatmul.bf16.gmra.mxu0 %v783
    %v1124 = vpop.f32.mrf.mxu0
    %v1125 = vadd.f32 %v1036, %v1124
    %v1126 = vpop.f32.mrf.mxu0
    %v1127 = vadd.f32 %v1038, %v1126
    %1128 = vmatmul.bf16.gmra.mxu0 %v785
    %v1129 = vpop.f32.mrf.mxu0
    %v1130 = vadd.f32 %v1041, %v1129
    %v1131 = vpop.f32.mrf.mxu0
    %v1132 = vadd.f32 %v1043, %v1131
    %1133 = vmatmul.bf16.gmra.mxu0 %v787
    %v1134 = vpop.f32.mrf.mxu0
    %v1135 = vadd.f32 %v1046, %v1134
    %v1136 = vpop.f32.mrf.mxu0
    %v1137 = vadd.f32 %v1048, %v1136
    %1138 = vmatmul.bf16.gmra.mxu0 %v789
    %v1139 = vpop.f32.mrf.mxu0
    %v1140 = vadd.f32 %v1051, %v1139
    %v1141 = vpop.f32.mrf.mxu0
    %v1142 = vadd.f32 %v1053, %v1141
    %1143 = vmatmul.bf16.gmra.mxu0 %v791
    %v1144 = vpop.f32.mrf.mxu0
    %v1145 = vadd.f32 %v1056, %v1144
    %v1146 = vpop.f32.mrf.mxu0
    %v1147 = vadd.f32 %v1058, %v1146
    %1148 = vmatmul.bf16.gmra.mxu0 %v793
    %v1149 = vpop.f32.mrf.mxu0
    %v1150 = vadd.f32 %v1061, %v1149
    %v1151 = vpop.f32.mrf.mxu0
    %v1152 = vadd.f32 %v1063, %v1151
    %1153 = vmatmul.bf16.gmra.mxu0 %v795
    %v1154 = vpop.f32.mrf.mxu0
    %v1155 = vadd.f32 %v1066, %v1154
    %v1156 = vpop.f32.mrf.mxu0
    %v1157 = vadd.f32 %v1068, %v1156
    %1158 = vmatmul.bf16.gmra.mxu0 %v797
    %v1159 = vpop.f32.mrf.mxu0
    %v1160 = vadd.f32 %v1071, %v1159
    %v1161 = vpop.f32.mrf.mxu0
    %v1162 = vadd.f32 %v1073, %v1161
    %1163 = vmatmul.bf16.gmra.mxu0 %v799
    %v1164 = vpop.f32.mrf.mxu0
    %v1165 = vadd.f32 %v1076, %v1164
    %v1166 = vpop.f32.mrf.mxu0
    %v1167 = vadd.f32 %v1078, %v1166
    %1168 = vmatmul.bf16.gmra.mxu0 %v801
    %v1169 = vpop.f32.mrf.mxu0
    %v1170 = vadd.f32 %v1081, %v1169
    %v1171 = vpop.f32.mrf.mxu0
    %v1172 = vadd.f32 %v1083, %v1171
    %1173 = vmatmul.bf16.gmra.mxu0 %v803
    %v1174 = vpop.f32.mrf.mxu0
    %v1175 = vadd.f32 %v1086, %v1174
    %v1176 = vpop.f32.mrf.mxu0
    %v1177 = vadd.f32 %v1088, %v1176
    %1178 = vmatmul.bf16.gmra.mxu0 %v805
    %v1179 = vpop.f32.mrf.mxu0
    %v1180 = vadd.f32 %v1091, %v1179
    %v1181 = vpop.f32.mrf.mxu0
    %v1182 = vadd.f32 %v1093, %v1181
    %1183 = vdwg.mxu0
    %1184 = vmatpush.bf16.msra.mxu0 %v957
    %1185 = vmatpush.bf16.msra.mxu0 %v955
    %1186 = vmatpush.bf16.msra.mxu0 %v953
    %1187 = vmatpush.bf16.msra.mxu0 %v951
    %1188 = vmatpush.bf16.msra.mxu0 %v949
    %1189 = vmatpush.bf16.msra.mxu0 %v947
    %1190 = vmatpush.bf16.msra.mxu0 %v945
    %1191 = vmatpush.bf16.msra.mxu0 %v943
    %1192 = vmatmul.bf16.gmra.mxu0 %v774
    %v1193 = vpop.f32.mrf.mxu0
    %v1194 = vadd.f32 %v843, %v1193
    %v1195 = vpop.f32.mrf.mxu0
    %v1196 = vadd.f32 %v843, %v1195
    %1197 = vmatmul.bf16.gmra.mxu0 %v776
    %v1198 = vpop.f32.mrf.mxu0
    %v1199 = vadd.f32 %v843, %v1198
    %v1200 = vpop.f32.mrf.mxu0
    %v1201 = vadd.f32 %v843, %v1200
    %1202 = vmatmul.bf16.gmra.mxu0 %v778
    %v1203 = vpop.f32.mrf.mxu0
    %v1204 = vadd.f32 %v843, %v1203
    %v1205 = vpop.f32.mrf.mxu0
    %v1206 = vadd.f32 %v843, %v1205
    %1207 = vmatmul.bf16.gmra.mxu0 %v780
    %v1208 = vpop.f32.mrf.mxu0
    %v1209 = vadd.f32 %v843, %v1208
    %v1210 = vpop.f32.mrf.mxu0
    %v1211 = vadd.f32 %v843, %v1210
    %1212 = vmatmul.bf16.gmra.mxu0 %v782
    %v1213 = vpop.f32.mrf.mxu0
    %v1214 = vadd.f32 %v843, %v1213
    %v1215 = vpop.f32.mrf.mxu0
    %v1216 = vadd.f32 %v843, %v1215
    %1217 = vmatmul.bf16.gmra.mxu0 %v784
    %v1218 = vpop.f32.mrf.mxu0
    %v1219 = vadd.f32 %v843, %v1218
    %v1220 = vpop.f32.mrf.mxu0
    %v1221 = vadd.f32 %v843, %v1220
    %1222 = vmatmul.bf16.gmra.mxu0 %v786
    %v1223 = vpop.f32.mrf.mxu0
    %v1224 = vadd.f32 %v843, %v1223
    %v1225 = vpop.f32.mrf.mxu0
    %v1226 = vadd.f32 %v843, %v1225
    %1227 = vmatmul.bf16.gmra.mxu0 %v788
    %v1228 = vpop.f32.mrf.mxu0
    %v1229 = vadd.f32 %v843, %v1228
    %v1230 = vpop.f32.mrf.mxu0
    %v1231 = vadd.f32 %v843, %v1230
    %1232 = vmatmul.bf16.gmra.mxu0 %v790
    %v1233 = vpop.f32.mrf.mxu0
    %v1234 = vadd.f32 %v843, %v1233
    %v1235 = vpop.f32.mrf.mxu0
    %v1236 = vadd.f32 %v843, %v1235
    %1237 = vmatmul.bf16.gmra.mxu0 %v792
    %v1238 = vpop.f32.mrf.mxu0
    %v1239 = vadd.f32 %v843, %v1238
    %v1240 = vpop.f32.mrf.mxu0
    %v1241 = vadd.f32 %v843, %v1240
    %1242 = vmatmul.bf16.gmra.mxu0 %v794
    %v1243 = vpop.f32.mrf.mxu0
    %v1244 = vadd.f32 %v843, %v1243
    %v1245 = vpop.f32.mrf.mxu0
    %v1246 = vadd.f32 %v843, %v1245
    %1247 = vmatmul.bf16.gmra.mxu0 %v796
    %v1248 = vpop.f32.mrf.mxu0
    %v1249 = vadd.f32 %v843, %v1248
    %v1250 = vpop.f32.mrf.mxu0
    %v1251 = vadd.f32 %v843, %v1250
    %1252 = vmatmul.bf16.gmra.mxu0 %v798
    %v1253 = vpop.f32.mrf.mxu0
    %v1254 = vadd.f32 %v843, %v1253
    %v1255 = vpop.f32.mrf.mxu0
    %v1256 = vadd.f32 %v843, %v1255
    %1257 = vmatmul.bf16.gmra.mxu0 %v800
    %v1258 = vpop.f32.mrf.mxu0
    %v1259 = vadd.f32 %v843, %v1258
    %v1260 = vpop.f32.mrf.mxu0
    %v1261 = vadd.f32 %v843, %v1260
    %1262 = vmatmul.bf16.gmra.mxu0 %v802
    %v1263 = vpop.f32.mrf.mxu0
    %v1264 = vadd.f32 %v843, %v1263
    %v1265 = vpop.f32.mrf.mxu0
    %v1266 = vadd.f32 %v843, %v1265
    %1267 = vmatmul.bf16.gmra.mxu0 %v804
    %v1268 = vpop.f32.mrf.mxu0
    %v1269 = vadd.f32 %v843, %v1268
    %v1270 = vpop.f32.mrf.mxu0
    %v1271 = vadd.f32 %v843, %v1270
    %1272 = vdwg.mxu0
    %1273 = vmatpush.bf16.msra.mxu0 %v973
    %1274 = vmatpush.bf16.msra.mxu0 %v971
    %1275 = vmatpush.bf16.msra.mxu0 %v969
    %1276 = vmatpush.bf16.msra.mxu0 %v967
    %1277 = vmatpush.bf16.msra.mxu0 %v965
    %1278 = vmatpush.bf16.msra.mxu0 %v963
    %1279 = vmatpush.bf16.msra.mxu0 %v961
    %1280 = vmatpush.bf16.msra.mxu0 %v959
    %1281 = vmatmul.bf16.gmra.mxu0 %v775
    %v1282 = vpop.f32.mrf.mxu0
    %v1283 = vadd.f32 %v1194, %v1282
    %v1284 = vpop.f32.mrf.mxu0
    %v1285 = vadd.f32 %v1196, %v1284
    %1286 = vmatmul.bf16.gmra.mxu0 %v777
    %v1287 = vpop.f32.mrf.mxu0
    %v1288 = vadd.f32 %v1199, %v1287
    %v1289 = vpop.f32.mrf.mxu0
    %v1290 = vadd.f32 %v1201, %v1289
    %1291 = vmatmul.bf16.gmra.mxu0 %v779
    %v1292 = vpop.f32.mrf.mxu0
    %v1293 = vadd.f32 %v1204, %v1292
    %v1294 = vpop.f32.mrf.mxu0
    %v1295 = vadd.f32 %v1206, %v1294
    %1296 = vmatmul.bf16.gmra.mxu0 %v781
    %v1297 = vpop.f32.mrf.mxu0
    %v1298 = vadd.f32 %v1209, %v1297
    %v1299 = vpop.f32.mrf.mxu0
    %v1300 = vadd.f32 %v1211, %v1299
    %1301 = vmatmul.bf16.gmra.mxu0 %v783
    %v1302 = vpop.f32.mrf.mxu0
    %v1303 = vadd.f32 %v1214, %v1302
    %v1304 = vpop.f32.mrf.mxu0
    %v1305 = vadd.f32 %v1216, %v1304
    %1306 = vmatmul.bf16.gmra.mxu0 %v785
    %v1307 = vpop.f32.mrf.mxu0
    %v1308 = vadd.f32 %v1219, %v1307
    %v1309 = vpop.f32.mrf.mxu0
    %v1310 = vadd.f32 %v1221, %v1309
    %1311 = vmatmul.bf16.gmra.mxu0 %v787
    %v1312 = vpop.f32.mrf.mxu0
    %v1313 = vadd.f32 %v1224, %v1312
    %v1314 = vpop.f32.mrf.mxu0
    %v1315 = vadd.f32 %v1226, %v1314
    %1316 = vmatmul.bf16.gmra.mxu0 %v789
    %v1317 = vpop.f32.mrf.mxu0
    %v1318 = vadd.f32 %v1229, %v1317
    %v1319 = vpop.f32.mrf.mxu0
    %v1320 = vadd.f32 %v1231, %v1319
    %1321 = vmatmul.bf16.gmra.mxu0 %v791
    %v1322 = vpop.f32.mrf.mxu0
    %v1323 = vadd.f32 %v1234, %v1322
    %v1324 = vpop.f32.mrf.mxu0
    %v1325 = vadd.f32 %v1236, %v1324
    %1326 = vmatmul.bf16.gmra.mxu0 %v793
    %v1327 = vpop.f32.mrf.mxu0
    %v1328 = vadd.f32 %v1239, %v1327
    %v1329 = vpop.f32.mrf.mxu0
    %v1330 = vadd.f32 %v1241, %v1329
    %1331 = vmatmul.bf16.gmra.mxu0 %v795
    %v1332 = vpop.f32.mrf.mxu0
    %v1333 = vadd.f32 %v1244, %v1332
    %v1334 = vpop.f32.mrf.mxu0
    %v1335 = vadd.f32 %v1246, %v1334
    %1336 = vmatmul.bf16.gmra.mxu0 %v797
    %v1337 = vpop.f32.mrf.mxu0
    %v1338 = vadd.f32 %v1249, %v1337
    %v1339 = vpop.f32.mrf.mxu0
    %v1340 = vadd.f32 %v1251, %v1339
    %1341 = vmatmul.bf16.gmra.mxu0 %v799
    %v1342 = vpop.f32.mrf.mxu0
    %v1343 = vadd.f32 %v1254, %v1342
    %v1344 = vpop.f32.mrf.mxu0
    %v1345 = vadd.f32 %v1256, %v1344
    %1346 = vmatmul.bf16.gmra.mxu0 %v801
    %v1347 = vpop.f32.mrf.mxu0
    %v1348 = vadd.f32 %v1259, %v1347
    %v1349 = vpop.f32.mrf.mxu0
    %v1350 = vadd.f32 %v1261, %v1349
    %1351 = vmatmul.bf16.gmra.mxu0 %v803
    %v1352 = vpop.f32.mrf.mxu0
    %v1353 = vadd.f32 %v1264, %v1352
    %v1354 = vpop.f32.mrf.mxu0
    %v1355 = vadd.f32 %v1266, %v1354
    %1356 = vmatmul.bf16.gmra.mxu0 %v805
    %v1357 = vpop.f32.mrf.mxu0
    %v1358 = vadd.f32 %v1269, %v1357
    %v1359 = vpop.f32.mrf.mxu0
    %v1360 = vadd.f32 %v1271, %v1359
    %1361 = vdwg.mxu0
    %v1362 = vmax.f32 %v1105, 0.0
    %v1363 = vmax.f32 %v1283, 0.0
    %v1364 = vmax.f32 %v1107, 0.0
    %v1365 = vmax.f32 %v1285, 0.0
    %v1366 = vmax.f32 %v1110, 0.0
    %v1367 = vmax.f32 %v1288, 0.0
    %v1368 = vmax.f32 %v1112, 0.0
    %v1369 = vmax.f32 %v1290, 0.0
    %v1370 = vmax.f32 %v1115, 0.0
    %v1371 = vmax.f32 %v1293, 0.0
    %v1372 = vmax.f32 %v1117, 0.0
    %v1373 = vmax.f32 %v1295, 0.0
    %v1374 = vmax.f32 %v1120, 0.0
    %v1375 = vmax.f32 %v1298, 0.0
    %v1376 = vmax.f32 %v1122, 0.0
    %v1377 = vmax.f32 %v1300, 0.0
    %v1378 = vmax.f32 %v1125, 0.0
    %v1379 = vmax.f32 %v1303, 0.0
    %v1380 = vmax.f32 %v1127, 0.0
    %v1381 = vmax.f32 %v1305, 0.0
    %v1382 = vmax.f32 %v1130, 0.0
    %v1383 = vmax.f32 %v1308, 0.0
    %v1384 = vmax.f32 %v1132, 0.0
    %v1385 = vmax.f32 %v1310, 0.0
    %v1386 = vmax.f32 %v1135, 0.0
    %v1387 = vmax.f32 %v1313, 0.0
    %v1388 = vmax.f32 %v1137, 0.0
    %v1389 = vmax.f32 %v1315, 0.0
    %v1390 = vmax.f32 %v1140, 0.0
    %v1391 = vmax.f32 %v1318, 0.0
    %v1392 = vmax.f32 %v1142, 0.0
    %v1393 = vmax.f32 %v1320, 0.0
    %v1394 = vmax.f32 %v1145, 0.0
    %v1395 = vmax.f32 %v1323, 0.0
    %v1396 = vmax.f32 %v1147, 0.0
    %v1397 = vmax.f32 %v1325, 0.0
    %v1398 = vmax.f32 %v1150, 0.0
    %v1399 = vmax.f32 %v1328, 0.0
    %v1400 = vmax.f32 %v1152, 0.0
    %v1401 = vmax.f32 %v1330, 0.0
    %v1402 = vmax.f32 %v1155, 0.0
    %v1403 = vmax.f32 %v1333, 0.0
    %v1404 = vmax.f32 %v1157, 0.0
    %v1405 = vmax.f32 %v1335, 0.0
    %v1406 = vmax.f32 %v1160, 0.0
    %v1407 = vmax.f32 %v1338, 0.0
    %v1408 = vmax.f32 %v1162, 0.0
    %v1409 = vmax.f32 %v1340, 0.0
    %v1410 = vmax.f32 %v1165, 0.0
    %v1411 = vmax.f32 %v1343, 0.0
    %v1412 = vmax.f32 %v1167, 0.0
    %v1413 = vmax.f32 %v1345, 0.0
    %v1414 = vmax.f32 %v1170, 0.0
    %v1415 = vmax.f32 %v1348, 0.0
    %v1416 = vmax.f32 %v1172, 0.0
    %v1417 = vmax.f32 %v1350, 0.0
    %v1418 = vmax.f32 %v1175, 0.0
    %v1419 = vmax.f32 %v1353, 0.0
    %v1420 = vmax.f32 %v1177, 0.0
    %v1421 = vmax.f32 %v1355, 0.0
    %v1422 = vmax.f32 %v1180, 0.0
    %v1423 = vmax.f32 %v1358, 0.0
    %v1424 = vmax.f32 %v1182, 0.0
    %v1425 = vmax.f32 %v1360, 0.0
    %v1426 = vpack.c.bf16 %v1364, %v1362
    %v1427 = vpack.c.bf16 %v1365, %v1363
    %v1428 = vpack.c.bf16 %v1368, %v1366
    %v1429 = vpack.c.bf16 %v1369, %v1367
    %v1430 = vpack.c.bf16 %v1372, %v1370
    %v1431 = vpack.c.bf16 %v1373, %v1371
    %v1432 = vpack.c.bf16 %v1376, %v1374
    %v1433 = vpack.c.bf16 %v1377, %v1375
    %v1434 = vpack.c.bf16 %v1380, %v1378
    %v1435 = vpack.c.bf16 %v1381, %v1379
    %v1436 = vpack.c.bf16 %v1384, %v1382
    %v1437 = vpack.c.bf16 %v1385, %v1383
    %v1438 = vpack.c.bf16 %v1388, %v1386
    %v1439 = vpack.c.bf16 %v1389, %v1387
    %v1440 = vpack.c.bf16 %v1392, %v1390
    %v1441 = vpack.c.bf16 %v1393, %v1391
    %v1442 = vpack.c.bf16 %v1396, %v1394
    %v1443 = vpack.c.bf16 %v1397, %v1395
    %v1444 = vpack.c.bf16 %v1400, %v1398
    %v1445 = vpack.c.bf16 %v1401, %v1399
    %v1446 = vpack.c.bf16 %v1404, %v1402
    %v1447 = vpack.c.bf16 %v1405, %v1403
    %v1448 = vpack.c.bf16 %v1408, %v1406
    %v1449 = vpack.c.bf16 %v1409, %v1407
    %v1450 = vpack.c.bf16 %v1412, %v1410
    %v1451 = vpack.c.bf16 %v1413, %v1411
    %v1452 = vpack.c.bf16 %v1416, %v1414
    %v1453 = vpack.c.bf16 %v1417, %v1415
    %v1454 = vpack.c.bf16 %v1420, %v1418
    %v1455 = vpack.c.bf16 %v1421, %v1419
    %v1456 = vpack.c.bf16 %v1424, %v1422
    %v1457 = vpack.c.bf16 %v1425, %v1423
    %s1458 = scalar_lea.vmem [#allocation5], 512
    %v1459 = vld [vmem:[%s1458] sm:$0xff]
    %v1460 = vld [vmem:[%s1458 + $0x8] sm:$0xff]
    %v1461 = vld [vmem:[%s1458 + $0x10] sm:$0xff]
    %v1462 = vld [vmem:[%s1458 + $0x18] sm:$0xff]
    %v1463 = vld [vmem:[%s1458 + $0x20] sm:$0xff]
    %v1464 = vld [vmem:[%s1458 + $0x28] sm:$0xff]
    %v1465 = vld [vmem:[%s1458 + $0x30] sm:$0xff]
    %v1466 = vld [vmem:[%s1458 + $0x38] sm:$0xff]
    %v1467 = vld [vmem:[%s1458 + $0x40] sm:$0xff]
    %v1468 = vld [vmem:[%s1458 + $0x48] sm:$0xff]
    %v1469 = vld [vmem:[%s1458 + $0x50] sm:$0xff]
    %v1470 = vld [vmem:[%s1458 + $0x58] sm:$0xff]
    %v1471 = vld [vmem:[%s1458 + $0x60] sm:$0xff]
    %v1472 = vld [vmem:[%s1458 + $0x68] sm:$0xff]
    %v1473 = vld [vmem:[%s1458 + $0x70] sm:$0xff]
    %v1474 = vld [vmem:[%s1458 + $0x78] sm:$0xff]
    %v1475 = vld [vmem:[%s1458 + $0x80] sm:$0xff]
    %v1476 = vld [vmem:[%s1458 + $0x88] sm:$0xff]
    %v1477 = vld [vmem:[%s1458 + $0x90] sm:$0xff]
    %v1478 = vld [vmem:[%s1458 + $0x98] sm:$0xff]
    %v1479 = vld [vmem:[%s1458 + $0xa0] sm:$0xff]
    %v1480 = vld [vmem:[%s1458 + $0xa8] sm:$0xff]
    %v1481 = vld [vmem:[%s1458 + $0xb0] sm:$0xff]
    %v1482 = vld [vmem:[%s1458 + $0xb8] sm:$0xff]
    %v1483 = vld [vmem:[%s1458 + $0xc0] sm:$0xff]
    %v1484 = vld [vmem:[%s1458 + $0xc8] sm:$0xff]
    %v1485 = vld [vmem:[%s1458 + $0xd0] sm:$0xff]
    %v1486 = vld [vmem:[%s1458 + $0xd8] sm:$0xff]
    %v1487 = vld [vmem:[%s1458 + $0xe0] sm:$0xff]
    %v1488 = vld [vmem:[%s1458 + $0xe8] sm:$0xff]
    %v1489 = vld [vmem:[%s1458 + $0xf0] sm:$0xff]
    %v1490 = vld [vmem:[%s1458 + $0xf8] sm:$0xff]
    %s1491 = scalar_lea.vmem [#allocation7], 2
    %v1492 = vld [vmem:[%s1491] ss:$4 sm:$0x3]
    %v1494 = vperm.slane %v1492, 0
    %v1495 = vperm.slane %v1492, 1
    %v1530 = vunpack.c.l.b16 %v1459
    %v1531 = vunpack.c.h.b16 %v1459
    %v1532 = vunpack.c.l.b16 %v1460
    %v1533 = vunpack.c.h.b16 %v1460
    %v1534 = vunpack.c.l.b16 %v1461
    %v1535 = vunpack.c.h.b16 %v1461
    %v1536 = vunpack.c.l.b16 %v1462
    %v1537 = vunpack.c.h.b16 %v1462
    %v1538 = vunpack.c.l.b16 %v1463
    %v1539 = vunpack.c.h.b16 %v1463
    %v1540 = vunpack.c.l.b16 %v1464
    %v1541 = vunpack.c.h.b16 %v1464
    %v1542 = vunpack.c.l.b16 %v1465
    %v1543 = vunpack.c.h.b16 %v1465
    %v1544 = vunpack.c.l.b16 %v1466
    %v1545 = vunpack.c.h.b16 %v1466
    %v1546 = vunpack.c.l.b16 %v1467
    %v1547 = vunpack.c.h.b16 %v1467
    %v1548 = vunpack.c.l.b16 %v1468
    %v1549 = vunpack.c.h.b16 %v1468
    %v1550 = vunpack.c.l.b16 %v1469
    %v1551 = vunpack.c.h.b16 %v1469
    %v1552 = vunpack.c.l.b16 %v1470
    %v1553 = vunpack.c.h.b16 %v1470
    %v1554 = vunpack.c.l.b16 %v1471
    %v1555 = vunpack.c.h.b16 %v1471
    %v1556 = vunpack.c.l.b16 %v1472
    %v1557 = vunpack.c.h.b16 %v1472
    %v1558 = vunpack.c.l.b16 %v1473
    %v1559 = vunpack.c.h.b16 %v1473
    %v1560 = vunpack.c.l.b16 %v1474
    %v1561 = vunpack.c.h.b16 %v1474
    %v1562 = vunpack.c.l.b16 %v1475
    %v1563 = vunpack.c.h.b16 %v1475
    %v1564 = vunpack.c.l.b16 %v1476
    %v1565 = vunpack.c.h.b16 %v1476
    %v1566 = vunpack.c.l.b16 %v1477
    %v1567 = vunpack.c.h.b16 %v1477
    %v1568 = vunpack.c.l.b16 %v1478
    %v1569 = vunpack.c.h.b16 %v1478
    %v1570 = vunpack.c.l.b16 %v1479
    %v1571 = vunpack.c.h.b16 %v1479
    %v1572 = vunpack.c.l.b16 %v1480
    %v1573 = vunpack.c.h.b16 %v1480
    %v1574 = vunpack.c.l.b16 %v1481
    %v1575 = vunpack.c.h.b16 %v1481
    %v1576 = vunpack.c.l.b16 %v1482
    %v1577 = vunpack.c.h.b16 %v1482
    %v1578 = vunpack.c.l.b16 %v1483
    %v1579 = vunpack.c.h.b16 %v1483
    %v1580 = vunpack.c.l.b16 %v1484
    %v1581 = vunpack.c.h.b16 %v1484
    %v1582 = vunpack.c.l.b16 %v1485
    %v1583 = vunpack.c.h.b16 %v1485
    %v1584 = vunpack.c.l.b16 %v1486
    %v1585 = vunpack.c.h.b16 %v1486
    %v1586 = vunpack.c.l.b16 %v1487
    %v1587 = vunpack.c.h.b16 %v1487
    %v1588 = vunpack.c.l.b16 %v1488
    %v1589 = vunpack.c.h.b16 %v1488
    %v1590 = vunpack.c.l.b16 %v1489
    %v1591 = vunpack.c.h.b16 %v1489
    %v1592 = vunpack.c.l.b16 %v1490
    %v1593 = vunpack.c.h.b16 %v1490
    %v1594 = vpack.c.b16 %v1532, %v1530
    %v1595 = vpack.c.b16 %v1533, %v1531
    %v1596 = vpack.c.b16 %v1536, %v1534
    %v1597 = vpack.c.b16 %v1537, %v1535
    %v1598 = vpack.c.b16 %v1540, %v1538
    %v1599 = vpack.c.b16 %v1541, %v1539
    %v1600 = vpack.c.b16 %v1544, %v1542
    %v1601 = vpack.c.b16 %v1545, %v1543
    %v1602 = vpack.c.b16 %v1548, %v1546
    %v1603 = vpack.c.b16 %v1549, %v1547
    %v1604 = vpack.c.b16 %v1552, %v1550
    %v1605 = vpack.c.b16 %v1553, %v1551
    %v1606 = vpack.c.b16 %v1556, %v1554
    %v1607 = vpack.c.b16 %v1557, %v1555
    %v1608 = vpack.c.b16 %v1560, %v1558
    %v1609 = vpack.c.b16 %v1561, %v1559
    %v1610 = vpack.c.b16 %v1564, %v1562
    %v1611 = vpack.c.b16 %v1565, %v1563
    %v1612 = vpack.c.b16 %v1568, %v1566
    %v1613 = vpack.c.b16 %v1569, %v1567
    %v1614 = vpack.c.b16 %v1572, %v1570
    %v1615 = vpack.c.b16 %v1573, %v1571
    %v1616 = vpack.c.b16 %v1576, %v1574
    %v1617 = vpack.c.b16 %v1577, %v1575
    %v1618 = vpack.c.b16 %v1580, %v1578
    %v1619 = vpack.c.b16 %v1581, %v1579
    %v1620 = vpack.c.b16 %v1584, %v1582
    %v1621 = vpack.c.b16 %v1585, %v1583
    %v1622 = vpack.c.b16 %v1588, %v1586
    %v1623 = vpack.c.b16 %v1589, %v1587
    %v1624 = vpack.c.b16 %v1592, %v1590
    %v1625 = vpack.c.b16 %v1593, %v1591
    %1658 = vmatpush.bf16.msra.mxu0 %v1608
    %1659 = vmatpush.bf16.msra.mxu0 %v1606
    %1660 = vmatpush.bf16.msra.mxu0 %v1604
    %1661 = vmatpush.bf16.msra.mxu0 %v1602
    %1662 = vmatpush.bf16.msra.mxu0 %v1600
    %1663 = vmatpush.bf16.msra.mxu0 %v1598
    %1664 = vmatpush.bf16.msra.mxu0 %v1596
    %1665 = vmatpush.bf16.msra.mxu0 %v1594
    %1666 = vmatmul.bf16.gmra.mxu0 %v1426
    %v1667 = vpop.f32.mrf.mxu0
    %v1668 = vadd.f32 %v1494, %v1667
    %v1669 = vpop.f32.mrf.mxu0
    %v1670 = vadd.f32 %v1494, %v1669
    %1671 = vmatmul.bf16.gmra.mxu0 %v1428
    %v1672 = vpop.f32.mrf.mxu0
    %v1673 = vadd.f32 %v1494, %v1672
    %v1674 = vpop.f32.mrf.mxu0
    %v1675 = vadd.f32 %v1494, %v1674
    %1676 = vmatmul.bf16.gmra.mxu0 %v1430
    %v1677 = vpop.f32.mrf.mxu0
    %v1678 = vadd.f32 %v1494, %v1677
    %v1679 = vpop.f32.mrf.mxu0
    %v1680 = vadd.f32 %v1494, %v1679
    %1681 = vmatmul.bf16.gmra.mxu0 %v1432
    %v1682 = vpop.f32.mrf.mxu0
    %v1683 = vadd.f32 %v1494, %v1682
    %v1684 = vpop.f32.mrf.mxu0
    %v1685 = vadd.f32 %v1494, %v1684
    %1686 = vmatmul.bf16.gmra.mxu0 %v1434
    %v1687 = vpop.f32.mrf.mxu0
    %v1688 = vadd.f32 %v1494, %v1687
    %v1689 = vpop.f32.mrf.mxu0
    %v1690 = vadd.f32 %v1494, %v1689
    %1691 = vmatmul.bf16.gmra.mxu0 %v1436
    %v1692 = vpop.f32.mrf.mxu0
    %v1693 = vadd.f32 %v1494, %v1692
    %v1694 = vpop.f32.mrf.mxu0
    %v1695 = vadd.f32 %v1494, %v1694
    %1696 = vmatmul.bf16.gmra.mxu0 %v1438
    %v1697 = vpop.f32.mrf.mxu0
    %v1698 = vadd.f32 %v1494, %v1697
    %v1699 = vpop.f32.mrf.mxu0
    %v1700 = vadd.f32 %v1494, %v1699
    %1701 = vmatmul.bf16.gmra.mxu0 %v1440
    %v1702 = vpop.f32.mrf.mxu0
    %v1703 = vadd.f32 %v1494, %v1702
    %v1704 = vpop.f32.mrf.mxu0
    %v1705 = vadd.f32 %v1494, %v1704
    %1706 = vmatmul.bf16.gmra.mxu0 %v1442
    %v1707 = vpop.f32.mrf.mxu0
    %v1708 = vadd.f32 %v1494, %v1707
    %v1709 = vpop.f32.mrf.mxu0
    %v1710 = vadd.f32 %v1494, %v1709
    %1711 = vmatmul.bf16.gmra.mxu0 %v1444
    %v1712 = vpop.f32.mrf.mxu0
    %v1713 = vadd.f32 %v1494, %v1712
    %v1714 = vpop.f32.mrf.mxu0
    %v1715 = vadd.f32 %v1494, %v1714
    %1716 = vmatmul.bf16.gmra.mxu0 %v1446
    %v1717 = vpop.f32.mrf.mxu0
    %v1718 = vadd.f32 %v1494, %v1717
    %v1719 = vpop.f32.mrf.mxu0
    %v1720 = vadd.f32 %v1494, %v1719
    %1721 = vmatmul.bf16.gmra.mxu0 %v1448
    %v1722 = vpop.f32.mrf.mxu0
    %v1723 = vadd.f32 %v1494, %v1722
    %v1724 = vpop.f32.mrf.mxu0
    %v1725 = vadd.f32 %v1494, %v1724
    %1726 = vmatmul.bf16.gmra.mxu0 %v1450
    %v1727 = vpop.f32.mrf.mxu0
    %v1728 = vadd.f32 %v1494, %v1727
    %v1729 = vpop.f32.mrf.mxu0
    %v1730 = vadd.f32 %v1494, %v1729
    %1731 = vmatmul.bf16.gmra.mxu0 %v1452
    %v1732 = vpop.f32.mrf.mxu0
    %v1733 = vadd.f32 %v1494, %v1732
    %v1734 = vpop.f32.mrf.mxu0
    %v1735 = vadd.f32 %v1494, %v1734
    %1736 = vmatmul.bf16.gmra.mxu0 %v1454
    %v1737 = vpop.f32.mrf.mxu0
    %v1738 = vadd.f32 %v1494, %v1737
    %v1739 = vpop.f32.mrf.mxu0
    %v1740 = vadd.f32 %v1494, %v1739
    %1741 = vmatmul.bf16.gmra.mxu0 %v1456
    %v1742 = vpop.f32.mrf.mxu0
    %v1743 = vadd.f32 %v1494, %v1742
    %v1744 = vpop.f32.mrf.mxu0
    %v1745 = vadd.f32 %v1494, %v1744
    %1746 = vdwg.mxu0
    %1747 = vmatpush.bf16.msra.mxu0 %v1624
    %1748 = vmatpush.bf16.msra.mxu0 %v1622
    %1749 = vmatpush.bf16.msra.mxu0 %v1620
    %1750 = vmatpush.bf16.msra.mxu0 %v1618
    %1751 = vmatpush.bf16.msra.mxu0 %v1616
    %1752 = vmatpush.bf16.msra.mxu0 %v1614
    %1753 = vmatpush.bf16.msra.mxu0 %v1612
    %1754 = vmatpush.bf16.msra.mxu0 %v1610
    %1755 = vmatmul.bf16.gmra.mxu0 %v1427
    %v1756 = vpop.f32.mrf.mxu0
    %v1757 = vadd.f32 %v1668, %v1756
    %v1758 = vpop.f32.mrf.mxu0
    %v1759 = vadd.f32 %v1670, %v1758
    %1760 = vmatmul.bf16.gmra.mxu0 %v1429
    %v1761 = vpop.f32.mrf.mxu0
    %v1762 = vadd.f32 %v1673, %v1761
    %v1763 = vpop.f32.mrf.mxu0
    %v1764 = vadd.f32 %v1675, %v1763
    %1765 = vmatmul.bf16.gmra.mxu0 %v1431
    %v1766 = vpop.f32.mrf.mxu0
    %v1767 = vadd.f32 %v1678, %v1766
    %v1768 = vpop.f32.mrf.mxu0
    %v1769 = vadd.f32 %v1680, %v1768
    %1770 = vmatmul.bf16.gmra.mxu0 %v1433
    %v1771 = vpop.f32.mrf.mxu0
    %v1772 = vadd.f32 %v1683, %v1771
    %v1773 = vpop.f32.mrf.mxu0
    %v1774 = vadd.f32 %v1685, %v1773
    %1775 = vmatmul.bf16.gmra.mxu0 %v1435
    %v1776 = vpop.f32.mrf.mxu0
    %v1777 = vadd.f32 %v1688, %v1776
    %v1778 = vpop.f32.mrf.mxu0
    %v1779 = vadd.f32 %v1690, %v1778
    %1780 = vmatmul.bf16.gmra.mxu0 %v1437
    %v1781 = vpop.f32.mrf.mxu0
    %v1782 = vadd.f32 %v1693, %v1781
    %v1783 = vpop.f32.mrf.mxu0
    %v1784 = vadd.f32 %v1695, %v1783
    %1785 = vmatmul.bf16.gmra.mxu0 %v1439
    %v1786 = vpop.f32.mrf.mxu0
    %v1787 = vadd.f32 %v1698, %v1786
    %v1788 = vpop.f32.mrf.mxu0
    %v1789 = vadd.f32 %v1700, %v1788
    %1790 = vmatmul.bf16.gmra.mxu0 %v1441
    %v1791 = vpop.f32.mrf.mxu0
    %v1792 = vadd.f32 %v1703, %v1791
    %v1793 = vpop.f32.mrf.mxu0
    %v1794 = vadd.f32 %v1705, %v1793
    %1795 = vmatmul.bf16.gmra.mxu0 %v1443
    %v1796 = vpop.f32.mrf.mxu0
    %v1797 = vadd.f32 %v1708, %v1796
    %v1798 = vpop.f32.mrf.mxu0
    %v1799 = vadd.f32 %v1710, %v1798
    %1800 = vmatmul.bf16.gmra.mxu0 %v1445
    %v1801 = vpop.f32.mrf.mxu0
    %v1802 = vadd.f32 %v1713, %v1801
    %v1803 = vpop.f32.mrf.mxu0
    %v1804 = vadd.f32 %v1715, %v1803
    %1805 = vmatmul.bf16.gmra.mxu0 %v1447
    %v1806 = vpop.f32.mrf.mxu0
    %v1807 = vadd.f32 %v1718, %v1806
    %v1808 = vpop.f32.mrf.mxu0
    %v1809 = vadd.f32 %v1720, %v1808
    %1810 = vmatmul.bf16.gmra.mxu0 %v1449
    %v1811 = vpop.f32.mrf.mxu0
    %v1812 = vadd.f32 %v1723, %v1811
    %v1813 = vpop.f32.mrf.mxu0
    %v1814 = vadd.f32 %v1725, %v1813
    %1815 = vmatmul.bf16.gmra.mxu0 %v1451
    %v1816 = vpop.f32.mrf.mxu0
    %v1817 = vadd.f32 %v1728, %v1816
    %v1818 = vpop.f32.mrf.mxu0
    %v1819 = vadd.f32 %v1730, %v1818
    %1820 = vmatmul.bf16.gmra.mxu0 %v1453
    %v1821 = vpop.f32.mrf.mxu0
    %v1822 = vadd.f32 %v1733, %v1821
    %v1823 = vpop.f32.mrf.mxu0
    %v1824 = vadd.f32 %v1735, %v1823
    %1825 = vmatmul.bf16.gmra.mxu0 %v1455
    %v1826 = vpop.f32.mrf.mxu0
    %v1827 = vadd.f32 %v1738, %v1826
    %v1828 = vpop.f32.mrf.mxu0
    %v1829 = vadd.f32 %v1740, %v1828
    %1830 = vmatmul.bf16.gmra.mxu0 %v1457
    %v1831 = vpop.f32.mrf.mxu0
    %v1832 = vadd.f32 %v1743, %v1831
    %v1833 = vpop.f32.mrf.mxu0
    %v1834 = vadd.f32 %v1745, %v1833
    %1835 = vdwg.mxu0
    %1836 = vmatpush.bf16.msra.mxu0 %v1609
    %1837 = vmatpush.bf16.msra.mxu0 %v1607
    %1838 = vmatpush.bf16.msra.mxu0 %v1605
    %1839 = vmatpush.bf16.msra.mxu0 %v1603
    %1840 = vmatpush.bf16.msra.mxu0 %v1601
    %1841 = vmatpush.bf16.msra.mxu0 %v1599
    %1842 = vmatpush.bf16.msra.mxu0 %v1597
    %1843 = vmatpush.bf16.msra.mxu0 %v1595
    %1844 = vmatmul.bf16.gmra.mxu0 %v1426
    %v1845 = vpop.f32.mrf.mxu0
    %v1846 = vadd.f32 %v1495, %v1845
    %v1847 = vpop.f32.mrf.mxu0
    %v1848 = vadd.f32 %v1495, %v1847
    %1849 = vmatmul.bf16.gmra.mxu0 %v1428
    %v1850 = vpop.f32.mrf.mxu0
    %v1851 = vadd.f32 %v1495, %v1850
    %v1852 = vpop.f32.mrf.mxu0
    %v1853 = vadd.f32 %v1495, %v1852
    %1854 = vmatmul.bf16.gmra.mxu0 %v1430
    %v1855 = vpop.f32.mrf.mxu0
    %v1856 = vadd.f32 %v1495, %v1855
    %v1857 = vpop.f32.mrf.mxu0
    %v1858 = vadd.f32 %v1495, %v1857
    %1859 = vmatmul.bf16.gmra.mxu0 %v1432
    %v1860 = vpop.f32.mrf.mxu0
    %v1861 = vadd.f32 %v1495, %v1860
    %v1862 = vpop.f32.mrf.mxu0
    %v1863 = vadd.f32 %v1495, %v1862
    %1864 = vmatmul.bf16.gmra.mxu0 %v1434
    %v1865 = vpop.f32.mrf.mxu0
    %v1866 = vadd.f32 %v1495, %v1865
    %v1867 = vpop.f32.mrf.mxu0
    %v1868 = vadd.f32 %v1495, %v1867
    %1869 = vmatmul.bf16.gmra.mxu0 %v1436
    %v1870 = vpop.f32.mrf.mxu0
    %v1871 = vadd.f32 %v1495, %v1870
    %v1872 = vpop.f32.mrf.mxu0
    %v1873 = vadd.f32 %v1495, %v1872
    %1874 = vmatmul.bf16.gmra.mxu0 %v1438
    %v1875 = vpop.f32.mrf.mxu0
    %v1876 = vadd.f32 %v1495, %v1875
    %v1877 = vpop.f32.mrf.mxu0
    %v1878 = vadd.f32 %v1495, %v1877
    %1879 = vmatmul.bf16.gmra.mxu0 %v1440
    %v1880 = vpop.f32.mrf.mxu0
    %v1881 = vadd.f32 %v1495, %v1880
    %v1882 = vpop.f32.mrf.mxu0
    %v1883 = vadd.f32 %v1495, %v1882
    %1884 = vmatmul.bf16.gmra.mxu0 %v1442
    %v1885 = vpop.f32.mrf.mxu0
    %v1886 = vadd.f32 %v1495, %v1885
    %v1887 = vpop.f32.mrf.mxu0
    %v1888 = vadd.f32 %v1495, %v1887
    %1889 = vmatmul.bf16.gmra.mxu0 %v1444
    %v1890 = vpop.f32.mrf.mxu0
    %v1891 = vadd.f32 %v1495, %v1890
    %v1892 = vpop.f32.mrf.mxu0
    %v1893 = vadd.f32 %v1495, %v1892
    %1894 = vmatmul.bf16.gmra.mxu0 %v1446
    %v1895 = vpop.f32.mrf.mxu0
    %v1896 = vadd.f32 %v1495, %v1895
    %v1897 = vpop.f32.mrf.mxu0
    %v1898 = vadd.f32 %v1495, %v1897
    %1899 = vmatmul.bf16.gmra.mxu0 %v1448
    %v1900 = vpop.f32.mrf.mxu0
    %v1901 = vadd.f32 %v1495, %v1900
    %v1902 = vpop.f32.mrf.mxu0
    %v1903 = vadd.f32 %v1495, %v1902
    %1904 = vmatmul.bf16.gmra.mxu0 %v1450
    %v1905 = vpop.f32.mrf.mxu0
    %v1906 = vadd.f32 %v1495, %v1905
    %v1907 = vpop.f32.mrf.mxu0
    %v1908 = vadd.f32 %v1495, %v1907
    %1909 = vmatmul.bf16.gmra.mxu0 %v1452
    %v1910 = vpop.f32.mrf.mxu0
    %v1911 = vadd.f32 %v1495, %v1910
    %v1912 = vpop.f32.mrf.mxu0
    %v1913 = vadd.f32 %v1495, %v1912
    %1914 = vmatmul.bf16.gmra.mxu0 %v1454
    %v1915 = vpop.f32.mrf.mxu0
    %v1916 = vadd.f32 %v1495, %v1915
    %v1917 = vpop.f32.mrf.mxu0
    %v1918 = vadd.f32 %v1495, %v1917
    %1919 = vmatmul.bf16.gmra.mxu0 %v1456
    %v1920 = vpop.f32.mrf.mxu0
    %v1921 = vadd.f32 %v1495, %v1920
    %v1922 = vpop.f32.mrf.mxu0
    %v1923 = vadd.f32 %v1495, %v1922
    %1924 = vdwg.mxu0
    %1925 = vmatpush.bf16.msra.mxu0 %v1625
    %1926 = vmatpush.bf16.msra.mxu0 %v1623
    %1927 = vmatpush.bf16.msra.mxu0 %v1621
    %1928 = vmatpush.bf16.msra.mxu0 %v1619
    %1929 = vmatpush.bf16.msra.mxu0 %v1617
    %1930 = vmatpush.bf16.msra.mxu0 %v1615
    %1931 = vmatpush.bf16.msra.mxu0 %v1613
    %1932 = vmatpush.bf16.msra.mxu0 %v1611
    %1933 = vmatmul.bf16.gmra.mxu0 %v1427
    %v1934 = vpop.f32.mrf.mxu0
    %v1935 = vadd.f32 %v1846, %v1934
    %v1936 = vpop.f32.mrf.mxu0
    %v1937 = vadd.f32 %v1848, %v1936
    %1938 = vmatmul.bf16.gmra.mxu0 %v1429
    %v1939 = vpop.f32.mrf.mxu0
    %v1940 = vadd.f32 %v1851, %v1939
    %v1941 = vpop.f32.mrf.mxu0
    %v1942 = vadd.f32 %v1853, %v1941
    %1943 = vmatmul.bf16.gmra.mxu0 %v1431
    %v1944 = vpop.f32.mrf.mxu0
    %v1945 = vadd.f32 %v1856, %v1944
    %v1946 = vpop.f32.mrf.mxu0
    %v1947 = vadd.f32 %v1858, %v1946
    %1948 = vmatmul.bf16.gmra.mxu0 %v1433
    %v1949 = vpop.f32.mrf.mxu0
    %v1950 = vadd.f32 %v1861, %v1949
    %v1951 = vpop.f32.mrf.mxu0
    %v1952 = vadd.f32 %v1863, %v1951
    %1953 = vmatmul.bf16.gmra.mxu0 %v1435
    %v1954 = vpop.f32.mrf.mxu0
    %v1955 = vadd.f32 %v1866, %v1954
    %v1956 = vpop.f32.mrf.mxu0
    %v1957 = vadd.f32 %v1868, %v1956
    %1958 = vmatmul.bf16.gmra.mxu0 %v1437
    %v1959 = vpop.f32.mrf.mxu0
    %v1960 = vadd.f32 %v1871, %v1959
    %v1961 = vpop.f32.mrf.mxu0
    %v1962 = vadd.f32 %v1873, %v1961
    %1963 = vmatmul.bf16.gmra.mxu0 %v1439
    %v1964 = vpop.f32.mrf.mxu0
    %v1965 = vadd.f32 %v1876, %v1964
    %v1966 = vpop.f32.mrf.mxu0
    %v1967 = vadd.f32 %v1878, %v1966
    %1968 = vmatmul.bf16.gmra.mxu0 %v1441
    %v1969 = vpop.f32.mrf.mxu0
    %v1970 = vadd.f32 %v1881, %v1969
    %v1971 = vpop.f32.mrf.mxu0
    %v1972 = vadd.f32 %v1883, %v1971
    %1973 = vmatmul.bf16.gmra.mxu0 %v1443
    %v1974 = vpop.f32.mrf.mxu0
    %v1975 = vadd.f32 %v1886, %v1974
    %v1976 = vpop.f32.mrf.mxu0
    %v1977 = vadd.f32 %v1888, %v1976
    %1978 = vmatmul.bf16.gmra.mxu0 %v1445
    %v1979 = vpop.f32.mrf.mxu0
    %v1980 = vadd.f32 %v1891, %v1979
    %v1981 = vpop.f32.mrf.mxu0
    %v1982 = vadd.f32 %v1893, %v1981
    %1983 = vmatmul.bf16.gmra.mxu0 %v1447
    %v1984 = vpop.f32.mrf.mxu0
    %v1985 = vadd.f32 %v1896, %v1984
    %v1986 = vpop.f32.mrf.mxu0
    %v1987 = vadd.f32 %v1898, %v1986
    %1988 = vmatmul.bf16.gmra.mxu0 %v1449
    %v1989 = vpop.f32.mrf.mxu0
    %v1990 = vadd.f32 %v1901, %v1989
    %v1991 = vpop.f32.mrf.mxu0
    %v1992 = vadd.f32 %v1903, %v1991
    %1993 = vmatmul.bf16.gmra.mxu0 %v1451
    %v1994 = vpop.f32.mrf.mxu0
    %v1995 = vadd.f32 %v1906, %v1994
    %v1996 = vpop.f32.mrf.mxu0
    %v1997 = vadd.f32 %v1908, %v1996
    %1998 = vmatmul.bf16.gmra.mxu0 %v1453
    %v1999 = vpop.f32.mrf.mxu0
    %v2000 = vadd.f32 %v1911, %v1999
    %v2001 = vpop.f32.mrf.mxu0
    %v2002 = vadd.f32 %v1913, %v2001
    %2003 = vmatmul.bf16.gmra.mxu0 %v1455
    %v2004 = vpop.f32.mrf.mxu0
    %v2005 = vadd.f32 %v1916, %v2004
    %v2006 = vpop.f32.mrf.mxu0
    %v2007 = vadd.f32 %v1918, %v2006
    %2008 = vmatmul.bf16.gmra.mxu0 %v1457
    %v2009 = vpop.f32.mrf.mxu0
    %v2010 = vadd.f32 %v1921, %v2009
    %v2011 = vpop.f32.mrf.mxu0
    %v2012 = vadd.f32 %v1923, %v2011
    %2013 = vdwg.mxu0
    %v2014 = vmax.f32 %v1757, 0.0
    %v2015 = vmax.f32 %v1935, 0.0
    %v2016 = vmax.f32 %v1759, 0.0
    %v2017 = vmax.f32 %v1937, 0.0
    %v2018 = vmax.f32 %v1762, 0.0
    %v2019 = vmax.f32 %v1940, 0.0
    %v2020 = vmax.f32 %v1764, 0.0
    %v2021 = vmax.f32 %v1942, 0.0
    %v2022 = vmax.f32 %v1767, 0.0
    %v2023 = vmax.f32 %v1945, 0.0
    %v2024 = vmax.f32 %v1769, 0.0
    %v2025 = vmax.f32 %v1947, 0.0
    %v2026 = vmax.f32 %v1772, 0.0
    %v2027 = vmax.f32 %v1950, 0.0
    %v2028 = vmax.f32 %v1774, 0.0
    %v2029 = vmax.f32 %v1952, 0.0
    %v2030 = vmax.f32 %v1777, 0.0
    %v2031 = vmax.f32 %v1955, 0.0
    %v2032 = vmax.f32 %v1779, 0.0
    %v2033 = vmax.f32 %v1957, 0.0
    %v2034 = vmax.f32 %v1782, 0.0
    %v2035 = vmax.f32 %v1960, 0.0
    %v2036 = vmax.f32 %v1784, 0.0
    %v2037 = vmax.f32 %v1962, 0.0
    %v2038 = vmax.f32 %v1787, 0.0
    %v2039 = vmax.f32 %v1965, 0.0
    %v2040 = vmax.f32 %v1789, 0.0
    %v2041 = vmax.f32 %v1967, 0.0
    %v2042 = vmax.f32 %v1792, 0.0
    %v2043 = vmax.f32 %v1970, 0.0
    %v2044 = vmax.f32 %v1794, 0.0
    %v2045 = vmax.f32 %v1972, 0.0
    %v2046 = vmax.f32 %v1797, 0.0
    %v2047 = vmax.f32 %v1975, 0.0
    %v2048 = vmax.f32 %v1799, 0.0
    %v2049 = vmax.f32 %v1977, 0.0
    %v2050 = vmax.f32 %v1802, 0.0
    %v2051 = vmax.f32 %v1980, 0.0
    %v2052 = vmax.f32 %v1804, 0.0
    %v2053 = vmax.f32 %v1982, 0.0
    %v2054 = vmax.f32 %v1807, 0.0
    %v2055 = vmax.f32 %v1985, 0.0
    %v2056 = vmax.f32 %v1809, 0.0
    %v2057 = vmax.f32 %v1987, 0.0
    %v2058 = vmax.f32 %v1812, 0.0
    %v2059 = vmax.f32 %v1990, 0.0
    %v2060 = vmax.f32 %v1814, 0.0
    %v2061 = vmax.f32 %v1992, 0.0
    %v2062 = vmax.f32 %v1817, 0.0
    %v2063 = vmax.f32 %v1995, 0.0
    %v2064 = vmax.f32 %v1819, 0.0
    %v2065 = vmax.f32 %v1997, 0.0
    %v2066 = vmax.f32 %v1822, 0.0
    %v2067 = vmax.f32 %v2000, 0.0
    %v2068 = vmax.f32 %v1824, 0.0
    %v2069 = vmax.f32 %v2002, 0.0
    %v2070 = vmax.f32 %v1827, 0.0
    %v2071 = vmax.f32 %v2005, 0.0
    %v2072 = vmax.f32 %v1829, 0.0
    %v2073 = vmax.f32 %v2007, 0.0
    %v2074 = vmax.f32 %v1832, 0.0
    %v2075 = vmax.f32 %v2010, 0.0
    %v2076 = vmax.f32 %v1834, 0.0
    %v2077 = vmax.f32 %v2012, 0.0
    %2078 = vst [vmem:[#allocation8] sm:$0xff] %v2014
    %2079 = vst [vmem:[#allocation8 + $0x8] sm:$0xff] %v2015
    %2080 = vst [vmem:[#allocation8 + $0x10] sm:$0xff] %v2016
    %2081 = vst [vmem:[#allocation8 + $0x18] sm:$0xff] %v2017
    %2082 = vst [vmem:[#allocation8 + $0x20] sm:$0xff] %v2018
    %2083 = vst [vmem:[#allocation8 + $0x28] sm:$0xff] %v2019
    %2084 = vst [vmem:[#allocation8 + $0x30] sm:$0xff] %v2020
    %2085 = vst [vmem:[#allocation8 + $0x38] sm:$0xff] %v2021
    %2086 = vst [vmem:[#allocation8 + $0x40] sm:$0xff] %v2022
    %2087 = vst [vmem:[#allocation8 + $0x48] sm:$0xff] %v2023
    %2088 = vst [vmem:[#allocation8 + $0x50] sm:$0xff] %v2024
    %2089 = vst [vmem:[#allocation8 + $0x58] sm:$0xff] %v2025
    %2090 = vst [vmem:[#allocation8 + $0x60] sm:$0xff] %v2026
    %2091 = vst [vmem:[#allocation8 + $0x68] sm:$0xff] %v2027
    %2092 = vst [vmem:[#allocation8 + $0x70] sm:$0xff] %v2028
    %2093 = vst [vmem:[#allocation8 + $0x78] sm:$0xff] %v2029
    %2094 = vst [vmem:[#allocation8 + $0x80] sm:$0xff] %v2030
    %2095 = vst [vmem:[#allocation8 + $0x88] sm:$0xff] %v2031
    %2096 = vst [vmem:[#allocation8 + $0x90] sm:$0xff] %v2032
    %2097 = vst [vmem:[#allocation8 + $0x98] sm:$0xff] %v2033
    %2098 = vst [vmem:[#allocation8 + $0xa0] sm:$0xff] %v2034
    %2099 = vst [vmem:[#allocation8 + $0xa8] sm:$0xff] %v2035
    %2100 = vst [vmem:[#allocation8 + $0xb0] sm:$0xff] %v2036
    %2101 = vst [vmem:[#allocation8 + $0xb8] sm:$0xff] %v2037
    %2102 = vst [vmem:[#allocation8 + $0xc0] sm:$0xff] %v2038
    %2103 = vst [vmem:[#allocation8 + $0xc8] sm:$0xff] %v2039
    %2104 = vst [vmem:[#allocation8 + $0xd0] sm:$0xff] %v2040
    %2105 = vst [vmem:[#allocation8 + $0xd8] sm:$0xff] %v2041
    %2106 = vst [vmem:[#allocation8 + $0xe0] sm:$0xff] %v2042
    %2107 = vst [vmem:[#allocation8 + $0xe8] sm:$0xff] %v2043
    %2108 = vst [vmem:[#allocation8 + $0xf0] sm:$0xff] %v2044
    %2109 = vst [vmem:[#allocation8 + $0xf8] sm:$0xff] %v2045
    %2110 = vst [vmem:[#allocation8 + $0x100] sm:$0xff] %v2046
    %2111 = vst [vmem:[#allocation8 + $0x108] sm:$0xff] %v2047
    %2112 = vst [vmem:[#allocation8 + $0x110] sm:$0xff] %v2048
    %2113 = vst [vmem:[#allocation8 + $0x118] sm:$0xff] %v2049
    %2114 = vst [vmem:[#allocation8 + $0x120] sm:$0xff] %v2050
    %2115 = vst [vmem:[#allocation8 + $0x128] sm:$0xff] %v2051
    %2116 = vst [vmem:[#allocation8 + $0x130] sm:$0xff] %v2052
    %2117 = vst [vmem:[#allocation8 + $0x138] sm:$0xff] %v2053
    %2118 = vst [vmem:[#allocation8 + $0x140] sm:$0xff] %v2054
    %2119 = vst [vmem:[#allocation8 + $0x148] sm:$0xff] %v2055
    %2120 = vst [vmem:[#allocation8 + $0x150] sm:$0xff] %v2056
    %2121 = vst [vmem:[#allocation8 + $0x158] sm:$0xff] %v2057
    %2122 = vst [vmem:[#allocation8 + $0x160] sm:$0xff] %v2058
    %2123 = vst [vmem:[#allocation8 + $0x168] sm:$0xff] %v2059
    %2124 = vst [vmem:[#allocation8 + $0x170] sm:$0xff] %v2060
    %2125 = vst [vmem:[#allocation8 + $0x178] sm:$0xff] %v2061
    %2126 = vst [vmem:[#allocation8 + $0x180] sm:$0xff] %v2062
    %2127 = vst [vmem:[#allocation8 + $0x188] sm:$0xff] %v2063
    %2128 = vst [vmem:[#allocation8 + $0x190] sm:$0xff] %v2064
    %2129 = vst [vmem:[#allocation8 + $0x198] sm:$0xff] %v2065
    %2130 = vst [vmem:[#allocation8 + $0x1a0] sm:$0xff] %v2066
    %2131 = vst [vmem:[#allocation8 + $0x1a8] sm:$0xff] %v2067
    %2132 = vst [vmem:[#allocation8 + $0x1b0] sm:$0xff] %v2068
    %2133 = vst [vmem:[#allocation8 + $0x1b8] sm:$0xff] %v2069
    %2134 = vst [vmem:[#allocation8 + $0x1c0] sm:$0xff] %v2070
    %2135 = vst [vmem:[#allocation8 + $0x1c8] sm:$0xff] %v2071
    %2136 = vst [vmem:[#allocation8 + $0x1d0] sm:$0xff] %v2072
    %2137 = vst [vmem:[#allocation8 + $0x1d8] sm:$0xff] %v2073
    %2138 = vst [vmem:[#allocation8 + $0x1e0] sm:$0xff] %v2074
    %2139 = vst [vmem:[#allocation8 + $0x1e8] sm:$0xff] %v2075
    %2140 = vst [vmem:[#allocation8 + $0x1f0] sm:$0xff] %v2076
    %2141 = vst [vmem:[#allocation8 + $0x1f8] sm:$0xff] %v2077
    // Predicated region
    $region26: #{tpu_custom_call.1} parent=1 // pred_check
      _
    $region27: #{tpu_custom_call.1} parent=1 // pred_check_branch
      %2143 = sbr.rel (0) target = $region29
    $region28: #{tpu_custom_call.1} parent=1 // pred_region
      %2145 = vsyncadd [#allocation4], 0
      %s2146 = sshll.u32 [#allocation8], 4
      %s2147 = int_to_ptr.vmem [resolvable:$true] %s2146
      %s2148 = sshll.u32 %s3, 4
      %s2149 = int_to_ptr.hbm [resolvable:$true] %s2148
      %2154 = dma.vmem_to_hbm [thread:$0]  %s2147, 8192, %s2149, [#allocation4], 256, 256, 16
    $region29: #{tpu_custom_call.1} parent=1 // pred_fallthru
      _
    // Predicated region
    $region30: #{tpu_custom_call.1} parent=1 // pred_check
      _
    $region31: #{tpu_custom_call.1} parent=1 // pred_check_branch
      %2156 = sbr.rel (0) target = $region33
    $region32: #{tpu_custom_call.1} parent=1 // pred_region
      %2158 = dma.done [#allocation4], 8192
    $region33: #{tpu_custom_call.1} parent=1 // pred_fallthru
      _
    %2159 = vsyncpa [#allocation3], 1
    %2160 = vsyncpa [#allocation6], 1
    %2161 = vsyncpa [#allocation4], 1

// kernel: tpu_custom_call.1
$region0: #{tpu_custom_call.1}
  #allocation0 [shape = 'u32[]', space=smem, size = 0x4, offset = 0x4, fixed_abs, tag = 'smem constant byte address 0x4 - core index']
  #allocation1 [shape = 'u32[72,128]{1,0:T(1,128)}', space=vmem, size = 0x9000, scoped, tag = 'internal scratch']
  %s0 = inlined_call_operand.hbm [shape: f32[256,256], index: 0, kind: input, shape index: {}]
  %s1 = inlined_call_operand.hbm [shape: bf16[3,256,256], index: 1, kind: input, shape index: {}]
  %s2 = inlined_call_operand.hbm [shape: f32[3,256], index: 2, kind: input, shape index: {}]
  %s3 = inlined_call_operand.hbm [shape: f32[256,256], index: 3, kind: output, shape index: {}]
  %s4 = sld [smem:[#allocation0]]
  $region34: #{tpu_custom_call.1} parent=0
    _
  %s6 = ssub.s32 1, %s4
  %s7 = scalar_select 0, %s6, %s4
  $region1: #{tpu_custom_call.1} parent=0
    #allocation2 [shape = 'u8[262144]{0}', space=vmem, size = 0x40000, scoped, tag = 'input window, operand 0, single buffered']
    #allocation3 [shape = 's32[1]{0}', space=sflag, size = 0x4, scoped, tag = 'scoped memory for tpu_custom_call.1']
    #allocation4 [shape = 's32[1]{0}', space=sflag, size = 0x4, scoped, tag = 'scoped memory for tpu_custom_call.1']
    #allocation5 [shape = 'u8[393216]{0}', space=vmem, size = 0x60000, scoped, tag = 'input window, operand 1, single buffered']
    #allocation6 [shape = 's32[1]{0}', space=sflag, size = 0x4, scoped, tag = 'scoped memory for tpu_custom_call.1']
    #allocation7 [shape = 'u8[4096]{0}', space=vmem, size = 0x1000, scoped, tag = 'input window, operand 2, single buffered']
    #allocation8 [shape = 'u8[262144]{0}', space=vmem, size = 0x40000, scoped, tag = 'output window, operand 0, single buffered']
    %8 = vsyncpa [#allocation3], 0
    %9 = vsyncpa [#allocation6], 0
    %10 = vsyncpa [#allocation4], 0
    // Predicated region
    $region2: #{tpu_custom_call.1} parent=1 // pred_check
      _
    $region3: #{tpu_custom_call.1} parent=1 // pred_check_branch
      %12 = sbr.rel (0) target = $region5
    $region4: #{tpu_custom_call.1} parent=1 // pred_region
      %14 = vsyncadd [#allocation3], 0
      %s15 = sshll.u32 %s0, 4
      %s16 = int_to_ptr.hbm [resolvable:$true] %s15
      %s17 = sshll.u32 [#allocation2], 4
      %s18 = int_to_ptr.vmem [resolvable:$true] %s17
      %23 = dma.hbm_to_vmem [thread:$0]  %s16, 8192, %s18, [#allocation3], 256, 256, 16
    $region5: #{tpu_custom_call.1} parent=1 // pred_fallthru
      _
    // Predicated region
    $region6: #{tpu_custom_call.1} parent=1 // pred_check
      _
    $region7: #{tpu_custom_call.1} parent=1 // pred_check_branch
      %25 = sbr.rel (0) target = $region9
    $region8: #{tpu_custom_call.1} parent=1 // pred_region
      %27 = vsyncadd [#allocation6], 0
      %s28 = sshll.u32 %s1, 4
      %s29 = int_to_ptr.hbm [resolvable:$true] %s28
      %s30 = sshll.u32 [#allocation5], 4
      %s31 = int_to_ptr.vmem [resolvable:$true] %s30
      %36 = dma.hbm_to_vmem [thread:$0]  %s29, 12288, %s31, [#allocation6], 128, 128, 8
    $region9: #{tpu_custom_call.1} parent=1 // pred_fallthru
      _
    // Predicated region
    $region10: #{tpu_custom_call.1} parent=1 // pred_check
      _
    $region11: #{tpu_custom_call.1} parent=1 // pred_check_branch
      %38 = sbr.rel (0) target = $region13
    $region12: #{tpu_custom_call.1} parent=1 // pred_region
      %40 = vsyncadd [#allocation6], 0
      %s42 = sshll.u32 %s2, 4
      %s43 = int_to_ptr.hbm [resolvable:$true] %s42
      %s44 = sshll.u32 [#allocation7], 4
      %s45 = int_to_ptr.vmem [resolvable:$true] %s44
      %47 = dma.hbm_to_vmem [thread:$0]  %s43, 128, %s45, [#allocation6]
    $region13: #{tpu_custom_call.1} parent=1 // pred_fallthru
      _
    // Predicated region
    $region14: #{tpu_custom_call.1} parent=1 // pred_check
      _
    $region15: #{tpu_custom_call.1} parent=1 // pred_check_branch
      %49 = sbr.rel (0) target = $region17
    $region16: #{tpu_custom_call.1} parent=1 // pred_region
      %51 = dma.done [#allocation3], 8192
    $region17: #{tpu_custom_call.1} parent=1 // pred_fallthru
      _
    // Predicated region
    $region18: #{tpu_custom_call.1} parent=1 // pred_check
      _
    $region19: #{tpu_custom_call.1} parent=1 // pred_check_branch
      %53 = sbr.rel (0) target = $region21
    $region20: #{tpu_custom_call.1} parent=1 // pred_region
      %55 = dma.done [#allocation6], 12288
    $region21: #{tpu_custom_call.1} parent=1 // pred_fallthru
      _
    // Predicated region
    $region22: #{tpu_custom_call.1} parent=1 // pred_check
      _
    $region23: #{tpu_custom_call.1} parent=1 // pred_check_branch
      %57 = sbr.rel (0) target = $region25
    $region24: #{tpu_custom_call.1} parent=1 // pred_region
      %59 = dma.done [#allocation6], 128
    $region25: #{tpu_custom_call.1} parent=1 // pred_fallthru
      _
    %v60 = vld [vmem:[#allocation2] sm:$0xff]
    %v61 = vld [vmem:[#allocation2 + $0x8] sm:$0xff]
    %v62 = vld [vmem:[#allocation2 + $0x10] sm:$0xff]
    %v63 = vld [vmem:[#allocation2 + $0x18] sm:$0xff]
    %v64 = vld [vmem:[#allocation2 + $0x20] sm:$0xff]
    %v65 = vld [vmem:[#allocation2 + $0x28] sm:$0xff]
    %v66 = vld [vmem:[#allocation2 + $0x30] sm:$0xff]
    %v67 = vld [vmem:[#allocation2 + $0x38] sm:$0xff]
    %v68 = vld [vmem:[#allocation2 + $0x40] sm:$0xff]
    %v69 = vld [vmem:[#allocation2 + $0x48] sm:$0xff]
    %v70 = vld [vmem:[#allocation2 + $0x50] sm:$0xff]
    %v71 = vld [vmem:[#allocation2 + $0x58] sm:$0xff]
    %v72 = vld [vmem:[#allocation2 + $0x60] sm:$0xff]
    %v73 = vld [vmem:[#allocation2 + $0x68] sm:$0xff]
    %v74 = vld [vmem:[#allocation2 + $0x70] sm:$0xff]
    %v75 = vld [vmem:[#allocation2 + $0x78] sm:$0xff]
    %v76 = vld [vmem:[#allocation2 + $0x80] sm:$0xff]
    %v77 = vld [vmem:[#allocation2 + $0x88] sm:$0xff]
    %v78 = vld [vmem:[#allocation2 + $0x90] sm:$0xff]
    %v79 = vld [vmem:[#allocation2 + $0x98] sm:$0xff]
    %v80 = vld [vmem:[#allocation2 + $0xa0] sm:$0xff]
    %v81 = vld [vmem:[#allocation2 + $0xa8] sm:$0xff]
    %v82 = vld [vmem:[#allocation2 + $0xb0] sm:$0xff]
    %v83 = vld [vmem:[#allocation2 + $0xb8] sm:$0xff]
    %v84 = vld [vmem:[#allocation2 + $0xc0] sm:$0xff]
    %v85 = vld [vmem:[#allocation2 + $0xc8] sm:$0xff]
    %v86 = vld [vmem:[#allocation2 + $0xd0] sm:$0xff]
    %v87 = vld [vmem:[#allocation2 + $0xd8] sm:$0xff]
    %v88 = vld [vmem:[#allocation2 + $0xe0] sm:$0xff]
    %v89 = vld [vmem:[#allocation2 + $0xe8] sm:$0xff]
    %v90 = vld [vmem:[#allocation2 + $0xf0] sm:$0xff]
    %v91 = vld [vmem:[#allocation2 + $0xf8] sm:$0xff]
    %v92 = vld [vmem:[#allocation2 + $0x100] sm:$0xff]
    %v93 = vld [vmem:[#allocation2 + $0x108] sm:$0xff]
    %v94 = vld [vmem:[#allocation2 + $0x110] sm:$0xff]
    %v95 = vld [vmem:[#allocation2 + $0x118] sm:$0xff]
    %v96 = vld [vmem:[#allocation2 + $0x120] sm:$0xff]
    %v97 = vld [vmem:[#allocation2 + $0x128] sm:$0xff]
    %v98 = vld [vmem:[#allocation2 + $0x130] sm:$0xff]
    %v99 = vld [vmem:[#allocation2 + $0x138] sm:$0xff]
    %v100 = vld [vmem:[#allocation2 + $0x140] sm:$0xff]
    %v101 = vld [vmem:[#allocation2 + $0x148] sm:$0xff]
    %v102 = vld [vmem:[#allocation2 + $0x150] sm:$0xff]
    %v103 = vld [vmem:[#allocation2 + $0x158] sm:$0xff]
    %v104 = vld [vmem:[#allocation2 + $0x160] sm:$0xff]
    %v105 = vld [vmem:[#allocation2 + $0x168] sm:$0xff]
    %v106 = vld [vmem:[#allocation2 + $0x170] sm:$0xff]
    %v107 = vld [vmem:[#allocation2 + $0x178] sm:$0xff]
    %v108 = vld [vmem:[#allocation2 + $0x180] sm:$0xff]
    %v109 = vld [vmem:[#allocation2 + $0x188] sm:$0xff]
    %v110 = vld [vmem:[#allocation2 + $0x190] sm:$0xff]
    %v111 = vld [vmem:[#allocation2 + $0x198] sm:$0xff]
    %v112 = vld [vmem:[#allocation2 + $0x1a0] sm:$0xff]
    %v113 = vld [vmem:[#allocation2 + $0x1a8] sm:$0xff]
    %v114 = vld [vmem:[#allocation2 + $0x1b0] sm:$0xff]
    %v115 = vld [vmem:[#allocation2 + $0x1b8] sm:$0xff]
    %v116 = vld [vmem:[#allocation2 + $0x1c0] sm:$0xff]
    %v117 = vld [vmem:[#allocation2 + $0x1c8] sm:$0xff]
    %v118 = vld [vmem:[#allocation2 + $0x1d0] sm:$0xff]
    %v119 = vld [vmem:[#allocation2 + $0x1d8] sm:$0xff]
    %v120 = vld [vmem:[#allocation2 + $0x1e0] sm:$0xff]
    %v121 = vld [vmem:[#allocation2 + $0x1e8] sm:$0xff]
    %v122 = vld [vmem:[#allocation2 + $0x1f0] sm:$0xff]
    %v123 = vld [vmem:[#allocation2 + $0x1f8] sm:$0xff]
    %v124 = vpack.c.bf16 %v62, %v60
    %v125 = vpack.c.bf16 %v63, %v61
    %v126 = vpack.c.bf16 %v66, %v64
    %v127 = vpack.c.bf16 %v67, %v65
    %v128 = vpack.c.bf16 %v70, %v68
    %v129 = vpack.c.bf16 %v71, %v69
    %v130 = vpack.c.bf16 %v74, %v72
    %v131 = vpack.c.bf16 %v75, %v73
    %v132 = vpack.c.bf16 %v78, %v76
    %v133 = vpack.c.bf16 %v79, %v77
    %v134 = vpack.c.bf16 %v82, %v80
    %v135 = vpack.c.bf16 %v83, %v81
    %v136 = vpack.c.bf16 %v86, %v84
    %v137 = vpack.c.bf16 %v87, %v85
    %v138 = vpack.c.bf16 %v90, %v88
    %v139 = vpack.c.bf16 %v91, %v89
    %v140 = vpack.c.bf16 %v94, %v92
    %v141 = vpack.c.bf16 %v95, %v93
    %v142 = vpack.c.bf16 %v98, %v96
    %v143 = vpack.c.bf16 %v99, %v97
    %v144 = vpack.c.bf16 %v102, %v100
    %v145 = vpack.c.bf16 %v103, %v101
    %v146 = vpack.c.bf16 %v106, %v104
    %v147 = vpack.c.bf16 %v107, %v105
    %v148 = vpack.c.bf16 %v110, %v108
    %v149 = vpack.c.bf16 %v111, %v109
    %v150 = vpack.c.bf16 %v114, %v112
    %v151 = vpack.c.bf16 %v115, %v113
    %v152 = vpack.c.bf16 %v118, %v116
    %v153 = vpack.c.bf16 %v119, %v117
    %v154 = vpack.c.bf16 %v122, %v120
    %v155 = vpack.c.bf16 %v123, %v121
    %v156 = vld [vmem:[#allocation5] sm:$0xff]
    %v157 = vld [vmem:[#allocation5 + $0x8] sm:$0xff]
    %v158 = vld [vmem:[#allocation5 + $0x10] sm:$0xff]
    %v159 = vld [vmem:[#allocation5 + $0x18] sm:$0xff]
    %v160 = vld [vmem:[#allocation5 + $0x20] sm:$0xff]
    %v161 = vld [vmem:[#allocation5 + $0x28] sm:$0xff]
    %v162 = vld [vmem:[#allocation5 + $0x30] sm:$0xff]
    %v163 = vld [vmem:[#allocation5 + $0x38] sm:$0xff]
    %v164 = vld [vmem:[#allocation5 + $0x40] sm:$0xff]
    %v165 = vld [vmem:[#allocation5 + $0x48] sm:$0xff]
    %v166 = vld [vmem:[#allocation5 + $0x50] sm:$0xff]
    %v167 = vld [vmem:[#allocation5 + $0x58] sm:$0xff]
    %v168 = vld [vmem:[#allocation5 + $0x60] sm:$0xff]
    %v169 = vld [vmem:[#allocation5 + $0x68] sm:$0xff]
    %v170 = vld [vmem:[#allocation5 + $0x70] sm:$0xff]
    %v171 = vld [vmem:[#allocation5 + $0x78] sm:$0xff]
    %v172 = vld [vmem:[#allocation5 + $0x80] sm:$0xff]
    %v173 = vld [vmem:[#allocation5 + $0x88] sm:$0xff]
    %v174 = vld [vmem:[#allocation5 + $0x90] sm:$0xff]
    %v175 = vld [vmem:[#allocation5 + $0x98] sm:$0xff]
    %v176 = vld [vmem:[#allocation5 + $0xa0] sm:$0xff]
    %v177 = vld [vmem:[#allocation5 + $0xa8] sm:$0xff]
    %v178 = vld [vmem:[#allocation5 + $0xb0] sm:$0xff]
    %v179 = vld [vmem:[#allocation5 + $0xb8] sm:$0xff]
    %v180 = vld [vmem:[#allocation5 + $0xc0] sm:$0xff]
    %v181 = vld [vmem:[#allocation5 + $0xc8] sm:$0xff]
    %v182 = vld [vmem:[#allocation5 + $0xd0] sm:$0xff]
    %v183 = vld [vmem:[#allocation5 + $0xd8] sm:$0xff]
    %v184 = vld [vmem:[#allocation5 + $0xe0] sm:$0xff]
    %v185 = vld [vmem:[#allocation5 + $0xe8] sm:$0xff]
    %v186 = vld [vmem:[#allocation5 + $0xf0] sm:$0xff]
    %v187 = vld [vmem:[#allocation5 + $0xf8] sm:$0xff]
    %v188 = vld [vmem:[#allocation7] ss:$4 sm:$0x3]
    %v190 = vperm.slane %v188, 0
    %v191 = vperm.slane %v188, 1
    %v226 = vunpack.c.l.b16 %v156
    %v227 = vunpack.c.h.b16 %v156
    %v228 = vunpack.c.l.b16 %v157
    %v229 = vunpack.c.h.b16 %v157
    %v230 = vunpack.c.l.b16 %v158
    %v231 = vunpack.c.h.b16 %v158
    %v232 = vunpack.c.l.b16 %v159
    %v233 = vunpack.c.h.b16 %v159
    %v234 = vunpack.c.l.b16 %v160
    %v235 = vunpack.c.h.b16 %v160
    %v236 = vunpack.c.l.b16 %v161
    %v237 = vunpack.c.h.b16 %v161
    %v238 = vunpack.c.l.b16 %v162
    %v239 = vunpack.c.h.b16 %v162
    %v240 = vunpack.c.l.b16 %v163
    %v241 = vunpack.c.h.b16 %v163
    %v242 = vunpack.c.l.b16 %v164
    %v243 = vunpack.c.h.b16 %v164
    %v244 = vunpack.c.l.b16 %v165
    %v245 = vunpack.c.h.b16 %v165
    %v246 = vunpack.c.l.b16 %v166
    %v247 = vunpack.c.h.b16 %v166
    %v248 = vunpack.c.l.b16 %v167
    %v249 = vunpack.c.h.b16 %v167
    %v250 = vunpack.c.l.b16 %v168
    %v251 = vunpack.c.h.b16 %v168
    %v252 = vunpack.c.l.b16 %v169
    %v253 = vunpack.c.h.b16 %v169
    %v254 = vunpack.c.l.b16 %v170
    %v255 = vunpack.c.h.b16 %v170
    %v256 = vunpack.c.l.b16 %v171
    %v257 = vunpack.c.h.b16 %v171
    %v258 = vunpack.c.l.b16 %v172
    %v259 = vunpack.c.h.b16 %v172
    %v260 = vunpack.c.l.b16 %v173
    %v261 = vunpack.c.h.b16 %v173
    %v262 = vunpack.c.l.b16 %v174
    %v263 = vunpack.c.h.b16 %v174
    %v264 = vunpack.c.l.b16 %v175
    %v265 = vunpack.c.h.b16 %v175
    %v266 = vunpack.c.l.b16 %v176
    %v267 = vunpack.c.h.b16 %v176
    %v268 = vunpack.c.l.b16 %v177
    %v269 = vunpack.c.h.b16 %v177
    %v270 = vunpack.c.l.b16 %v178
    %v271 = vunpack.c.h.b16 %v178
    %v272 = vunpack.c.l.b16 %v179
    %v273 = vunpack.c.h.b16 %v179
    %v274 = vunpack.c.l.b16 %v180
    %v275 = vunpack.c.h.b16 %v180
    %v276 = vunpack.c.l.b16 %v181
    %v277 = vunpack.c.h.b16 %v181
    %v278 = vunpack.c.l.b16 %v182
    %v279 = vunpack.c.h.b16 %v182
    %v280 = vunpack.c.l.b16 %v183
    %v281 = vunpack.c.h.b16 %v183
    %v282 = vunpack.c.l.b16 %v184
    %v283 = vunpack.c.h.b16 %v184
    %v284 = vunpack.c.l.b16 %v185
    %v285 = vunpack.c.h.b16 %v185
    %v286 = vunpack.c.l.b16 %v186
    %v287 = vunpack.c.h.b16 %v186
    %v288 = vunpack.c.l.b16 %v187
    %v289 = vunpack.c.h.b16 %v187
    %v290 = vpack.c.b16 %v228, %v226
    %v291 = vpack.c.b16 %v229, %v227
    %v292 = vpack.c.b16 %v232, %v230
    %v293 = vpack.c.b16 %v233, %v231
    %v294 = vpack.c.b16 %v236, %v234
    %v295 = vpack.c.b16 %v237, %v235
    %v296 = vpack.c.b16 %v240, %v238
    %v297 = vpack.c.b16 %v241, %v239
    %v298 = vpack.c.b16 %v244, %v242
    %v299 = vpack.c.b16 %v245, %v243
    %v300 = vpack.c.b16 %v248, %v246
    %v301 = vpack.c.b16 %v249, %v247
    %v302 = vpack.c.b16 %v252, %v250
    %v303 = vpack.c.b16 %v253, %v251
    %v304 = vpack.c.b16 %v256, %v254
    %v305 = vpack.c.b16 %v257, %v255
    %v306 = vpack.c.b16 %v260, %v258
    %v307 = vpack.c.b16 %v261, %v259
    %v308 = vpack.c.b16 %v264, %v262
    %v309 = vpack.c.b16 %v265, %v263
    %v310 = vpack.c.b16 %v268, %v266
    %v311 = vpack.c.b16 %v269, %v267
    %v312 = vpack.c.b16 %v272, %v270
    %v313 = vpack.c.b16 %v273, %v271
    %v314 = vpack.c.b16 %v276, %v274
    %v315 = vpack.c.b16 %v277, %v275
    %v316 = vpack.c.b16 %v280, %v278
    %v317 = vpack.c.b16 %v281, %v279
    %v318 = vpack.c.b16 %v284, %v282
    %v319 = vpack.c.b16 %v285, %v283
    %v320 = vpack.c.b16 %v288, %v286
    %v321 = vpack.c.b16 %v289, %v287
    %354 = vmatpush.bf16.msra.mxu0 %v304
    %355 = vmatpush.bf16.msra.mxu0 %v302
    %356 = vmatpush.bf16.msra.mxu0 %v300
    %357 = vmatpush.bf16.msra.mxu0 %v298
    %358 = vmatpush.bf16.msra.mxu0 %v296
    %359 = vmatpush.bf16.msra.mxu0 %v294
    %360 = vmatpush.bf16.msra.mxu0 %v292
    %361 = vmatpush.bf16.msra.mxu0 %v290
    %362 = vmatmul.bf16.gmra.mxu0 %v124
    %v363 = vpop.f32.mrf.mxu0
    %v364 = vadd.f32 %v190, %v363
    %v365 = vpop.f32.mrf.mxu0
    %v366 = vadd.f32 %v190, %v365
    %367 = vmatmul.bf16.gmra.mxu0 %v126
    %v368 = vpop.f32.mrf.mxu0
    %v369 = vadd.f32 %v190, %v368
    %v370 = vpop.f32.mrf.mxu0
    %v371 = vadd.f32 %v190, %v370
    %372 = vmatmul.bf16.gmra.mxu0 %v128
    %v373 = vpop.f32.mrf.mxu0
    %v374 = vadd.f32 %v190, %v373
    %v375 = vpop.f32.mrf.mxu0
    %v376 = vadd.f32 %v190, %v375
    %377 = vmatmul.bf16.gmra.mxu0 %v130
    %v378 = vpop.f32.mrf.mxu0
    %v379 = vadd.f32 %v190, %v378
    %v380 = vpop.f32.mrf.mxu0
    %v381 = vadd.f32 %v190, %v380
    %382 = vmatmul.bf16.gmra.mxu0 %v132
    %v383 = vpop.f32.mrf.mxu0
    %v384 = vadd.f32 %v190, %v383
    %v385 = vpop.f32.mrf.mxu0
    %v386 = vadd.f32 %v190, %v385
    %387 = vmatmul.bf16.gmra.mxu0 %v134
    %v388 = vpop.f32.mrf.mxu0
    %v389 = vadd.f32 %v190, %v388
    %v390 = vpop.f32.mrf.mxu0
    %v391 = vadd.f32 %v190, %v390
    %392 = vmatmul.bf16.gmra.mxu0 %v136
    %v393 = vpop.f32.mrf.mxu0
    %v394 = vadd.f32 %v190, %v393
    %v395 = vpop.f32.mrf.mxu0
    %v396 = vadd.f32 %v190, %v395
    %397 = vmatmul.bf16.gmra.mxu0 %v138
    %v398 = vpop.f32.mrf.mxu0
    %v399 = vadd.f32 %v190, %v398
    %v400 = vpop.f32.mrf.mxu0
    %v401 = vadd.f32 %v190, %v400
    %402 = vmatmul.bf16.gmra.mxu0 %v140
    %v403 = vpop.f32.mrf.mxu0
    %v404 = vadd.f32 %v190, %v403
    %v405 = vpop.f32.mrf.mxu0
    %v406 = vadd.f32 %v190, %v405
    %407 = vmatmul.bf16.gmra.mxu0 %v142
    %v408 = vpop.f32.mrf.mxu0
    %v409 = vadd.f32 %v190, %v408
    %v410 = vpop.f32.mrf.mxu0
    %v411 = vadd.f32 %v190, %v410
    %412 = vmatmul.bf16.gmra.mxu0 %v144
    %v413 = vpop.f32.mrf.mxu0
    %v414 = vadd.f32 %v190, %v413
    %v415 = vpop.f32.mrf.mxu0
    %v416 = vadd.f32 %v190, %v415
    %417 = vmatmul.bf16.gmra.mxu0 %v146
    %v418 = vpop.f32.mrf.mxu0
    %v419 = vadd.f32 %v190, %v418
    %v420 = vpop.f32.mrf.mxu0
    %v421 = vadd.f32 %v190, %v420
    %422 = vmatmul.bf16.gmra.mxu0 %v148
    %v423 = vpop.f32.mrf.mxu0
    %v424 = vadd.f32 %v190, %v423
    %v425 = vpop.f32.mrf.mxu0
    %v426 = vadd.f32 %v190, %v425
    %427 = vmatmul.bf16.gmra.mxu0 %v150
    %v428 = vpop.f32.mrf.mxu0
    %v429 = vadd.f32 %v190, %v428
    %v430 = vpop.f32.mrf.mxu0
    %v431 = vadd.f32 %v190, %v430
    %432 = vmatmul.bf16.gmra.mxu0 %v152
    %v433 = vpop.f32.mrf.mxu0
    %v434 = vadd.f32 %v190, %v433
    %v435 = vpop.f32.mrf.mxu0
    %v436 = vadd.f32 %v190, %v435
    %437 = vmatmul.bf16.gmra.mxu0 %v154
    %v438 = vpop.f32.mrf.mxu0
    %v439 = vadd.f32 %v190, %v438
    %v440 = vpop.f32.mrf.mxu0
    %v441 = vadd.f32 %v190, %v440
    %442 = vdwg.mxu0
    %443 = vmatpush.bf16.msra.mxu0 %v320
    %444 = vmatpush.bf16.msra.mxu0 %v318
    %445 = vmatpush.bf16.msra.mxu0 %v316
    %446 = vmatpush.bf16.msra.mxu0 %v314
    %447 = vmatpush.bf16.msra.mxu0 %v312
    %448 = vmatpush.bf16.msra.mxu0 %v310
    %449 = vmatpush.bf16.msra.mxu0 %v308
    %450 = vmatpush.bf16.msra.mxu0 %v306
    %451 = vmatmul.bf16.gmra.mxu0 %v125
    %v452 = vpop.f32.mrf.mxu0
    %v453 = vadd.f32 %v364, %v452
    %v454 = vpop.f32.mrf.mxu0
    %v455 = vadd.f32 %v366, %v454
    %456 = vmatmul.bf16.gmra.mxu0 %v127
    %v457 = vpop.f32.mrf.mxu0
    %v458 = vadd.f32 %v369, %v457
    %v459 = vpop.f32.mrf.mxu0
    %v460 = vadd.f32 %v371, %v459
    %461 = vmatmul.bf16.gmra.mxu0 %v129
    %v462 = vpop.f32.mrf.mxu0
    %v463 = vadd.f32 %v374, %v462
    %v464 = vpop.f32.mrf.mxu0
    %v465 = vadd.f32 %v376, %v464
    %466 = vmatmul.bf16.gmra.mxu0 %v131
    %v467 = vpop.f32.mrf.mxu0
    %v468 = vadd.f32 %v379, %v467
    %v469 = vpop.f32.mrf.mxu0
    %v470 = vadd.f32 %v381, %v469
    %471 = vmatmul.bf16.gmra.mxu0 %v133
    %v472 = vpop.f32.mrf.mxu0
    %v473 = vadd.f32 %v384, %v472
    %v474 = vpop.f32.mrf.mxu0
    %v475 = vadd.f32 %v386, %v474
    %476 = vmatmul.bf16.gmra.mxu0 %v135
    %v477 = vpop.f32.mrf.mxu0
    %v478 = vadd.f32 %v389, %v477
    %v479 = vpop.f32.mrf.mxu0
    %v480 = vadd.f32 %v391, %v479
    %481 = vmatmul.bf16.gmra.mxu0 %v137
    %v482 = vpop.f32.mrf.mxu0
    %v483 = vadd.f32 %v394, %v482
    %v484 = vpop.f32.mrf.mxu0
    %v485 = vadd.f32 %v396, %v484
    %486 = vmatmul.bf16.gmra.mxu0 %v139
    %v487 = vpop.f32.mrf.mxu0
    %v488 = vadd.f32 %v399, %v487
    %v489 = vpop.f32.mrf.mxu0
    %v490 = vadd.f32 %v401, %v489
    %491 = vmatmul.bf16.gmra.mxu0 %v141
    %v492 = vpop.f32.mrf.mxu0
    %v493 = vadd.f32 %v404, %v492
    %v494 = vpop.f32.mrf.mxu0
    %v495 = vadd.f32 %v406, %v494
    %496 = vmatmul.bf16.gmra.mxu0 %v143
    %v497 = vpop.f32.mrf.mxu0
    %v498 = vadd.f32 %v409, %v497
    %v499 = vpop.f32.mrf.mxu0
    %v500 = vadd.f32 %v411, %v499
    %501 = vmatmul.bf16.gmra.mxu0 %v145
    %v502 = vpop.f32.mrf.mxu0
    %v503 = vadd.f32 %v414, %v502
    %v504 = vpop.f32.mrf.mxu0
    %v505 = vadd.f32 %v416, %v504
    %506 = vmatmul.bf16.gmra.mxu0 %v147
    %v507 = vpop.f32.mrf.mxu0
    %v508 = vadd.f32 %v419, %v507
    %v509 = vpop.f32.mrf.mxu0
    %v510 = vadd.f32 %v421, %v509
    %511 = vmatmul.bf16.gmra.mxu0 %v149
    %v512 = vpop.f32.mrf.mxu0
    %v513 = vadd.f32 %v424, %v512
    %v514 = vpop.f32.mrf.mxu0
    %v515 = vadd.f32 %v426, %v514
    %516 = vmatmul.bf16.gmra.mxu0 %v151
    %v517 = vpop.f32.mrf.mxu0
    %v518 = vadd.f32 %v429, %v517
    %v519 = vpop.f32.mrf.mxu0
    %v520 = vadd.f32 %v431, %v519
    %521 = vmatmul.bf16.gmra.mxu0 %v153
    %v522 = vpop.f32.mrf.mxu0
    %v523 = vadd.f32 %v434, %v522
    %v524 = vpop.f32.mrf.mxu0
    %v525 = vadd.f32 %v436, %v524
    %526 = vmatmul.bf16.gmra.mxu0 %v155
    %v527 = vpop.f32.mrf.mxu0
    %v528 = vadd.f32 %v439, %v527
    %v529 = vpop.f32.mrf.mxu0
    %v530 = vadd.f32 %v441, %v529
    %531 = vdwg.mxu0
    %532 = vmatpush.bf16.msra.mxu0 %v305
    %533 = vmatpush.bf16.msra.mxu0 %v303
    %534 = vmatpush.bf16.msra.mxu0 %v301
    %535 = vmatpush.bf16.msra.mxu0 %v299
    %536 = vmatpush.bf16.msra.mxu0 %v297
    %537 = vmatpush.bf16.msra.mxu0 %v295
    %538 = vmatpush.bf16.msra.mxu0 %v293
    %539 = vmatpush.bf16.msra.mxu0 %v291
    %540 = vmatmul.bf16.gmra.mxu0 %v124
    %v541 = vpop.f32.mrf.mxu0
    %v542 = vadd.f32 %v191, %v541
    %v543 = vpop.f32.mrf.mxu0
    %v544 = vadd.f32 %v191, %v543
    %545 = vmatmul.bf16.gmra.mxu0 %v126
    %v546 = vpop.f32.mrf.mxu0
    %v547 = vadd.f32 %v191, %v546
    %v548 = vpop.f32.mrf.mxu0
    %v549 = vadd.f32 %v191, %v548
    %550 = vmatmul.bf16.gmra.mxu0 %v128
    %v551 = vpop.f32.mrf.mxu0
    %v552 = vadd.f32 %v191, %v551
    %v553 = vpop.f32.mrf.mxu0
    %v554 = vadd.f32 %v191, %v553
    %555 = vmatmul.bf16.gmra.mxu0 %v130
    %v556 = vpop.f32.mrf.mxu0
    %v557 = vadd.f32 %v191, %v556
    %v558 = vpop.f32.mrf.mxu0
    %v559 = vadd.f32 %v191, %v558
    %560 = vmatmul.bf16.gmra.mxu0 %v132
    %v561 = vpop.f32.mrf.mxu0
    %v562 = vadd.f32 %v191, %v561
    %v563 = vpop.f32.mrf.mxu0
    %v564 = vadd.f32 %v191, %v563
    %565 = vmatmul.bf16.gmra.mxu0 %v134
    %v566 = vpop.f32.mrf.mxu0
    %v567 = vadd.f32 %v191, %v566
    %v568 = vpop.f32.mrf.mxu0
    %v569 = vadd.f32 %v191, %v568
    %570 = vmatmul.bf16.gmra.mxu0 %v136
    %v571 = vpop.f32.mrf.mxu0
    %v572 = vadd.f32 %v191, %v571
    %v573 = vpop.f32.mrf.mxu0
    %v574 = vadd.f32 %v191, %v573
    %575 = vmatmul.bf16.gmra.mxu0 %v138
    %v576 = vpop.f32.mrf.mxu0
    %v577 = vadd.f32 %v191, %v576
    %v578 = vpop.f32.mrf.mxu0
    %v579 = vadd.f32 %v191, %v578
    %580 = vmatmul.bf16.gmra.mxu0 %v140
    %v581 = vpop.f32.mrf.mxu0
    %v582 = vadd.f32 %v191, %v581
    %v583 = vpop.f32.mrf.mxu0
    %v584 = vadd.f32 %v191, %v583
    %585 = vmatmul.bf16.gmra.mxu0 %v142
    %v586 = vpop.f32.mrf.mxu0
    %v587 = vadd.f32 %v191, %v586
    %v588 = vpop.f32.mrf.mxu0
    %v589 = vadd.f32 %v191, %v588
    %590 = vmatmul.bf16.gmra.mxu0 %v144
    %v591 = vpop.f32.mrf.mxu0
    %v592 = vadd.f32 %v191, %v591
    %v593 = vpop.f32.mrf.mxu0
    %v594 = vadd.f32 %v191, %v593
    %595 = vmatmul.bf16.gmra.mxu0 %v146
    %v596 = vpop.f32.mrf.mxu0
    %v597 = vadd.f32 %v191, %v596
    %v598 = vpop.f32.mrf.mxu0
    %v599 = vadd.f32 %v191, %v598
    %600 = vmatmul.bf16.gmra.mxu0 %v148
    %v601 = vpop.f32.mrf.mxu0
    %v602 = vadd.f32 %v191, %v601
    %v603 = vpop.f32.mrf.mxu0
    %v604 = vadd.f32 %v191, %v603
    %605 = vmatmul.bf16.gmra.mxu0 %v150
    %v606 = vpop.f32.mrf.mxu0
    %v607 = vadd.f32 %v191, %v606
    %v608 = vpop.f32.mrf.mxu0
    %v609 = vadd.f32 %v191, %v608
    %610 = vmatmul.bf16.gmra.mxu0 %v152
    %v611 = vpop.f32.mrf.mxu0
    %v612 = vadd.f32 %v191, %v611
    %v613 = vpop.f32.mrf.mxu0
    %v614 = vadd.f32 %v191, %v613
    %615 = vmatmul.bf16.gmra.mxu0 %v154
    %v616 = vpop.f32.mrf.mxu0
    %v617 = vadd.f32 %v191, %v616
    %v618 = vpop.f32.mrf.mxu0
    %v619 = vadd.f32 %v191, %v618
    %620 = vdwg.mxu0
    %621 = vmatpush.bf16.msra.mxu0 %v321
    %622 = vmatpush.bf16.msra.mxu0 %v319
    %623 = vmatpush.bf16.msra.mxu0 %v317
    %624 = vmatpush.bf16.msra.mxu0 %v315
    %625 = vmatpush.bf16.msra.mxu0 %v313
    %626 = vmatpush.bf16.msra.mxu0 %v311
    %627 = vmatpush.bf16.msra.mxu0 %v309
    %628 = vmatpush.bf16.msra.mxu0 %v307
    %629 = vmatmul.bf16.gmra.mxu0 %v125
    %v630 = vpop.f32.mrf.mxu0
    %v631 = vadd.f32 %v542, %v630
    %v632 = vpop.f32.mrf.mxu0
    %v633 = vadd.f32 %v544, %v632
    %634 = vmatmul.bf16.gmra.mxu0 %v127
    %v635 = vpop.f32.mrf.mxu0
    %v636 = vadd.f32 %v547, %v635
    %v637 = vpop.f32.mrf.mxu0
    %v638 = vadd.f32 %v549, %v637
    %639 = vmatmul.bf16.gmra.mxu0 %v129
    %v640 = vpop.f32.mrf.mxu0
    %v641 = vadd.f32 %v552, %v640
    %v642 = vpop.f32.mrf.mxu0
    %v643 = vadd.f32 %v554, %v642
    %644 = vmatmul.bf16.gmra.mxu0 %v131
    %v645 = vpop.f32.mrf.mxu0
    %v646 = vadd.f32 %v557, %v645
    %v647 = vpop.f32.mrf.mxu0
    %v648 = vadd.f32 %v559, %v647
    %649 = vmatmul.bf16.gmra.mxu0 %v133
    %v650 = vpop.f32.mrf.mxu0
    %v651 = vadd.f32 %v562, %v650
    %v652 = vpop.f32.mrf.mxu0
    %v653 = vadd.f32 %v564, %v652
    %654 = vmatmul.bf16.gmra.mxu0 %v135
    %v655 = vpop.f32.mrf.mxu0
    %v656 = vadd.f32 %v567, %v655
    %v657 = vpop.f32.mrf.mxu0
    %v658 = vadd.f32 %v569, %v657
    %659 = vmatmul.bf16.gmra.mxu0 %v137
    %v660 = vpop.f32.mrf.mxu0
    %v661 = vadd.f32 %v572, %v660
    %v662 = vpop.f32.mrf.mxu0
    %v663 = vadd.f32 %v574, %v662
    %664 = vmatmul.bf16.gmra.mxu0 %v139
    %v665 = vpop.f32.mrf.mxu0
    %v666 = vadd.f32 %v577, %v665
    %v667 = vpop.f32.mrf.mxu0
    %v668 = vadd.f32 %v579, %v667
    %669 = vmatmul.bf16.gmra.mxu0 %v141
    %v670 = vpop.f32.mrf.mxu0
    %v671 = vadd.f32 %v582, %v670
    %v672 = vpop.f32.mrf.mxu0
    %v673 = vadd.f32 %v584, %v672
    %674 = vmatmul.bf16.gmra.mxu0 %v143
    %v675 = vpop.f32.mrf.mxu0
    %v676 = vadd.f32 %v587, %v675
    %v677 = vpop.f32.mrf.mxu0
    %v678 = vadd.f32 %v589, %v677
    %679 = vmatmul.bf16.gmra.mxu0 %v145
    %v680 = vpop.f32.mrf.mxu0
    %v681 = vadd.f32 %v592, %v680
    %v682 = vpop.f32.mrf.mxu0
    %v683 = vadd.f32 %v594, %v682
    %684 = vmatmul.bf16.gmra.mxu0 %v147
    %v685 = vpop.f32.mrf.mxu0
    %v686 = vadd.f32 %v597, %v685
    %v687 = vpop.f32.mrf.mxu0
    %v688 = vadd.f32 %v599, %v687
    %689 = vmatmul.bf16.gmra.mxu0 %v149
    %v690 = vpop.f32.mrf.mxu0
    %v691 = vadd.f32 %v602, %v690
    %v692 = vpop.f32.mrf.mxu0
    %v693 = vadd.f32 %v604, %v692
    %694 = vmatmul.bf16.gmra.mxu0 %v151
    %v695 = vpop.f32.mrf.mxu0
    %v696 = vadd.f32 %v607, %v695
    %v697 = vpop.f32.mrf.mxu0
    %v698 = vadd.f32 %v609, %v697
    %699 = vmatmul.bf16.gmra.mxu0 %v153
    %v700 = vpop.f32.mrf.mxu0
    %v701 = vadd.f32 %v612, %v700
    %v702 = vpop.f32.mrf.mxu0
    %v703 = vadd.f32 %v614, %v702
    %704 = vmatmul.bf16.gmra.mxu0 %v155
    %v705 = vpop.f32.mrf.mxu0
    %v706 = vadd.f32 %v617, %v705
    %v707 = vpop.f32.mrf.mxu0
    %v708 = vadd.f32 %v619, %v707
    %709 = vdwg.mxu0
    %v710 = vmax.f32 %v453, 0.0
    %v711 = vmax.f32 %v631, 0.0
    %v712 = vmax.f32 %v455, 0.0
    %v713 = vmax.f32 %v633, 0.0
    %v714 = vmax.f32 %v458, 0.0
    %v715 = vmax.f32 %v636, 0.0
    %v716 = vmax.f32 %v460, 0.0
    %v717 = vmax.f32 %v638, 0.0
    %v718 = vmax.f32 %v463, 0.0
    %v719 = vmax.f32 %v641, 0.0
    %v720 = vmax.f32 %v465, 0.0
    %v721 = vmax.f32 %v643, 0.0
    %v722 = vmax.f32 %v468, 0.0
    %v723 = vmax.f32 %v646, 0.0
    %v724 = vmax.f32 %v470, 0.0
    %v725 = vmax.f32 %v648, 0.0
    %v726 = vmax.f32 %v473, 0.0
    %v727 = vmax.f32 %v651, 0.0
    %v728 = vmax.f32 %v475, 0.0
    %v729 = vmax.f32 %v653, 0.0
    %v730 = vmax.f32 %v478, 0.0
    %v731 = vmax.f32 %v656, 0.0
    %v732 = vmax.f32 %v480, 0.0
    %v733 = vmax.f32 %v658, 0.0
    %v734 = vmax.f32 %v483, 0.0
    %v735 = vmax.f32 %v661, 0.0
    %v736 = vmax.f32 %v485, 0.0
    %v737 = vmax.f32 %v663, 0.0
    %v738 = vmax.f32 %v488, 0.0
    %v739 = vmax.f32 %v666, 0.0
    %v740 = vmax.f32 %v490, 0.0
    %v741 = vmax.f32 %v668, 0.0
    %v742 = vmax.f32 %v493, 0.0
    %v743 = vmax.f32 %v671, 0.0
    %v744 = vmax.f32 %v495, 0.0
    %v745 = vmax.f32 %v673, 0.0
    %v746 = vmax.f32 %v498, 0.0
    %v747 = vmax.f32 %v676, 0.0
    %v748 = vmax.f32 %v500, 0.0
    %v749 = vmax.f32 %v678, 0.0
    %v750 = vmax.f32 %v503, 0.0
    %v751 = vmax.f32 %v681, 0.0
    %v752 = vmax.f32 %v505, 0.0
    %v753 = vmax.f32 %v683, 0.0
    %v754 = vmax.f32 %v508, 0.0
    %v755 = vmax.f32 %v686, 0.0
    %v756 = vmax.f32 %v510, 0.0
    %v757 = vmax.f32 %v688, 0.0
    %v758 = vmax.f32 %v513, 0.0
    %v759 = vmax.f32 %v691, 0.0
    %v760 = vmax.f32 %v515, 0.0
    %v761 = vmax.f32 %v693, 0.0
    %v762 = vmax.f32 %v518, 0.0
    %v763 = vmax.f32 %v696, 0.0
    %v764 = vmax.f32 %v520, 0.0
    %v765 = vmax.f32 %v698, 0.0
    %v766 = vmax.f32 %v523, 0.0
    %v767 = vmax.f32 %v701, 0.0
    %v768 = vmax.f32 %v525, 0.0
    %v769 = vmax.f32 %v703, 0.0
    %v770 = vmax.f32 %v528, 0.0
    %v771 = vmax.f32 %v706, 0.0
    %v772 = vmax.f32 %v530, 0.0
    %v773 = vmax.f32 %v708, 0.0
    %v774 = vpack.c.bf16 %v712, %v710
    %v775 = vpack.c.bf16 %v713, %v711
    %v776 = vpack.c.bf16 %v716, %v714
    %v777 = vpack.c.bf16 %v717, %v715
    %v778 = vpack.c.bf16 %v720, %v718
    %v779 = vpack.c.bf16 %v721, %v719
    %v780 = vpack.c.bf16 %v724, %v722
    %v781 = vpack.c.bf16 %v725, %v723
    %v782 = vpack.c.bf16 %v728, %v726
    %v783 = vpack.c.bf16 %v729, %v727
    %v784 = vpack.c.bf16 %v732, %v730
    %v785 = vpack.c.bf16 %v733, %v731
    %v786 = vpack.c.bf16 %v736, %v734
    %v787 = vpack.c.bf16 %v737, %v735
    %v788 = vpack.c.bf16 %v740, %v738
    %v789 = vpack.c.bf16 %v741, %v739
    %v790 = vpack.c.bf16 %v744, %v742
    %v791 = vpack.c.bf16 %v745, %v743
    %v792 = vpack.c.bf16 %v748, %v746
    %v793 = vpack.c.bf16 %v749, %v747
    %v794 = vpack.c.bf16 %v752, %v750
    %v795 = vpack.c.bf16 %v753, %v751
    %v796 = vpack.c.bf16 %v756, %v754
    %v797 = vpack.c.bf16 %v757, %v755
    %v798 = vpack.c.bf16 %v760, %v758
    %v799 = vpack.c.bf16 %v761, %v759
    %v800 = vpack.c.bf16 %v764, %v762
    %v801 = vpack.c.bf16 %v765, %v763
    %v802 = vpack.c.bf16 %v768, %v766
    %v803 = vpack.c.bf16 %v769, %v767
    %v804 = vpack.c.bf16 %v772, %v770
    %v805 = vpack.c.bf16 %v773, %v771
    %s806 = scalar_lea.vmem [#allocation5], 256
    %v807 = vld [vmem:[%s806] sm:$0xff]
    %v808 = vld [vmem:[%s806 + $0x8] sm:$0xff]
    %v809 = vld [vmem:[%s806 + $0x10] sm:$0xff]
    %v810 = vld [vmem:[%s806 + $0x18] sm:$0xff]
    %v811 = vld [vmem:[%s806 + $0x20] sm:$0xff]
    %v812 = vld [vmem:[%s806 + $0x28] sm:$0xff]
    %v813 = vld [vmem:[%s806 + $0x30] sm:$0xff]
    %v814 = vld [vmem:[%s806 + $0x38] sm:$0xff]
    %v815 = vld [vmem:[%s806 + $0x40] sm:$0xff]
    %v816 = vld [vmem:[%s806 + $0x48] sm:$0xff]
    %v817 = vld [vmem:[%s806 + $0x50] sm:$0xff]
    %v818 = vld [vmem:[%s806 + $0x58] sm:$0xff]
    %v819 = vld [vmem:[%s806 + $0x60] sm:$0xff]
    %v820 = vld [vmem:[%s806 + $0x68] sm:$0xff]
    %v821 = vld [vmem:[%s806 + $0x70] sm:$0xff]
    %v822 = vld [vmem:[%s806 + $0x78] sm:$0xff]
    %v823 = vld [vmem:[%s806 + $0x80] sm:$0xff]
    %v824 = vld [vmem:[%s806 + $0x88] sm:$0xff]
    %v825 = vld [vmem:[%s806 + $0x90] sm:$0xff]
    %v826 = vld [vmem:[%s806 + $0x98] sm:$0xff]
    %v827 = vld [vmem:[%s806 + $0xa0] sm:$0xff]
    %v828 = vld [vmem:[%s806 + $0xa8] sm:$0xff]
    %v829 = vld [vmem:[%s806 + $0xb0] sm:$0xff]
    %v830 = vld [vmem:[%s806 + $0xb8] sm:$0xff]
    %v831 = vld [vmem:[%s806 + $0xc0] sm:$0xff]
    %v832 = vld [vmem:[%s806 + $0xc8] sm:$0xff]
    %v833 = vld [vmem:[%s806 + $0xd0] sm:$0xff]
    %v834 = vld [vmem:[%s806 + $0xd8] sm:$0xff]
    %v835 = vld [vmem:[%s806 + $0xe0] sm:$0xff]
    %v836 = vld [vmem:[%s806 + $0xe8] sm:$0xff]
    %v837 = vld [vmem:[%s806 + $0xf0] sm:$0xff]
    %v838 = vld [vmem:[%s806 + $0xf8] sm:$0xff]
    %s839 = scalar_lea.vmem [#allocation7], 1
    %v840 = vld [vmem:[%s839] ss:$4 sm:$0x3]
    %v842 = vperm.slane %v840, 0
    %v843 = vperm.slane %v840, 1
    %v878 = vunpack.c.l.b16 %v807
    %v879 = vunpack.c.h.b16 %v807
    %v880 = vunpack.c.l.b16 %v808
    %v881 = vunpack.c.h.b16 %v808
    %v882 = vunpack.c.l.b16 %v809
    %v883 = vunpack.c.h.b16 %v809
    %v884 = vunpack.c.l.b16 %v810
    %v885 = vunpack.c.h.b16 %v810
    %v886 = vunpack.c.l.b16 %v811
    %v887 = vunpack.c.h.b16 %v811
    %v888 = vunpack.c.l.b16 %v812
    %v889 = vunpack.c.h.b16 %v812
    %v890 = vunpack.c.l.b16 %v813
    %v891 = vunpack.c.h.b16 %v813
    %v892 = vunpack.c.l.b16 %v814
    %v893 = vunpack.c.h.b16 %v814
    %v894 = vunpack.c.l.b16 %v815
    %v895 = vunpack.c.h.b16 %v815
    %v896 = vunpack.c.l.b16 %v816
    %v897 = vunpack.c.h.b16 %v816
    %v898 = vunpack.c.l.b16 %v817
    %v899 = vunpack.c.h.b16 %v817
    %v900 = vunpack.c.l.b16 %v818
    %v901 = vunpack.c.h.b16 %v818
    %v902 = vunpack.c.l.b16 %v819
    %v903 = vunpack.c.h.b16 %v819
    %v904 = vunpack.c.l.b16 %v820
    %v905 = vunpack.c.h.b16 %v820
    %v906 = vunpack.c.l.b16 %v821
    %v907 = vunpack.c.h.b16 %v821
    %v908 = vunpack.c.l.b16 %v822
    %v909 = vunpack.c.h.b16 %v822
    %v910 = vunpack.c.l.b16 %v823
    %v911 = vunpack.c.h.b16 %v823
    %v912 = vunpack.c.l.b16 %v824
    %v913 = vunpack.c.h.b16 %v824
    %v914 = vunpack.c.l.b16 %v825
    %v915 = vunpack.c.h.b16 %v825
    %v916 = vunpack.c.l.b16 %v826
    %v917 = vunpack.c.h.b16 %v826
    %v918 = vunpack.c.l.b16 %v827
    %v919 = vunpack.c.h.b16 %v827
    %v920 = vunpack.c.l.b16 %v828
    %v921 = vunpack.c.h.b16 %v828
    %v922 = vunpack.c.l.b16 %v829
    %v923 = vunpack.c.h.b16 %v829
    %v924 = vunpack.c.l.b16 %v830
    %v925 = vunpack.c.h.b16 %v830
    %v926 = vunpack.c.l.b16 %v831
    %v927 = vunpack.c.h.b16 %v831
    %v928 = vunpack.c.l.b16 %v832
    %v929 = vunpack.c.h.b16 %v832
    %v930 = vunpack.c.l.b16 %v833
    %v931 = vunpack.c.h.b16 %v833
    %v932 = vunpack.c.l.b16 %v834
    %v933 = vunpack.c.h.b16 %v834
    %v934 = vunpack.c.l.b16 %v835
    %v935 = vunpack.c.h.b16 %v835
    %v936 = vunpack.c.l.b16 %v836
    %v937 = vunpack.c.h.b16 %v836
    %v938 = vunpack.c.l.b16 %v837
    %v939 = vunpack.c.h.b16 %v837
    %v940 = vunpack.c.l.b16 %v838
    %v941 = vunpack.c.h.b16 %v838
    %v942 = vpack.c.b16 %v880, %v878
    %v943 = vpack.c.b16 %v881, %v879
    %v944 = vpack.c.b16 %v884, %v882
    %v945 = vpack.c.b16 %v885, %v883
    %v946 = vpack.c.b16 %v888, %v886
    %v947 = vpack.c.b16 %v889, %v887
    %v948 = vpack.c.b16 %v892, %v890
    %v949 = vpack.c.b16 %v893, %v891
    %v950 = vpack.c.b16 %v896, %v894
    %v951 = vpack.c.b16 %v897, %v895
    %v952 = vpack.c.b16 %v900, %v898
    %v953 = vpack.c.b16 %v901, %v899
    %v954 = vpack.c.b16 %v904, %v902
    %v955 = vpack.c.b16 %v905, %v903
    %v956 = vpack.c.b16 %v908, %v906
    %v957 = vpack.c.b16 %v909, %v907
    %v958 = vpack.c.b16 %v912, %v910
    %v959 = vpack.c.b16 %v913, %v911
    %v960 = vpack.c.b16 %v916, %v914
    %v961 = vpack.c.b16 %v917, %v915
    %v962 = vpack.c.b16 %v920, %v918
    %v963 = vpack.c.b16 %v921, %v919
    %v964 = vpack.c.b16 %v924, %v922
    %v965 = vpack.c.b16 %v925, %v923
    %v966 = vpack.c.b16 %v928, %v926
    %v967 = vpack.c.b16 %v929, %v927
    %v968 = vpack.c.b16 %v932, %v930
    %v969 = vpack.c.b16 %v933, %v931
    %v970 = vpack.c.b16 %v936, %v934
    %v971 = vpack.c.b16 %v937, %v935
    %v972 = vpack.c.b16 %v940, %v938
    %v973 = vpack.c.b16 %v941, %v939
    %1006 = vmatpush.bf16.msra.mxu0 %v956
    %1007 = vmatpush.bf16.msra.mxu0 %v954
    %1008 = vmatpush.bf16.msra.mxu0 %v952
    %1009 = vmatpush.bf16.msra.mxu0 %v950
    %1010 = vmatpush.bf16.msra.mxu0 %v948
    %1011 = vmatpush.bf16.msra.mxu0 %v946
    %1012 = vmatpush.bf16.msra.mxu0 %v944
    %1013 = vmatpush.bf16.msra.mxu0 %v942
    %1014 = vmatmul.bf16.gmra.mxu0 %v774
    %v1015 = vpop.f32.mrf.mxu0
    %v1016 = vadd.f32 %v842, %v1015
    %v1017 = vpop.f32.mrf.mxu0
    %v1018 = vadd.f32 %v842, %v1017
    %1019 = vmatmul.bf16.gmra.mxu0 %v776
    %v1020 = vpop.f32.mrf.mxu0
    %v1021 = vadd.f32 %v842, %v1020
    %v1022 = vpop.f32.mrf.mxu0
    %v1023 = vadd.f32 %v842, %v1022
    %1024 = vmatmul.bf16.gmra.mxu0 %v778
    %v1025 = vpop.f32.mrf.mxu0
    %v1026 = vadd.f32 %v842, %v1025
    %v1027 = vpop.f32.mrf.mxu0
    %v1028 = vadd.f32 %v842, %v1027
    %1029 = vmatmul.bf16.gmra.mxu0 %v780
    %v1030 = vpop.f32.mrf.mxu0
    %v1031 = vadd.f32 %v842, %v1030
    %v1032 = vpop.f32.mrf.mxu0
    %v1033 = vadd.f32 %v842, %v1032
    %1034 = vmatmul.bf16.gmra.mxu0 %v782
    %v1035 = vpop.f32.mrf.mxu0
    %v1036 = vadd.f32 %v842, %v1035
    %v1037 = vpop.f32.mrf.mxu0
    %v1038 = vadd.f32 %v842, %v1037
    %1039 = vmatmul.bf16.gmra.mxu0 %v784
    %v1040 = vpop.f32.mrf.mxu0
    %v1041 = vadd.f32 %v842, %v1040
    %v1042 = vpop.f32.mrf.mxu0
    %v1043 = vadd.f32 %v842, %v1042
    %1044 = vmatmul.bf16.gmra.mxu0 %v786
    %v1045 = vpop.f32.mrf.mxu0
    %v1046 = vadd.f32 %v842, %v1045
    %v1047 = vpop.f32.mrf.mxu0
    %v1048 = vadd.f32 %v842, %v1047
    %1049 = vmatmul.bf16.gmra.mxu0 %v788
    %v1050 = vpop.f32.mrf.mxu0
    %v1051 = vadd.f32 %v842, %v1050
    %v1052 = vpop.f32.mrf.mxu0
    %v1053 = vadd.f32 %v842, %v1052
    %1054 = vmatmul.bf16.gmra.mxu0 %v790
    %v1055 = vpop.f32.mrf.mxu0
    %v1056 = vadd.f32 %v842, %v1055
    %v1057 = vpop.f32.mrf.mxu0
    %v1058 = vadd.f32 %v842, %v1057
    %1059 = vmatmul.bf16.gmra.mxu0 %v792
    %v1060 = vpop.f32.mrf.mxu0
    %v1061 = vadd.f32 %v842, %v1060
    %v1062 = vpop.f32.mrf.mxu0
    %v1063 = vadd.f32 %v842, %v1062
    %1064 = vmatmul.bf16.gmra.mxu0 %v794
    %v1065 = vpop.f32.mrf.mxu0
    %v1066 = vadd.f32 %v842, %v1065
    %v1067 = vpop.f32.mrf.mxu0
    %v1068 = vadd.f32 %v842, %v1067
    %1069 = vmatmul.bf16.gmra.mxu0 %v796
    %v1070 = vpop.f32.mrf.mxu0
    %v1071 = vadd.f32 %v842, %v1070
    %v1072 = vpop.f32.mrf.mxu0
    %v1073 = vadd.f32 %v842, %v1072
    %1074 = vmatmul.bf16.gmra.mxu0 %v798
    %v1075 = vpop.f32.mrf.mxu0
    %v1076 = vadd.f32 %v842, %v1075
    %v1077 = vpop.f32.mrf.mxu0
    %v1078 = vadd.f32 %v842, %v1077
    %1079 = vmatmul.bf16.gmra.mxu0 %v800
    %v1080 = vpop.f32.mrf.mxu0
    %v1081 = vadd.f32 %v842, %v1080
    %v1082 = vpop.f32.mrf.mxu0
    %v1083 = vadd.f32 %v842, %v1082
    %1084 = vmatmul.bf16.gmra.mxu0 %v802
    %v1085 = vpop.f32.mrf.mxu0
    %v1086 = vadd.f32 %v842, %v1085
    %v1087 = vpop.f32.mrf.mxu0
    %v1088 = vadd.f32 %v842, %v1087
    %1089 = vmatmul.bf16.gmra.mxu0 %v804
    %v1090 = vpop.f32.mrf.mxu0
    %v1091 = vadd.f32 %v842, %v1090
    %v1092 = vpop.f32.mrf.mxu0
    %v1093 = vadd.f32 %v842, %v1092
    %1094 = vdwg.mxu0
    %1095 = vmatpush.bf16.msra.mxu0 %v972
    %1096 = vmatpush.bf16.msra.mxu0 %v970
    %1097 = vmatpush.bf16.msra.mxu0 %v968
    %1098 = vmatpush.bf16.msra.mxu0 %v966
    %1099 = vmatpush.bf16.msra.mxu0 %v964
    %1100 = vmatpush.bf16.msra.mxu0 %v962
    %1101 = vmatpush.bf16.msra.mxu0 %v960
    %1102 = vmatpush.bf16.msra.mxu0 %v958
    %1103 = vmatmul.bf16.gmra.mxu0 %v775
    %v1104 = vpop.f32.mrf.mxu0
    %v1105 = vadd.f32 %v1016, %v1104
    %v1106 = vpop.f32.mrf.mxu0
    %v1107 = vadd.f32 %v1018, %v1106
    %1108 = vmatmul.bf16.gmra.mxu0 %v777
    %v1109 = vpop.f32.mrf.mxu0
    %v1110 = vadd.f32 %v1021, %v1109
    %v1111 = vpop.f32.mrf.mxu0
    %v1112 = vadd.f32 %v1023, %v1111
    %1113 = vmatmul.bf16.gmra.mxu0 %v779
    %v1114 = vpop.f32.mrf.mxu0
    %v1115 = vadd.f32 %v1026, %v1114
    %v1116 = vpop.f32.mrf.mxu0
    %v1117 = vadd.f32 %v1028, %v1116
    %1118 = vmatmul.bf16.gmra.mxu0 %v781
    %v1119 = vpop.f32.mrf.mxu0
    %v1120 = vadd.f32 %v1031, %v1119
    %v1121 = vpop.f32.mrf.mxu0
    %v1122 = vadd.f32 %v1033, %v1121
    %1123 = vmatmul.bf16.gmra.mxu0 %v783
    %v1124 = vpop.f32.mrf.mxu0
    %v1125 = vadd.f32 %v1036, %v1124
    %v1126 = vpop.f32.mrf.mxu0
    %v1127 = vadd.f32 %v1038, %v1126
    %1128 = vmatmul.bf16.gmra.mxu0 %v785
    %v1129 = vpop.f32.mrf.mxu0
    %v1130 = vadd.f32 %v1041, %v1129
    %v1131 = vpop.f32.mrf.mxu0
    %v1132 = vadd.f32 %v1043, %v1131
    %1133 = vmatmul.bf16.gmra.mxu0 %v787
    %v1134 = vpop.f32.mrf.mxu0
    %v1135 = vadd.f32 %v1046, %v1134
    %v1136 = vpop.f32.mrf.mxu0
    %v1137 = vadd.f32 %v1048, %v1136
    %1138 = vmatmul.bf16.gmra.mxu0 %v789
    %v1139 = vpop.f32.mrf.mxu0
    %v1140 = vadd.f32 %v1051, %v1139
    %v1141 = vpop.f32.mrf.mxu0
    %v1142 = vadd.f32 %v1053, %v1141
    %1143 = vmatmul.bf16.gmra.mxu0 %v791
    %v1144 = vpop.f32.mrf.mxu0
    %v1145 = vadd.f32 %v1056, %v1144
    %v1146 = vpop.f32.mrf.mxu0
    %v1147 = vadd.f32 %v1058, %v1146
    %1148 = vmatmul.bf16.gmra.mxu0 %v793
    %v1149 = vpop.f32.mrf.mxu0
    %v1150 = vadd.f32 %v1061, %v1149
    %v1151 = vpop.f32.mrf.mxu0
    %v1152 = vadd.f32 %v1063, %v1151
    %1153 = vmatmul.bf16.gmra.mxu0 %v795
    %v1154 = vpop.f32.mrf.mxu0
    %v1155 = vadd.f32 %v1066, %v1154
    %v1156 = vpop.f32.mrf.mxu0
    %v1157 = vadd.f32 %v1068, %v1156
    %1158 = vmatmul.bf16.gmra.mxu0 %v797
    %v1159 = vpop.f32.mrf.mxu0
    %v1160 = vadd.f32 %v1071, %v1159
    %v1161 = vpop.f32.mrf.mxu0
    %v1162 = vadd.f32 %v1073, %v1161
    %1163 = vmatmul.bf16.gmra.mxu0 %v799
    %v1164 = vpop.f32.mrf.mxu0
    %v1165 = vadd.f32 %v1076, %v1164
    %v1166 = vpop.f32.mrf.mxu0
    %v1167 = vadd.f32 %v1078, %v1166
    %1168 = vmatmul.bf16.gmra.mxu0 %v801
    %v1169 = vpop.f32.mrf.mxu0
    %v1170 = vadd.f32 %v1081, %v1169
    %v1171 = vpop.f32.mrf.mxu0
    %v1172 = vadd.f32 %v1083, %v1171
    %1173 = vmatmul.bf16.gmra.mxu0 %v803
    %v1174 = vpop.f32.mrf.mxu0
    %v1175 = vadd.f32 %v1086, %v1174
    %v1176 = vpop.f32.mrf.mxu0
    %v1177 = vadd.f32 %v1088, %v1176
    %1178 = vmatmul.bf16.gmra.mxu0 %v805
    %v1179 = vpop.f32.mrf.mxu0
    %v1180 = vadd.f32 %v1091, %v1179
    %v1181 = vpop.f32.mrf.mxu0
    %v1182 = vadd.f32 %v1093, %v1181
    %1183 = vdwg.mxu0
    %1184 = vmatpush.bf16.msra.mxu0 %v957
    %1185 = vmatpush.bf16.msra.mxu0 %v955
    %1186 = vmatpush.bf16.msra.mxu0 %v953
    %1187 = vmatpush.bf16.msra.mxu0 %v951
    %1188 = vmatpush.bf16.msra.mxu0 %v949
    %1189 = vmatpush.bf16.msra.mxu0 %v947
    %1190 = vmatpush.bf16.msra.mxu0 %v945
    %1191 = vmatpush.bf16.msra.mxu0 %v943
    %1192 = vmatmul.bf16.gmra.mxu0 %v774
    %v1193 = vpop.f32.mrf.mxu0
    %v1194 = vadd.f32 %v843, %v1193
    %v1195 = vpop.f32.mrf.mxu0
    %v1196 = vadd.f32 %v843, %v1195
    %1197 = vmatmul.bf16.gmra.mxu0 %v776
    %v1198 = vpop.f32.mrf.mxu0
    %v1199 = vadd.f32 %v843, %v1198
    %v1200 = vpop.f32.mrf.mxu0
    %v1201 = vadd.f32 %v843, %v1200
    %1202 = vmatmul.bf16.gmra.mxu0 %v778
    %v1203 = vpop.f32.mrf.mxu0
    %v1204 = vadd.f32 %v843, %v1203
    %v1205 = vpop.f32.mrf.mxu0
    %v1206 = vadd.f32 %v843, %v1205
    %1207 = vmatmul.bf16.gmra.mxu0 %v780
    %v1208 = vpop.f32.mrf.mxu0
    %v1209 = vadd.f32 %v843, %v1208
    %v1210 = vpop.f32.mrf.mxu0
    %v1211 = vadd.f32 %v843, %v1210
    %1212 = vmatmul.bf16.gmra.mxu0 %v782
    %v1213 = vpop.f32.mrf.mxu0
    %v1214 = vadd.f32 %v843, %v1213
    %v1215 = vpop.f32.mrf.mxu0
    %v1216 = vadd.f32 %v843, %v1215
    %1217 = vmatmul.bf16.gmra.mxu0 %v784
    %v1218 = vpop.f32.mrf.mxu0
    %v1219 = vadd.f32 %v843, %v1218
    %v1220 = vpop.f32.mrf.mxu0
    %v1221 = vadd.f32 %v843, %v1220
    %1222 = vmatmul.bf16.gmra.mxu0 %v786
    %v1223 = vpop.f32.mrf.mxu0
    %v1224 = vadd.f32 %v843, %v1223
    %v1225 = vpop.f32.mrf.mxu0
    %v1226 = vadd.f32 %v843, %v1225
    %1227 = vmatmul.bf16.gmra.mxu0 %v788
    %v1228 = vpop.f32.mrf.mxu0
    %v1229 = vadd.f32 %v843, %v1228
    %v1230 = vpop.f32.mrf.mxu0
    %v1231 = vadd.f32 %v843, %v1230
    %1232 = vmatmul.bf16.gmra.mxu0 %v790
    %v1233 = vpop.f32.mrf.mxu0
    %v1234 = vadd.f32 %v843, %v1233
    %v1235 = vpop.f32.mrf.mxu0
    %v1236 = vadd.f32 %v843, %v1235
    %1237 = vmatmul.bf16.gmra.mxu0 %v792
    %v1238 = vpop.f32.mrf.mxu0
    %v1239 = vadd.f32 %v843, %v1238
    %v1240 = vpop.f32.mrf.mxu0
    %v1241 = vadd.f32 %v843, %v1240
    %1242 = vmatmul.bf16.gmra.mxu0 %v794
    %v1243 = vpop.f32.mrf.mxu0
    %v1244 = vadd.f32 %v843, %v1243
    %v1245 = vpop.f32.mrf.mxu0
    %v1246 = vadd.f32 %v843, %v1245
    %1247 = vmatmul.bf16.gmra.mxu0 %v796
    %v1248 = vpop.f32.mrf.mxu0
    %v1249 = vadd.f32 %v843, %v1248
    %v1250 = vpop.f32.mrf.mxu0
    %v1251 = vadd.f32 %v843, %v1250
    %1252 = vmatmul.bf16.gmra.mxu0 %v798
    %v1253 = vpop.f32.mrf.mxu0
    %v1254 = vadd.f32 %v843, %v1253
    %v1255 = vpop.f32.mrf.mxu0
    %v1256 = vadd.f32 %v843, %v1255
    %1257 = vmatmul.bf16.gmra.mxu0 %v800
    %v1258 = vpop.f32.mrf.mxu0
    %v1259 = vadd.f32 %v843, %v1258
    %v1260 = vpop.f32.mrf.mxu0
    %v1261 = vadd.f32 %v843, %v1260
    %1262 = vmatmul.bf16.gmra.mxu0 %v802
    %v1263 = vpop.f32.mrf.mxu0
    %v1264 = vadd.f32 %v843, %v1263
    %v1265 = vpop.f32.mrf.mxu0
    %v1266 = vadd.f32 %v843, %v1265
    %1267 = vmatmul.bf16.gmra.mxu0 %v804
    %v1268 = vpop.f32.mrf.mxu0
    %v1269 = vadd.f32 %v843, %v1268
    %v1270 = vpop.f32.mrf.mxu0
    %v1271 = vadd.f32 %v843, %v1270
    %1272 = vdwg.mxu0
    %1273 = vmatpush.bf16.msra.mxu0 %v973
    %1274 = vmatpush.bf16.msra.mxu0 %v971
    %1275 = vmatpush.bf16.msra.mxu0 %v969
    %1276 = vmatpush.bf16.msra.mxu0 %v967
    %1277 = vmatpush.bf16.msra.mxu0 %v965
    %1278 = vmatpush.bf16.msra.mxu0 %v963
    %1279 = vmatpush.bf16.msra.mxu0 %v961
    %1280 = vmatpush.bf16.msra.mxu0 %v959
    %1281 = vmatmul.bf16.gmra.mxu0 %v775
    %v1282 = vpop.f32.mrf.mxu0
    %v1283 = vadd.f32 %v1194, %v1282
    %v1284 = vpop.f32.mrf.mxu0
    %v1285 = vadd.f32 %v1196, %v1284
    %1286 = vmatmul.bf16.gmra.mxu0 %v777
    %v1287 = vpop.f32.mrf.mxu0
    %v1288 = vadd.f32 %v1199, %v1287
    %v1289 = vpop.f32.mrf.mxu0
    %v1290 = vadd.f32 %v1201, %v1289
    %1291 = vmatmul.bf16.gmra.mxu0 %v779
    %v1292 = vpop.f32.mrf.mxu0
    %v1293 = vadd.f32 %v1204, %v1292
    %v1294 = vpop.f32.mrf.mxu0
    %v1295 = vadd.f32 %v1206, %v1294
    %1296 = vmatmul.bf16.gmra.mxu0 %v781
    %v1297 = vpop.f32.mrf.mxu0
    %v1298 = vadd.f32 %v1209, %v1297
    %v1299 = vpop.f32.mrf.mxu0
    %v1300 = vadd.f32 %v1211, %v1299
    %1301 = vmatmul.bf16.gmra.mxu0 %v783
    %v1302 = vpop.f32.mrf.mxu0
    %v1303 = vadd.f32 %v1214, %v1302
    %v1304 = vpop.f32.mrf.mxu0
    %v1305 = vadd.f32 %v1216, %v1304
    %1306 = vmatmul.bf16.gmra.mxu0 %v785
    %v1307 = vpop.f32.mrf.mxu0
    %v1308 = vadd.f32 %v1219, %v1307
    %v1309 = vpop.f32.mrf.mxu0
    %v1310 = vadd.f32 %v1221, %v1309
    %1311 = vmatmul.bf16.gmra.mxu0 %v787
    %v1312 = vpop.f32.mrf.mxu0
    %v1313 = vadd.f32 %v1224, %v1312
    %v1314 = vpop.f32.mrf.mxu0
    %v1315 = vadd.f32 %v1226, %v1314
    %1316 = vmatmul.bf16.gmra.mxu0 %v789
    %v1317 = vpop.f32.mrf.mxu0
    %v1318 = vadd.f32 %v1229, %v1317
    %v1319 = vpop.f32.mrf.mxu0
    %v1320 = vadd.f32 %v1231, %v1319
    %1321 = vmatmul.bf16.gmra.mxu0 %v791
    %v1322 = vpop.f32.mrf.mxu0
    %v1323 = vadd.f32 %v1234, %v1322
    %v1324 = vpop.f32.mrf.mxu0
    %v1325 = vadd.f32 %v1236, %v1324
    %1326 = vmatmul.bf16.gmra.mxu0 %v793
    %v1327 = vpop.f32.mrf.mxu0
    %v1328 = vadd.f32 %v1239, %v1327
    %v1329 = vpop.f32.mrf.mxu0
    %v1330 = vadd.f32 %v1241, %v1329
    %1331 = vmatmul.bf16.gmra.mxu0 %v795
    %v1332 = vpop.f32.mrf.mxu0
    %v1333 = vadd.f32 %v1244, %v1332
    %v1334 = vpop.f32.mrf.mxu0
    %v1335 = vadd.f32 %v1246, %v1334
    %1336 = vmatmul.bf16.gmra.mxu0 %v797
    %v1337 = vpop.f32.mrf.mxu0
    %v1338 = vadd.f32 %v1249, %v1337
    %v1339 = vpop.f32.mrf.mxu0
    %v1340 = vadd.f32 %v1251, %v1339
    %1341 = vmatmul.bf16.gmra.mxu0 %v799
    %v1342 = vpop.f32.mrf.mxu0
    %v1343 = vadd.f32 %v1254, %v1342
    %v1344 = vpop.f32.mrf.mxu0
    %v1345 = vadd.f32 %v1256, %v1344
    %1346 = vmatmul.bf16.gmra.mxu0 %v801
    %v1347 = vpop.f32.mrf.mxu0
    %v1348 = vadd.f32 %v1259, %v1347
    %v1349 = vpop.f32.mrf.mxu0
    %v1350 = vadd.f32 %v1261, %v1349
    %1351 = vmatmul.bf16.gmra.mxu0 %v803
    %v1352 = vpop.f32.mrf.mxu0
    %v1353 = vadd.f32 %v1264, %v1352
    %v1354 = vpop.f32.mrf.mxu0
    %v1355 = vadd.f32 %v1266, %v1354
    %1356 = vmatmul.bf16.gmra.mxu0 %v805
    %v1357 = vpop.f32.mrf.mxu0
    %v1358 = vadd.f32 %v1269, %v1357
    %v1359 = vpop.f32.mrf.mxu0
    %v1360 = vadd.f32 %v1271, %v1359
    %1361 = vdwg.mxu0
    %v1362 = vmax.f32 %v1105, 0.0
    %v1363 = vmax.f32 %v1283, 0.0
    %v1364 = vmax.f32 %v1107, 0.0
    %v1365 = vmax.f32 %v1285, 0.0
    %v1366 = vmax.f32 %v1110, 0.0
    %v1367 = vmax.f32 %v1288, 0.0
    %v1368 = vmax.f32 %v1112, 0.0
    %v1369 = vmax.f32 %v1290, 0.0
    %v1370 = vmax.f32 %v1115, 0.0
    %v1371 = vmax.f32 %v1293, 0.0
    %v1372 = vmax.f32 %v1117, 0.0
    %v1373 = vmax.f32 %v1295, 0.0
    %v1374 = vmax.f32 %v1120, 0.0
    %v1375 = vmax.f32 %v1298, 0.0
    %v1376 = vmax.f32 %v1122, 0.0
    %v1377 = vmax.f32 %v1300, 0.0
    %v1378 = vmax.f32 %v1125, 0.0
    %v1379 = vmax.f32 %v1303, 0.0
    %v1380 = vmax.f32 %v1127, 0.0
    %v1381 = vmax.f32 %v1305, 0.0
    %v1382 = vmax.f32 %v1130, 0.0
    %v1383 = vmax.f32 %v1308, 0.0
    %v1384 = vmax.f32 %v1132, 0.0
    %v1385 = vmax.f32 %v1310, 0.0
    %v1386 = vmax.f32 %v1135, 0.0
    %v1387 = vmax.f32 %v1313, 0.0
    %v1388 = vmax.f32 %v1137, 0.0
    %v1389 = vmax.f32 %v1315, 0.0
    %v1390 = vmax.f32 %v1140, 0.0
    %v1391 = vmax.f32 %v1318, 0.0
    %v1392 = vmax.f32 %v1142, 0.0
    %v1393 = vmax.f32 %v1320, 0.0
    %v1394 = vmax.f32 %v1145, 0.0
    %v1395 = vmax.f32 %v1323, 0.0
    %v1396 = vmax.f32 %v1147, 0.0
    %v1397 = vmax.f32 %v1325, 0.0
    %v1398 = vmax.f32 %v1150, 0.0
    %v1399 = vmax.f32 %v1328, 0.0
    %v1400 = vmax.f32 %v1152, 0.0
    %v1401 = vmax.f32 %v1330, 0.0
    %v1402 = vmax.f32 %v1155, 0.0
    %v1403 = vmax.f32 %v1333, 0.0
    %v1404 = vmax.f32 %v1157, 0.0
    %v1405 = vmax.f32 %v1335, 0.0
    %v1406 = vmax.f32 %v1160, 0.0
    %v1407 = vmax.f32 %v1338, 0.0
    %v1408 = vmax.f32 %v1162, 0.0
    %v1409 = vmax.f32 %v1340, 0.0
    %v1410 = vmax.f32 %v1165, 0.0
    %v1411 = vmax.f32 %v1343, 0.0
    %v1412 = vmax.f32 %v1167, 0.0
    %v1413 = vmax.f32 %v1345, 0.0
    %v1414 = vmax.f32 %v1170, 0.0
    %v1415 = vmax.f32 %v1348, 0.0
    %v1416 = vmax.f32 %v1172, 0.0
    %v1417 = vmax.f32 %v1350, 0.0
    %v1418 = vmax.f32 %v1175, 0.0
    %v1419 = vmax.f32 %v1353, 0.0
    %v1420 = vmax.f32 %v1177, 0.0
    %v1421 = vmax.f32 %v1355, 0.0
    %v1422 = vmax.f32 %v1180, 0.0
    %v1423 = vmax.f32 %v1358, 0.0
    %v1424 = vmax.f32 %v1182, 0.0
    %v1425 = vmax.f32 %v1360, 0.0
    %v1426 = vpack.c.bf16 %v1364, %v1362
    %v1427 = vpack.c.bf16 %v1365, %v1363
    %v1428 = vpack.c.bf16 %v1368, %v1366
    %v1429 = vpack.c.bf16 %v1369, %v1367
    %v1430 = vpack.c.bf16 %v1372, %v1370
    %v1431 = vpack.c.bf16 %v1373, %v1371
    %v1432 = vpack.c.bf16 %v1376, %v1374
    %v1433 = vpack.c.bf16 %v1377, %v1375
    %v1434 = vpack.c.bf16 %v1380, %v1378
    %v1435 = vpack.c.bf16 %v1381, %v1379
    %v1436 = vpack.c.bf16 %v1384, %v1382
    %v1437 = vpack.c.bf16 %v1385, %v1383
    %v1438 = vpack.c.bf16 %v1388, %v1386
    %v1439 = vpack.c.bf16 %v1389, %v1387
    %v1440 = vpack.c.bf16 %v1392, %v1390
    %v1441 = vpack.c.bf16 %v1393, %v1391
    %v1442 = vpack.c.bf16 %v1396, %v1394
    %v1443 = vpack.c.bf16 %v1397, %v1395
    %v1444 = vpack.c.bf16 %v1400, %v1398
    %v1445 = vpack.c.bf16 %v1401, %v1399
    %v1446 = vpack.c.bf16 %v1404, %v1402
    %v1447 = vpack.c.bf16 %v1405, %v1403
    %v1448 = vpack.c.bf16 %v1408, %v1406
    %v1449 = vpack.c.bf16 %v1409, %v1407
    %v1450 = vpack.c.bf16 %v1412, %v1410
    %v1451 = vpack.c.bf16 %v1413, %v1411
    %v1452 = vpack.c.bf16 %v1416, %v1414
    %v1453 = vpack.c.bf16 %v1417, %v1415
    %v1454 = vpack.c.bf16 %v1420, %v1418
    %v1455 = vpack.c.bf16 %v1421, %v1419
    %v1456 = vpack.c.bf16 %v1424, %v1422
    %v1457 = vpack.c.bf16 %v1425, %v1423
    %s1458 = scalar_lea.vmem [#allocation5], 512
    %v1459 = vld [vmem:[%s1458] sm:$0xff]
    %v1460 = vld [vmem:[%s1458 + $0x8] sm:$0xff]
    %v1461 = vld [vmem:[%s1458 + $0x10] sm:$0xff]
    %v1462 = vld [vmem:[%s1458 + $0x18] sm:$0xff]
    %v1463 = vld [vmem:[%s1458 + $0x20] sm:$0xff]
    %v1464 = vld [vmem:[%s1458 + $0x28] sm:$0xff]
    %v1465 = vld [vmem:[%s1458 + $0x30] sm:$0xff]
    %v1466 = vld [vmem:[%s1458 + $0x38] sm:$0xff]
    %v1467 = vld [vmem:[%s1458 + $0x40] sm:$0xff]
    %v1468 = vld [vmem:[%s1458 + $0x48] sm:$0xff]
    %v1469 = vld [vmem:[%s1458 + $0x50] sm:$0xff]
    %v1470 = vld [vmem:[%s1458 + $0x58] sm:$0xff]
    %v1471 = vld [vmem:[%s1458 + $0x60] sm:$0xff]
    %v1472 = vld [vmem:[%s1458 + $0x68] sm:$0xff]
    %v1473 = vld [vmem:[%s1458 + $0x70] sm:$0xff]
    %v1474 = vld [vmem:[%s1458 + $0x78] sm:$0xff]
    %v1475 = vld [vmem:[%s1458 + $0x80] sm:$0xff]
    %v1476 = vld [vmem:[%s1458 + $0x88] sm:$0xff]
    %v1477 = vld [vmem:[%s1458 + $0x90] sm:$0xff]
    %v1478 = vld [vmem:[%s1458 + $0x98] sm:$0xff]
    %v1479 = vld [vmem:[%s1458 + $0xa0] sm:$0xff]
    %v1480 = vld [vmem:[%s1458 + $0xa8] sm:$0xff]
    %v1481 = vld [vmem:[%s1458 + $0xb0] sm:$0xff]
    %v1482 = vld [vmem:[%s1458 + $0xb8] sm:$0xff]
    %v1483 = vld [vmem:[%s1458 + $0xc0] sm:$0xff]
    %v1484 = vld [vmem:[%s1458 + $0xc8] sm:$0xff]
    %v1485 = vld [vmem:[%s1458 + $0xd0] sm:$0xff]
    %v1486 = vld [vmem:[%s1458 + $0xd8] sm:$0xff]
    %v1487 = vld [vmem:[%s1458 + $0xe0] sm:$0xff]
    %v1488 = vld [vmem:[%s1458 + $0xe8] sm:$0xff]
    %v1489 = vld [vmem:[%s1458 + $0xf0] sm:$0xff]
    %v1490 = vld [vmem:[%s1458 + $0xf8] sm:$0xff]
    %s1491 = scalar_lea.vmem [#allocation7], 2
    %v1492 = vld [vmem:[%s1491] ss:$4 sm:$0x3]
    %v1494 = vperm.slane %v1492, 0
    %v1495 = vperm.slane %v1492, 1
    %v1530 = vunpack.c.l.b16 %v1459
    %v1531 = vunpack.c.h.b16 %v1459
    %v1532 = vunpack.c.l.b16 %v1460
    %v1533 = vunpack.c.h.b16 %v1460
    %v1534 = vunpack.c.l.b16 %v1461
    %v1535 = vunpack.c.h.b16 %v1461
    %v1536 = vunpack.c.l.b16 %v1462
    %v1537 = vunpack.c.h.b16 %v1462
    %v1538 = vunpack.c.l.b16 %v1463
    %v1539 = vunpack.c.h.b16 %v1463
    %v1540 = vunpack.c.l.b16 %v1464
    %v1541 = vunpack.c.h.b16 %v1464
    %v1542 = vunpack.c.l.b16 %v1465
    %v1543 = vunpack.c.h.b16 %v1465
    %v1544 = vunpack.c.l.b16 %v1466
    %v1545 = vunpack.c.h.b16 %v1466
    %v1546 = vunpack.c.l.b16 %v1467
    %v1547 = vunpack.c.h.b16 %v1467
    %v1548 = vunpack.c.l.b16 %v1468
    %v1549 = vunpack.c.h.b16 %v1468
    %v1550 = vunpack.c.l.b16 %v1469
    %v1551 = vunpack.c.h.b16 %v1469
    %v1552 = vunpack.c.l.b16 %v1470
    %v1553 = vunpack.c.h.b16 %v1470
    %v1554 = vunpack.c.l.b16 %v1471
    %v1555 = vunpack.c.h.b16 %v1471
    %v1556 = vunpack.c.l.b16 %v1472
    %v1557 = vunpack.c.h.b16 %v1472
    %v1558 = vunpack.c.l.b16 %v1473
    %v1559 = vunpack.c.h.b16 %v1473
    %v1560 = vunpack.c.l.b16 %v1474
    %v1561 = vunpack.c.h.b16 %v1474
    %v1562 = vunpack.c.l.b16 %v1475
    %v1563 = vunpack.c.h.b16 %v1475
    %v1564 = vunpack.c.l.b16 %v1476
    %v1565 = vunpack.c.h.b16 %v1476
    %v1566 = vunpack.c.l.b16 %v1477
    %v1567 = vunpack.c.h.b16 %v1477
    %v1568 = vunpack.c.l.b16 %v1478
    %v1569 = vunpack.c.h.b16 %v1478
    %v1570 = vunpack.c.l.b16 %v1479
    %v1571 = vunpack.c.h.b16 %v1479
    %v1572 = vunpack.c.l.b16 %v1480
    %v1573 = vunpack.c.h.b16 %v1480
    %v1574 = vunpack.c.l.b16 %v1481
    %v1575 = vunpack.c.h.b16 %v1481
    %v1576 = vunpack.c.l.b16 %v1482
    %v1577 = vunpack.c.h.b16 %v1482
    %v1578 = vunpack.c.l.b16 %v1483
    %v1579 = vunpack.c.h.b16 %v1483
    %v1580 = vunpack.c.l.b16 %v1484
    %v1581 = vunpack.c.h.b16 %v1484
    %v1582 = vunpack.c.l.b16 %v1485
    %v1583 = vunpack.c.h.b16 %v1485
    %v1584 = vunpack.c.l.b16 %v1486
    %v1585 = vunpack.c.h.b16 %v1486
    %v1586 = vunpack.c.l.b16 %v1487
    %v1587 = vunpack.c.h.b16 %v1487
    %v1588 = vunpack.c.l.b16 %v1488
    %v1589 = vunpack.c.h.b16 %v1488
    %v1590 = vunpack.c.l.b16 %v1489
    %v1591 = vunpack.c.h.b16 %v1489
    %v1592 = vunpack.c.l.b16 %v1490
    %v1593 = vunpack.c.h.b16 %v1490
    %v1594 = vpack.c.b16 %v1532, %v1530
    %v1595 = vpack.c.b16 %v1533, %v1531
    %v1596 = vpack.c.b16 %v1536, %v1534
    %v1597 = vpack.c.b16 %v1537, %v1535
    %v1598 = vpack.c.b16 %v1540, %v1538
    %v1599 = vpack.c.b16 %v1541, %v1539
    %v1600 = vpack.c.b16 %v1544, %v1542
    %v1601 = vpack.c.b16 %v1545, %v1543
    %v1602 = vpack.c.b16 %v1548, %v1546
    %v1603 = vpack.c.b16 %v1549, %v1547
    %v1604 = vpack.c.b16 %v1552, %v1550
    %v1605 = vpack.c.b16 %v1553, %v1551
    %v1606 = vpack.c.b16 %v1556, %v1554
    %v1607 = vpack.c.b16 %v1557, %v1555
    %v1608 = vpack.c.b16 %v1560, %v1558
    %v1609 = vpack.c.b16 %v1561, %v1559
    %v1610 = vpack.c.b16 %v1564, %v1562
    %v1611 = vpack.c.b16 %v1565, %v1563
    %v1612 = vpack.c.b16 %v1568, %v1566
    %v1613 = vpack.c.b16 %v1569, %v1567
    %v1614 = vpack.c.b16 %v1572, %v1570
    %v1615 = vpack.c.b16 %v1573, %v1571
    %v1616 = vpack.c.b16 %v1576, %v1574
    %v1617 = vpack.c.b16 %v1577, %v1575
    %v1618 = vpack.c.b16 %v1580, %v1578
    %v1619 = vpack.c.b16 %v1581, %v1579
    %v1620 = vpack.c.b16 %v1584, %v1582
    %v1621 = vpack.c.b16 %v1585, %v1583
    %v1622 = vpack.c.b16 %v1588, %v1586
    %v1623 = vpack.c.b16 %v1589, %v1587
    %v1624 = vpack.c.b16 %v1592, %v1590
    %v1625 = vpack.c.b16 %v1593, %v1591
    %1658 = vmatpush.bf16.msra.mxu0 %v1608
    %1659 = vmatpush.bf16.msra.mxu0 %v1606
    %1660 = vmatpush.bf16.msra.mxu0 %v1604
    %1661 = vmatpush.bf16.msra.mxu0 %v1602
    %1662 = vmatpush.bf16.msra.mxu0 %v1600
    %1663 = vmatpush.bf16.msra.mxu0 %v1598
    %1664 = vmatpush.bf16.msra.mxu0 %v1596
    %1665 = vmatpush.bf16.msra.mxu0 %v1594
    %1666 = vmatmul.bf16.gmra.mxu0 %v1426
    %v1667 = vpop.f32.mrf.mxu0
    %v1668 = vadd.f32 %v1494, %v1667
    %v1669 = vpop.f32.mrf.mxu0
    %v1670 = vadd.f32 %v1494, %v1669
    %1671 = vmatmul.bf16.gmra.mxu0 %v1428
    %v1672 = vpop.f32.mrf.mxu0
    %v1673 = vadd.f32 %v1494, %v1672
    %v1674 = vpop.f32.mrf.mxu0
    %v1675 = vadd.f32 %v1494, %v1674
    %1676 = vmatmul.bf16.gmra.mxu0 %v1430
    %v1677 = vpop.f32.mrf.mxu0
    %v1678 = vadd.f32 %v1494, %v1677
    %v1679 = vpop.f32.mrf.mxu0
    %v1680 = vadd.f32 %v1494, %v1679
    %1681 = vmatmul.bf16.gmra.mxu0 %v1432
    %v1682 = vpop.f32.mrf.mxu0
    %v1683 = vadd.f32 %v1494, %v1682
    %v1684 = vpop.f32.mrf.mxu0
    %v1685 = vadd.f32 %v1494, %v1684
    %1686 = vmatmul.bf16.gmra.mxu0 %v1434
    %v1687 = vpop.f32.mrf.mxu0
    %v1688 = vadd.f32 %v1494, %v1687
    %v1689 = vpop.f32.mrf.mxu0
    %v1690 = vadd.f32 %v1494, %v1689
    %1691 = vmatmul.bf16.gmra.mxu0 %v1436
    %v1692 = vpop.f32.mrf.mxu0
    %v1693 = vadd.f32 %v1494, %v1692
    %v1694 = vpop.f32.mrf.mxu0
    %v1695 = vadd.f32 %v1494, %v1694
    %1696 = vmatmul.bf16.gmra.mxu0 %v1438
    %v1697 = vpop.f32.mrf.mxu0
    %v1698 = vadd.f32 %v1494, %v1697
    %v1699 = vpop.f32.mrf.mxu0
    %v1700 = vadd.f32 %v1494, %v1699
    %1701 = vmatmul.bf16.gmra.mxu0 %v1440
    %v1702 = vpop.f32.mrf.mxu0
    %v1703 = vadd.f32 %v1494, %v1702
    %v1704 = vpop.f32.mrf.mxu0
    %v1705 = vadd.f32 %v1494, %v1704
    %1706 = vmatmul.bf16.gmra.mxu0 %v1442
    %v1707 = vpop.f32.mrf.mxu0
    %v1708 = vadd.f32 %v1494, %v1707
    %v1709 = vpop.f32.mrf.mxu0
    %v1710 = vadd.f32 %v1494, %v1709
    %1711 = vmatmul.bf16.gmra.mxu0 %v1444
    %v1712 = vpop.f32.mrf.mxu0
    %v1713 = vadd.f32 %v1494, %v1712
    %v1714 = vpop.f32.mrf.mxu0
    %v1715 = vadd.f32 %v1494, %v1714
    %1716 = vmatmul.bf16.gmra.mxu0 %v1446
    %v1717 = vpop.f32.mrf.mxu0
    %v1718 = vadd.f32 %v1494, %v1717
    %v1719 = vpop.f32.mrf.mxu0
    %v1720 = vadd.f32 %v1494, %v1719
    %1721 = vmatmul.bf16.gmra.mxu0 %v1448
    %v1722 = vpop.f32.mrf.mxu0
    %v1723 = vadd.f32 %v1494, %v1722
    %v1724 = vpop.f32.mrf.mxu0
    %v1725 = vadd.f32 %v1494, %v1724
    %1726 = vmatmul.bf16.gmra.mxu0 %v1450
    %v1727 = vpop.f32.mrf.mxu0
    %v1728 = vadd.f32 %v1494, %v1727
    %v1729 = vpop.f32.mrf.mxu0
    %v1730 = vadd.f32 %v1494, %v1729
    %1731 = vmatmul.bf16.gmra.mxu0 %v1452
    %v1732 = vpop.f32.mrf.mxu0
    %v1733 = vadd.f32 %v1494, %v1732
    %v1734 = vpop.f32.mrf.mxu0
    %v1735 = vadd.f32 %v1494, %v1734
    %1736 = vmatmul.bf16.gmra.mxu0 %v1454
    %v1737 = vpop.f32.mrf.mxu0
    %v1738 = vadd.f32 %v1494, %v1737
    %v1739 = vpop.f32.mrf.mxu0
    %v1740 = vadd.f32 %v1494, %v1739
    %1741 = vmatmul.bf16.gmra.mxu0 %v1456
    %v1742 = vpop.f32.mrf.mxu0
    %v1743 = vadd.f32 %v1494, %v1742
    %v1744 = vpop.f32.mrf.mxu0
    %v1745 = vadd.f32 %v1494, %v1744
    %1746 = vdwg.mxu0
    %1747 = vmatpush.bf16.msra.mxu0 %v1624
    %1748 = vmatpush.bf16.msra.mxu0 %v1622
    %1749 = vmatpush.bf16.msra.mxu0 %v1620
    %1750 = vmatpush.bf16.msra.mxu0 %v1618
    %1751 = vmatpush.bf16.msra.mxu0 %v1616
    %1752 = vmatpush.bf16.msra.mxu0 %v1614
    %1753 = vmatpush.bf16.msra.mxu0 %v1612
    %1754 = vmatpush.bf16.msra.mxu0 %v1610
    %1755 = vmatmul.bf16.gmra.mxu0 %v1427
    %v1756 = vpop.f32.mrf.mxu0
    %v1757 = vadd.f32 %v1668, %v1756
    %v1758 = vpop.f32.mrf.mxu0
    %v1759 = vadd.f32 %v1670, %v1758
    %1760 = vmatmul.bf16.gmra.mxu0 %v1429
    %v1761 = vpop.f32.mrf.mxu0
    %v1762 = vadd.f32 %v1673, %v1761
    %v1763 = vpop.f32.mrf.mxu0
    %v1764 = vadd.f32 %v1675, %v1763
    %1765 = vmatmul.bf16.gmra.mxu0 %v1431
    %v1766 = vpop.f32.mrf.mxu0
    %v1767 = vadd.f32 %v1678, %v1766
    %v1768 = vpop.f32.mrf.mxu0
    %v1769 = vadd.f32 %v1680, %v1768
    %1770 = vmatmul.bf16.gmra.mxu0 %v1433
    %v1771 = vpop.f32.mrf.mxu0
    %v1772 = vadd.f32 %v1683, %v1771
    %v1773 = vpop.f32.mrf.mxu0
    %v1774 = vadd.f32 %v1685, %v1773
    %1775 = vmatmul.bf16.gmra.mxu0 %v1435
    %v1776 = vpop.f32.mrf.mxu0
    %v1777 = vadd.f32 %v1688, %v1776
    %v1778 = vpop.f32.mrf.mxu0
    %v1779 = vadd.f32 %v1690, %v1778
    %1780 = vmatmul.bf16.gmra.mxu0 %v1437
    %v1781 = vpop.f32.mrf.mxu0
    %v1782 = vadd.f32 %v1693, %v1781
    %v1783 = vpop.f32.mrf.mxu0
    %v1784 = vadd.f32 %v1695, %v1783
    %1785 = vmatmul.bf16.gmra.mxu0 %v1439
    %v1786 = vpop.f32.mrf.mxu0
    %v1787 = vadd.f32 %v1698, %v1786
    %v1788 = vpop.f32.mrf.mxu0
    %v1789 = vadd.f32 %v1700, %v1788
    %1790 = vmatmul.bf16.gmra.mxu0 %v1441
    %v1791 = vpop.f32.mrf.mxu0
    %v1792 = vadd.f32 %v1703, %v1791
    %v1793 = vpop.f32.mrf.mxu0
    %v1794 = vadd.f32 %v1705, %v1793
    %1795 = vmatmul.bf16.gmra.mxu0 %v1443
    %v1796 = vpop.f32.mrf.mxu0
    %v1797 = vadd.f32 %v1708, %v1796
    %v1798 = vpop.f32.mrf.mxu0
    %v1799 = vadd.f32 %v1710, %v1798
    %1800 = vmatmul.bf16.gmra.mxu0 %v1445
    %v1801 = vpop.f32.mrf.mxu0
    %v1802 = vadd.f32 %v1713, %v1801
    %v1803 = vpop.f32.mrf.mxu0
    %v1804 = vadd.f32 %v1715, %v1803
    %1805 = vmatmul.bf16.gmra.mxu0 %v1447
    %v1806 = vpop.f32.mrf.mxu0
    %v1807 = vadd.f32 %v1718, %v1806
    %v1808 = vpop.f32.mrf.mxu0
    %v1809 = vadd.f32 %v1720, %v1808
    %1810 = vmatmul.bf16.gmra.mxu0 %v1449
    %v1811 = vpop.f32.mrf.mxu0
    %v1812 = vadd.f32 %v1723, %v1811
    %v1813 = vpop.f32.mrf.mxu0
    %v1814 = vadd.f32 %v1725, %v1813
    %1815 = vmatmul.bf16.gmra.mxu0 %v1451
    %v1816 = vpop.f32.mrf.mxu0
    %v1817 = vadd.f32 %v1728, %v1816
    %v1818 = vpop.f32.mrf.mxu0
    %v1819 = vadd.f32 %v1730, %v1818
    %1820 = vmatmul.bf16.gmra.mxu0 %v1453
    %v1821 = vpop.f32.mrf.mxu0
    %v1822 = vadd.f32 %v1733, %v1821
    %v1823 = vpop.f32.mrf.mxu0
    %v1824 = vadd.f32 %v1735, %v1823
    %1825 = vmatmul.bf16.gmra.mxu0 %v1455
    %v1826 = vpop.f32.mrf.mxu0
    %v1827 = vadd.f32 %v1738, %v1826
    %v1828 = vpop.f32.mrf.mxu0
    %v1829 = vadd.f32 %v1740, %v1828
    %1830 = vmatmul.bf16.gmra.mxu0 %v1457
    %v1831 = vpop.f32.mrf.mxu0
    %v1832 = vadd.f32 %v1743, %v1831
    %v1833 = vpop.f32.mrf.mxu0
    %v1834 = vadd.f32 %v1745, %v1833
    %1835 = vdwg.mxu0
    %1836 = vmatpush.bf16.msra.mxu0 %v1609
    %1837 = vmatpush.bf16.msra.mxu0 %v1607
    %1838 = vmatpush.bf16.msra.mxu0 %v1605
    %1839 = vmatpush.bf16.msra.mxu0 %v1603
    %1840 = vmatpush.bf16.msra.mxu0 %v1601
    %1841 = vmatpush.bf16.msra.mxu0 %v1599
    %1842 = vmatpush.bf16.msra.mxu0 %v1597
    %1843 = vmatpush.bf16.msra.mxu0 %v1595
    %1844 = vmatmul.bf16.gmra.mxu0 %v1426
    %v1845 = vpop.f32.mrf.mxu0
    %v1846 = vadd.f32 %v1495, %v1845
    %v1847 = vpop.f32.mrf.mxu0
    %v1848 = vadd.f32 %v1495, %v1847
    %1849 = vmatmul.bf16.gmra.mxu0 %v1428
    %v1850 = vpop.f32.mrf.mxu0
    %v1851 = vadd.f32 %v1495, %v1850
    %v1852 = vpop.f32.mrf.mxu0
    %v1853 = vadd.f32 %v1495, %v1852
    %1854 = vmatmul.bf16.gmra.mxu0 %v1430
    %v1855 = vpop.f32.mrf.mxu0
    %v1856 = vadd.f32 %v1495, %v1855
    %v1857 = vpop.f32.mrf.mxu0
    %v1858 = vadd.f32 %v1495, %v1857
    %1859 = vmatmul.bf16.gmra.mxu0 %v1432
    %v1860 = vpop.f32.mrf.mxu0
    %v1861 = vadd.f32 %v1495, %v1860
    %v1862 = vpop.f32.mrf.mxu0
    %v1863 = vadd.f32 %v1495, %v1862
    %1864 = vmatmul.bf16.gmra.mxu0 %v1434
    %v1865 = vpop.f32.mrf.mxu0
    %v1866 = vadd.f32 %v1495, %v1865
    %v1867 = vpop.f32.mrf.mxu0
    %v1868 = vadd.f32 %v1495, %v1867
    %1869 = vmatmul.bf16.gmra.mxu0 %v1436
    %v1870 = vpop.f32.mrf.mxu0
    %v1871 = vadd.f32 %v1495, %v1870
    %v1872 = vpop.f32.mrf.mxu0
    %v1873 = vadd.f32 %v1495, %v1872
    %1874 = vmatmul.bf16.gmra.mxu0 %v1438
    %v1875 = vpop.f32.mrf.mxu0
    %v1876 = vadd.f32 %v1495, %v1875
    %v1877 = vpop.f32.mrf.mxu0
    %v1878 = vadd.f32 %v1495, %v1877
    %1879 = vmatmul.bf16.gmra.mxu0 %v1440
    %v1880 = vpop.f32.mrf.mxu0
    %v1881 = vadd.f32 %v1495, %v1880
    %v1882 = vpop.f32.mrf.mxu0
    %v1883 = vadd.f32 %v1495, %v1882
    %1884 = vmatmul.bf16.gmra.mxu0 %v1442
    %v1885 = vpop.f32.mrf.mxu0
    %v1886 = vadd.f32 %v1495, %v1885
    %v1887 = vpop.f32.mrf.mxu0
    %v1888 = vadd.f32 %v1495, %v1887
    %1889 = vmatmul.bf16.gmra.mxu0 %v1444
    %v1890 = vpop.f32.mrf.mxu0
    %v1891 = vadd.f32 %v1495, %v1890
    %v1892 = vpop.f32.mrf.mxu0
    %v1893 = vadd.f32 %v1495, %v1892
    %1894 = vmatmul.bf16.gmra.mxu0 %v1446
    %v1895 = vpop.f32.mrf.mxu0
    %v1896 = vadd.f32 %v1495, %v1895
    %v1897 = vpop.f32.mrf.mxu0
    %v1898 = vadd.f32 %v1495, %v1897
    %1899 = vmatmul.bf16.gmra.mxu0 %v1448
    %v1900 = vpop.f32.mrf.mxu0
    %v1901 = vadd.f32 %v1495, %v1900
    %v1902 = vpop.f32.mrf.mxu0
    %v1903 = vadd.f32 %v1495, %v1902
    %1904 = vmatmul.bf16.gmra.mxu0 %v1450
    %v1905 = vpop.f32.mrf.mxu0
    %v1906 = vadd.f32 %v1495, %v1905
    %v1907 = vpop.f32.mrf.mxu0
    %v1908 = vadd.f32 %v1495, %v1907
    %1909 = vmatmul.bf16.gmra.mxu0 %v1452
    %v1910 = vpop.f32.mrf.mxu0
    %v1911 = vadd.f32 %v1495, %v1910
    %v1912 = vpop.f32.mrf.mxu0
    %v1913 = vadd.f32 %v1495, %v1912
    %1914 = vmatmul.bf16.gmra.mxu0 %v1454
    %v1915 = vpop.f32.mrf.mxu0
    %v1916 = vadd.f32 %v1495, %v1915
    %v1917 = vpop.f32.mrf.mxu0
    %v1918 = vadd.f32 %v1495, %v1917
    %1919 = vmatmul.bf16.gmra.mxu0 %v1456
    %v1920 = vpop.f32.mrf.mxu0
    %v1921 = vadd.f32 %v1495, %v1920
    %v1922 = vpop.f32.mrf.mxu0
    %v1923 = vadd.f32 %v1495, %v1922
    %1924 = vdwg.mxu0
    %1925 = vmatpush.bf16.msra.mxu0 %v1625
    %1926 = vmatpush.bf16.msra.mxu0 %v1623
    %1927 = vmatpush.bf16.msra.mxu0 %v1621
    %1928 = vmatpush.bf16.msra.mxu0 %v1619
    %1929 = vmatpush.bf16.msra.mxu0 %v1617
    %1930 = vmatpush.bf16.msra.mxu0 %v1615
    %1931 = vmatpush.bf16.msra.mxu0 %v1613
    %1932 = vmatpush.bf16.msra.mxu0 %v1611
    %1933 = vmatmul.bf16.gmra.mxu0 %v1427
    %v1934 = vpop.f32.mrf.mxu0
    %v1935 = vadd.f32 %v1846, %v1934
    %v1936 = vpop.f32.mrf.mxu0
    %v1937 = vadd.f32 %v1848, %v1936
    %1938 = vmatmul.bf16.gmra.mxu0 %v1429
    %v1939 = vpop.f32.mrf.mxu0
    %v1940 = vadd.f32 %v1851, %v1939
    %v1941 = vpop.f32.mrf.mxu0
    %v1942 = vadd.f32 %v1853, %v1941
    %1943 = vmatmul.bf16.gmra.mxu0 %v1431
    %v1944 = vpop.f32.mrf.mxu0
    %v1945 = vadd.f32 %v1856, %v1944
    %v1946 = vpop.f32.mrf.mxu0
    %v1947 = vadd.f32 %v1858, %v1946
    %1948 = vmatmul.bf16.gmra.mxu0 %v1433
    %v1949 = vpop.f32.mrf.mxu0
    %v1950 = vadd.f32 %v1861, %v1949
    %v1951 = vpop.f32.mrf.mxu0
    %v1952 = vadd.f32 %v1863, %v1951
    %1953 = vmatmul.bf16.gmra.mxu0 %v1435
    %v1954 = vpop.f32.mrf.mxu0
    %v1955 = vadd.f32 %v1866, %v1954
    %v1956 = vpop.f32.mrf.mxu0
    %v1957 = vadd.f32 %v1868, %v1956
    %1958 = vmatmul.bf16.gmra.mxu0 %v1437
    %v1959 = vpop.f32.mrf.mxu0
    %v1960 = vadd.f32 %v1871, %v1959
    %v1961 = vpop.f32.mrf.mxu0
    %v1962 = vadd.f32 %v1873, %v1961
    %1963 = vmatmul.bf16.gmra.mxu0 %v1439
    %v1964 = vpop.f32.mrf.mxu0
    %v1965 = vadd.f32 %v1876, %v1964
    %v1966 = vpop.f32.mrf.mxu0
    %v1967 = vadd.f32 %v1878, %v1966
    %1968 = vmatmul.bf16.gmra.mxu0 %v1441
    %v1969 = vpop.f32.mrf.mxu0
    %v1970 = vadd.f32 %v1881, %v1969
    %v1971 = vpop.f32.mrf.mxu0
    %v1972 = vadd.f32 %v1883, %v1971
    %1973 = vmatmul.bf16.gmra.mxu0 %v1443
    %v1974 = vpop.f32.mrf.mxu0
    %v1975 = vadd.f32 %v1886, %v1974
    %v1976 = vpop.f32.mrf.mxu0
    %v1977 = vadd.f32 %v1888, %v1976
    %1978 = vmatmul.bf16.gmra.mxu0 %v1445
    %v1979 = vpop.f32.mrf.mxu0
    %v1980 = vadd.f32 %v1891, %v1979
    %v1981 = vpop.f32.mrf.mxu0
    %v1982 = vadd.f32 %v1893, %v1981
    %1983 = vmatmul.bf16.gmra.mxu0 %v1447
    %v1984 = vpop.f32.mrf.mxu0
    %v1985 = vadd.f32 %v1896, %v1984
    %v1986 = vpop.f32.mrf.mxu0
    %v1987 = vadd.f32 %v1898, %v1986
    %1988 = vmatmul.bf16.gmra.mxu0 %v1449
    %v1989 = vpop.f32.mrf.mxu0
    %v1990 = vadd.f32 %v1901, %v1989
    %v1991 = vpop.f32.mrf.mxu0
    %v1992 = vadd.f32 %v1903, %v1991
    %1993 = vmatmul.bf16.gmra.mxu0 %v1451
    %v1994 = vpop.f32.mrf.mxu0
    %v1995 = vadd.f32 %v1906, %v1994
    %v1996 = vpop.f32.mrf.mxu0
    %v1997 = vadd.f32 %v1908, %v1996
    %1998 = vmatmul.bf16.gmra.mxu0 %v1453
    %v1999 = vpop.f32.mrf.mxu0
    %v2000 = vadd.f32 %v1911, %v1999
    %v2001 = vpop.f32.mrf.mxu0
    %v2002 = vadd.f32 %v1913, %v2001
    %2003 = vmatmul.bf16.gmra.mxu0 %v1455
    %v2004 = vpop.f32.mrf.mxu0
    %v2005 = vadd.f32 %v1916, %v2004
    %v2006 = vpop.f32.mrf.mxu0
    %v2007 = vadd.f32 %v1918, %v2006
    %2008 = vmatmul.bf16.gmra.mxu0 %v1457
    %v2009 = vpop.f32.mrf.mxu0
    %v2010 = vadd.f32 %v1921, %v2009
    %v2011 = vpop.f32.mrf.mxu0
    %v2012 = vadd.f32 %v1923, %v2011
    %2013 = vdwg.mxu0
    %v2014 = vmax.f32 %v1757, 0.0
    %v2015 = vmax.f32 %v1935, 0.0
    %v2016 = vmax.f32 %v1759, 0.0
    %v2017 = vmax.f32 %v1937, 0.0
    %v2018 = vmax.f32 %v1762, 0.0
    %v2019 = vmax.f32 %v1940, 0.0
    %v2020 = vmax.f32 %v1764, 0.0
    %v2021 = vmax.f32 %v1942, 0.0
    %v2022 = vmax.f32 %v1767, 0.0
    %v2023 = vmax.f32 %v1945, 0.0
    %v2024 = vmax.f32 %v1769, 0.0
    %v2025 = vmax.f32 %v1947, 0.0
    %v2026 = vmax.f32 %v1772, 0.0
    %v2027 = vmax.f32 %v1950, 0.0
    %v2028 = vmax.f32 %v1774, 0.0
    %v2029 = vmax.f32 %v1952, 0.0
    %v2030 = vmax.f32 %v1777, 0.0
    %v2031 = vmax.f32 %v1955, 0.0
    %v2032 = vmax.f32 %v1779, 0.0
    %v2033 = vmax.f32 %v1957, 0.0
    %v2034 = vmax.f32 %v1782, 0.0
    %v2035 = vmax.f32 %v1960, 0.0
    %v2036 = vmax.f32 %v1784, 0.0
    %v2037 = vmax.f32 %v1962, 0.0
    %v2038 = vmax.f32 %v1787, 0.0
    %v2039 = vmax.f32 %v1965, 0.0
    %v2040 = vmax.f32 %v1789, 0.0
    %v2041 = vmax.f32 %v1967, 0.0
    %v2042 = vmax.f32 %v1792, 0.0
    %v2043 = vmax.f32 %v1970, 0.0
    %v2044 = vmax.f32 %v1794, 0.0
    %v2045 = vmax.f32 %v1972, 0.0
    %v2046 = vmax.f32 %v1797, 0.0
    %v2047 = vmax.f32 %v1975, 0.0
    %v2048 = vmax.f32 %v1799, 0.0
    %v2049 = vmax.f32 %v1977, 0.0
    %v2050 = vmax.f32 %v1802, 0.0
    %v2051 = vmax.f32 %v1980, 0.0
    %v2052 = vmax.f32 %v1804, 0.0
    %v2053 = vmax.f32 %v1982, 0.0
    %v2054 = vmax.f32 %v1807, 0.0
    %v2055 = vmax.f32 %v1985, 0.0
    %v2056 = vmax.f32 %v1809, 0.0
    %v2057 = vmax.f32 %v1987, 0.0
    %v2058 = vmax.f32 %v1812, 0.0
    %v2059 = vmax.f32 %v1990, 0.0
    %v2060 = vmax.f32 %v1814, 0.0
    %v2061 = vmax.f32 %v1992, 0.0
    %v2062 = vmax.f32 %v1817, 0.0
    %v2063 = vmax.f32 %v1995, 0.0
    %v2064 = vmax.f32 %v1819, 0.0
    %v2065 = vmax.f32 %v1997, 0.0
    %v2066 = vmax.f32 %v1822, 0.0
    %v2067 = vmax.f32 %v2000, 0.0
    %v2068 = vmax.f32 %v1824, 0.0
    %v2069 = vmax.f32 %v2002, 0.0
    %v2070 = vmax.f32 %v1827, 0.0
    %v2071 = vmax.f32 %v2005, 0.0
    %v2072 = vmax.f32 %v1829, 0.0
    %v2073 = vmax.f32 %v2007, 0.0
    %v2074 = vmax.f32 %v1832, 0.0
    %v2075 = vmax.f32 %v2010, 0.0
    %v2076 = vmax.f32 %v1834, 0.0
    %v2077 = vmax.f32 %v2012, 0.0
    %2078 = vst [vmem:[#allocation8] sm:$0xff] %v2014
    %2079 = vst [vmem:[#allocation8 + $0x8] sm:$0xff] %v2015
    %2080 = vst [vmem:[#allocation8 + $0x10] sm:$0xff] %v2016
    %2081 = vst [vmem:[#allocation8 + $0x18] sm:$0xff] %v2017
    %2082 = vst [vmem:[#allocation8 + $0x20] sm:$0xff] %v2018
    %2083 = vst [vmem:[#allocation8 + $0x28] sm:$0xff] %v2019
    %2084 = vst [vmem:[#allocation8 + $0x30] sm:$0xff] %v2020
    %2085 = vst [vmem:[#allocation8 + $0x38] sm:$0xff] %v2021
    %2086 = vst [vmem:[#allocation8 + $0x40] sm:$0xff] %v2022
    %2087 = vst [vmem:[#allocation8 + $0x48] sm:$0xff] %v2023
    %2088 = vst [vmem:[#allocation8 + $0x50] sm:$0xff] %v2024
    %2089 = vst [vmem:[#allocation8 + $0x58] sm:$0xff] %v2025
    %2090 = vst [vmem:[#allocation8 + $0x60] sm:$0xff] %v2026
    %2091 = vst [vmem:[#allocation8 + $0x68] sm:$0xff] %v2027
    %2092 = vst [vmem:[#allocation8 + $0x70] sm:$0xff] %v2028
    %2093 = vst [vmem:[#allocation8 + $0x78] sm:$0xff] %v2029
    %2094 = vst [vmem:[#allocation8 + $0x80] sm:$0xff] %v2030
    %2095 = vst [vmem:[#allocation8 + $0x88] sm:$0xff] %v2031
    %2096 = vst [vmem:[#allocation8 + $0x90] sm:$0xff] %v2032
    %2097 = vst [vmem:[#allocation8 + $0x98] sm:$0xff] %v2033
    %2098 = vst [vmem:[#allocation8 + $0xa0] sm:$0xff] %v2034
    %2099 = vst [vmem:[#allocation8 + $0xa8] sm:$0xff] %v2035
    %2100 = vst [vmem:[#allocation8 + $0xb0] sm:$0xff] %v2036
    %2101 = vst [vmem:[#allocation8 + $0xb8] sm:$0xff] %v2037
    %2102 = vst [vmem:[#allocation8 + $0xc0] sm:$0xff] %v2038
    %2103 = vst [vmem:[#allocation8 + $0xc8] sm:$0xff] %v2039
    %2104 = vst [vmem:[#allocation8 + $0xd0] sm:$0xff] %v2040
    %2105 = vst [vmem:[#allocation8 + $0xd8] sm:$0xff] %v2041
    %2106 = vst [vmem:[#allocation8 + $0xe0] sm:$0xff] %v2042
    %2107 = vst [vmem:[#allocation8 + $0xe8] sm:$0xff] %v2043
    %2108 = vst [vmem:[#allocation8 + $0xf0] sm:$0xff] %v2044
    %2109 = vst [vmem:[#allocation8 + $0xf8] sm:$0xff] %v2045
    %2110 = vst [vmem:[#allocation8 + $0x100] sm:$0xff] %v2046
    %2111 = vst [vmem:[#allocation8 + $0x108] sm:$0xff] %v2047
    %2112 = vst [vmem:[#allocation8 + $0x110] sm:$0xff] %v2048
    %2113 = vst [vmem:[#allocation8 + $0x118] sm:$0xff] %v2049
    %2114 = vst [vmem:[#allocation8 + $0x120] sm:$0xff] %v2050
    %2115 = vst [vmem:[#allocation8 + $0x128] sm:$0xff] %v2051
    %2116 = vst [vmem:[#allocation8 + $0x130] sm:$0xff] %v2052
    %2117 = vst [vmem:[#allocation8 + $0x138] sm:$0xff] %v2053
    %2118 = vst [vmem:[#allocation8 + $0x140] sm:$0xff] %v2054
    %2119 = vst [vmem:[#allocation8 + $0x148] sm:$0xff] %v2055
    %2120 = vst [vmem:[#allocation8 + $0x150] sm:$0xff] %v2056
    %2121 = vst [vmem:[#allocation8 + $0x158] sm:$0xff] %v2057
    %2122 = vst [vmem:[#allocation8 + $0x160] sm:$0xff] %v2058
    %2123 = vst [vmem:[#allocation8 + $0x168] sm:$0xff] %v2059
    %2124 = vst [vmem:[#allocation8 + $0x170] sm:$0xff] %v2060
    %2125 = vst [vmem:[#allocation8 + $0x178] sm:$0xff] %v2061
    %2126 = vst [vmem:[#allocation8 + $0x180] sm:$0xff] %v2062
    %2127 = vst [vmem:[#allocation8 + $0x188] sm:$0xff] %v2063
    %2128 = vst [vmem:[#allocation8 + $0x190] sm:$0xff] %v2064
    %2129 = vst [vmem:[#allocation8 + $0x198] sm:$0xff] %v2065
    %2130 = vst [vmem:[#allocation8 + $0x1a0] sm:$0xff] %v2066
    %2131 = vst [vmem:[#allocation8 + $0x1a8] sm:$0xff] %v2067
    %2132 = vst [vmem:[#allocation8 + $0x1b0] sm:$0xff] %v2068
    %2133 = vst [vmem:[#allocation8 + $0x1b8] sm:$0xff] %v2069
    %2134 = vst [vmem:[#allocation8 + $0x1c0] sm:$0xff] %v2070
    %2135 = vst [vmem:[#allocation8 + $0x1c8] sm:$0xff] %v2071
    %2136 = vst [vmem:[#allocation8 + $0x1d0] sm:$0xff] %v2072
    %2137 = vst [vmem:[#allocation8 + $0x1d8] sm:$0xff] %v2073
    %2138 = vst [vmem:[#allocation8 + $0x1e0] sm:$0xff] %v2074
    %2139 = vst [vmem:[#allocation8 + $0x1e8] sm:$0xff] %v2075
    %2140 = vst [vmem:[#allocation8 + $0x1f0] sm:$0xff] %v2076
    %2141 = vst [vmem:[#allocation8 + $0x1f8] sm:$0xff] %v2077
    // Predicated region
    $region26: #{tpu_custom_call.1} parent=1 // pred_check
      _
    $region27: #{tpu_custom_call.1} parent=1 // pred_check_branch
      %2143 = sbr.rel (0) target = $region29
    $region28: #{tpu_custom_call.1} parent=1 // pred_region
      %2145 = vsyncadd [#allocation4], 0
      %s2146 = sshll.u32 [#allocation8], 4
      %s2147 = int_to_ptr.vmem [resolvable:$true] %s2146
      %s2148 = sshll.u32 %s3, 4
      %s2149 = int_to_ptr.hbm [resolvable:$true] %s2148
      %2154 = dma.vmem_to_hbm [thread:$0]  %s2147, 8192, %s2149, [#allocation4], 256, 256, 16
    $region29: #{tpu_custom_call.1} parent=1 // pred_fallthru
      _
    // Predicated region
    $region30: #{tpu_custom_call.1} parent=1 // pred_check
      _
    $region31: #{tpu_custom_call.1} parent=1 // pred_check_branch
      %2156 = sbr.rel (0) target = $region33
    $region32: #{tpu_custom_call.1} parent=1 // pred_region
      %2158 = dma.done [#allocation4], 8192
    $region33: #{tpu_custom_call.1} parent=1 // pred_fallthru
      _
    %2159 = vsyncpa [#allocation3], 1
    %2160 = vsyncpa [#allocation6], 1
    %2161 = vsyncpa [#allocation4], 1

</llo_original>
